<compile_context>
chip_gen: v5e
topology: v5e:2x2
jax: 0.10.0
libtpu: 0.0.40
codegen_flags: <defaults>
</compile_context>

<pallas_src>
import functools
import math

import jax
import jax.numpy as jnp
from jax.experimental import pallas as pl
from jax.experimental.pallas import tpu as pltpu


# --------------------------------------------------------------------------
# Conv encoder layer: fused im2col + bf16 MXU matmul + bias + ReLU
# --------------------------------------------------------------------------
def _conv3x3_s2_relu_kernel(xm_ref, xh_ref, w_ref, b_ref, o_ref):
    """One (batch, row-tile) step of a 3x3 / stride-2 / pad-1 conv + ReLU.

    xm_ref : (4, TH, Wh, Cin) bf16  -- 4 stride phases, phase-rows [i*TH, (i+1)*TH)
    xh_ref : (4, 1,  Wh, Cin) bf16  -- halo phase-row (i+1)*TH
    w_ref  : (9, Cin, Cout)   bf16  -- per-tap weights, (kh*3 + kw) major
    b_ref  : (1, Cout)        f32
    o_ref  : (1, TH*Wo, Cout) bf16
    """
    _, TH, Wh, Cin = xm_ref.shape
    Wo = Wh - 1
    Cout = o_ref.shape[-1]

    # Stack the 1-row halo under the main block (major-dim concat, cheap).
    x_all = jnp.concatenate([xm_ref[...], xh_ref[...]], axis=1)  # (4, TH+1, Wh, Cin)

    # Accumulate the 9 taps as bf16 MXU matmuls into an f32 accumulator.
    acc = jnp.zeros((TH * Wo, Cout), jnp.float32)
    for kh in range(3):
        for kw in range(3):
            p = 2 * (kh % 2) + (kw % 2)          # stride-2 phase of this tap
            dh, dw = kh // 2, kw // 2            # offset inside the phase grid
            tap = x_all[p, dh:dh + TH, dw:dw + Wo, :]            # (TH, Wo, Cin)
            tap = tap.reshape(TH * Wo, Cin)
            acc = acc + jnp.dot(tap, w_ref[kh * 3 + kw],
                                preferred_element_type=jnp.float32)

    # f32 epilogue (bias + ReLU), cast only at the store.
    acc = acc + b_ref[...]
    # TODO(synk): Cout (8..32) keeps output stores lane-sparse; packing several
    # layers' channels or fusing layers would make them lane-dense.
    o_ref[0] = jnp.maximum(acc, 0.0).astype(o_ref.dtype)


def _pick_row_tile(Ho, Wo):
    """Row-tile so that TH*Wo (the matmul M) is ~<=2K rows, TH | Ho and the
    flattened block stays sublane-aligned.  Keeps 2x double-buffered blocks
    tiny relative to VMEM on every generation (incl. v7x's 64 MiB)."""
    TH = Ho
    while TH % 2 == 0 and TH * Wo > 2048 and ((TH // 2) * Wo) % 8 == 0:
        TH //= 2
    return max(TH, 1)


def _conv3x3_s2_relu_pallas(x_nhwc, weight, bias):
    """3x3 / stride-2 / pad-1 conv + bias + ReLU.

    x_nhwc : (B, H, W, Cin) bf16 (NHWC);  weight: (Cout, Cin, 3, 3) f32 (OIHW).
    Returns (B, H//2, W//2, Cout) bf16.
    """
    B, H, W, Cin = x_nhwc.shape
    Cout = weight.shape[0]
    # TODO(synk): odd H/W (output size (H+2p-K)//s + 1) not handled here; the
    # HF conv encoder interpolates the mask to the feature size in that case.
    assert H % 2 == 0 and W % 2 == 0, "stride-2 / pad-1 path assumes even dims"
    Ho, Wo = H // 2, W // 2
    Hh, Wh = Ho + 1, Wo + 1

    # Pad by 1 and split into the 2x2 stride phases: a single ~1x XLA relayout
    # (instead of a 9x im2col materialization in HBM).  Phase p = 2*rh + rw
    # holds padded rows/cols with parities (rh, rw).
    xp = jnp.pad(x_nhwc, ((0, 0), (1, 1), (1, 1), (0, 0)))
    xp = xp.reshape(B, Hh, 2, Wh, 2, Cin)
    xph = jnp.transpose(xp, (0, 2, 4, 1, 3, 5)).reshape(B * 4, Hh, Wh, Cin)
    xph = xph.astype(jnp.bfloat16)

    # Weights: OIHW -> (kh, kw, cin, cout) -> (9, Cin, Cout); bf16 MXU operands.
    w3 = jnp.transpose(weight, (2, 3, 1, 0)).reshape(9, Cin, Cout)
    w3 = w3.astype(jnp.bfloat16)
    b2 = bias.reshape(1, Cout).astype(jnp.float32)

    TH = _pick_row_tile(Ho, Wo)
    grid = (B, Ho // TH)

    out = pl.pallas_call(
        _conv3x3_s2_relu_kernel,
        out_shape=jax.ShapeDtypeStruct((B, Ho * Wo, Cout), jnp.bfloat16),
        grid=grid,
        in_specs=[
            # main phase block: rows [i*TH, (i+1)*TH) of all 4 phases
            pl.BlockSpec((4, TH, Wh, Cin), lambda b, i: (b, i, 0, 0)),
            # 1-row halo block: phase row (i+1)*TH (needed by the kh=2 taps)
            pl.BlockSpec((4, 1, Wh, Cin), lambda b, i: (b, (i + 1) * TH, 0, 0)),
            # small resident weights / bias
            pl.BlockSpec((9, Cin, Cout), lambda b, i: (0, 0, 0)),
            pl.BlockSpec((1, Cout), lambda b, i: (0, 0)),
        ],
        out_specs=pl.BlockSpec((1, TH * Wo, Cout), lambda b, i: (b, i, 0)),
        compiler_params=pltpu.CompilerParams(
            dimension_semantics=("parallel", "parallel"),
            vmem_limit_bytes=32 * 1024 * 1024,
        ),
    )(xph, xph, w3, b2)
    return out.reshape(B, Ho, Wo, Cout)


# --------------------------------------------------------------------------
# Sine position embedding (DETR-style, normalized, temperature=1e4)
# --------------------------------------------------------------------------
def _sine_pos_kernel(mask_ref, tril_ref, triu_ref, expand_ref, phase_ref,
                     posy_ref, posx_ref, *, scale, eps):
    H = mask_ref.shape[1]
    W = mask_ref.shape[2]

    m = mask_ref[0]                                                # (H, W) f32
    # inclusive cumsums as triangular matmuls on the MXU
    y_embed = jnp.dot(tril_ref[...], m, preferred_element_type=jnp.float32)
    x_embed = jnp.dot(m, triu_ref[...], preferred_element_type=jnp.float32)

    # normalize to [0, 2*pi]
    y_embed = y_embed * (scale / (y_embed[H - 1:H, :] + eps))
    x_embed = x_embed * (scale / (x_embed[:, W - 1:W] + eps))

    # Outer product with 1/dim_t as a lane-dense matmul: (H, W) @ (W, W*P).
    ang_y = jnp.dot(y_embed, expand_ref[...], preferred_element_type=jnp.float32)
    ang_x = jnp.dot(x_embed, expand_ref[...], preferred_element_type=jnp.float32)

    # Single sin with a phase offset row (0, pi/2, 0, pi/2, ...): even channel
    # -> sin, odd channel -> cos.  Two dense stores, no in-kernel concat.
    ph = phase_ref[...]                                            # (1, W*P)
    posy_ref[0] = jnp.sin(ang_y + ph)
    posx_ref[0] = jnp.sin(ang_x + ph)


def sine_position_embedding_pallas(mask_f, num_pos_feats, temperature=10000.0):
    """mask_f: (B, H, W) float (1.0 = valid).  Returns (B, 2P, H, W) f32."""
    # TODO(synk): temperature/normalize/scale follow the HF defaults
    # (normalize=True, scale=2*pi, temperature=1e4).
    B, H, W = mask_f.shape
    P = num_pos_feats
    scale = 2.0 * math.pi
    eps = 1e-6

    tril = jnp.tril(jnp.ones((H, H), jnp.float32))        # cumsum over H
    triu = jnp.triu(jnp.ones((W, W), jnp.float32))        # cumsum over W
    idx = jnp.arange(P, dtype=jnp.float32)
    dim_t = temperature ** (2.0 * jnp.floor(idx / 2.0) / P)
    inv_dim_t = (1.0 / dim_t).astype(jnp.float32)                    # (P,)
    # expand[w, w*P + p] = 1/dim_t[p]  (block-diagonal lane expansion)
    expand = jnp.kron(jnp.eye(W, dtype=jnp.float32), inv_dim_t[None, :])
    phase = jnp.tile(
        jnp.where(jnp.arange(P) % 2 == 0, 0.0, 0.5 * math.pi), W
    ).astype(jnp.float32)[None, :]                                   # (1, W*P)

    kernel = functools.partial(_sine_pos_kernel, scale=scale, eps=eps)
    pos_y, pos_x = pl.pallas_call(
        kernel,
        out_shape=(jax.ShapeDtypeStruct((B, H, W * P), jnp.float32),
                   jax.ShapeDtypeStruct((B, H, W * P), jnp.float32)),
        grid=(B,),
        in_specs=[
            pl.BlockSpec((1, H, W), lambda b: (b, 0, 0)),
            pl.BlockSpec((H, H), lambda b: (0, 0)),
            pl.BlockSpec((W, W), lambda b: (0, 0)),
            pl.BlockSpec((W, W * P), lambda b: (0, 0)),
            pl.BlockSpec((1, W * P), lambda b: (0, 0)),
        ],
        out_specs=(pl.BlockSpec((1, H, W * P), lambda b: (b, 0, 0)),
                   pl.BlockSpec((1, H, W * P), lambda b: (b, 0, 0))),
        compiler_params=pltpu.CompilerParams(
            dimension_semantics=("parallel",),
            vmem_limit_bytes=32 * 1024 * 1024,
        ),
    )(mask_f, tril, triu, expand, phase)

    pos_y = pos_y.reshape(B, H, W, P)
    pos_x = pos_x.reshape(B, H, W, P)
    pos = jnp.concatenate([pos_y, pos_x], axis=-1)        # (B, H, W, 2P)
    return jnp.transpose(pos, (0, 3, 1, 2))               # (B, 2P, H, W)


# --------------------------------------------------------------------------
# Mask downsampling (nearest resize to the feature-map size)
# --------------------------------------------------------------------------
def _downsample_mask_nearest(mask, out_h, out_w):
    # TODO(synk): mirrors F.interpolate(mode="nearest") to the conv output
    # size; equals mask[:, ::2, ::2] for even dims.
    B, H, W = mask.shape
    ih = (jnp.arange(out_h) * H) // out_h
    iw = (jnp.arange(out_w) * W) // out_w
    return mask[:, ih][:, :, iw]


# --------------------------------------------------------------------------
# GroundedAudioConvModel forward (Pallas-backed)
# --------------------------------------------------------------------------
def grounded_audio_conv_model(audio_values, audio_mask, weights, biases,
                              backbone_layer):
    """audio_values: (B, Cin, H, W) NCHW f32; audio_mask: (B, H, W) bool."""
    x = jnp.transpose(audio_values, (0, 2, 3, 1)).astype(jnp.bfloat16)  # NHWC
    mask = audio_mask
    outs, masks = [], []
    for w, b in zip(weights, biases):
        x = _conv3x3_s2_relu_pallas(x, w, b)                     # bf16 NHWC
        mask = _downsample_mask_nearest(mask, x.shape[1], x.shape[2])
        outs.append(x)
        masks.append(mask)

    # TODO(synk): layers past backbone_layer could be skipped / fused into a
    # single VMEM-resident kernel; kept separate to mirror the encoder.
    feat = outs[backbone_layer]        # (B, Ho, Wo, C) bf16
    fmask = masks[backbone_layer]      # (B, Ho, Wo) bool
    num_pos_feats = feat.shape[-1] // 2
    pos = sine_position_embedding_pallas(fmask.astype(jnp.float32), num_pos_feats)
    feat_nchw = jnp.transpose(feat, (0, 3, 1, 2)).astype(jnp.float32)
    return feat_nchw, pos, fmask


# --------------------------------------------------------------------------
# Pure-JAX reference (f32, for verification only)
# --------------------------------------------------------------------------
def _reference_forward(audio_values, audio_mask, weights, biases, backbone_layer):
    x = jnp.transpose(audio_values, (0, 2, 3, 1)).astype(jnp.float32)
    mask = audio_mask
    outs, masks = [], []
    for w, b in zip(weights, biases):
        w_hwio = jnp.transpose(w, (2, 3, 1, 0))
        x = jax.lax.conv_general_dilated(
            x, w_hwio, (2, 2), ((1, 1), (1, 1)),
            dimension_numbers=("NHWC", "HWIO", "NHWC"))
        x = jnp.maximum(x + b, 0.0)
        mask = _downsample_mask_nearest(mask, x.shape[1], x.shape[2])
        outs.append(x)
        masks.append(mask)
    feat = outs[backbone_layer]
    fmask = masks[backbone_layer]
    P = feat.shape[-1] // 2
    mf = fmask.astype(jnp.float32)
    B, H, W = mf.shape
    y = jnp.cumsum(mf, axis=1)
    xx = jnp.cumsum(mf, axis=2)
    eps, scale = 1e-6, 2 * math.pi
    y = y / (y[:, -1:, :] + eps) * scale
    xx = xx / (xx[:, :, -1:] + eps) * scale
    dim_t = 10000.0 ** (2.0 * (jnp.arange(P) // 2).astype(jnp.float32) / P)
    px = xx[..., None] / dim_t
    py = y[..., None] / dim_t
    px = jnp.stack([jnp.sin(px[..., 0::2]), jnp.cos(px[..., 1::2])],
                   axis=4).reshape(B, H, W, P)
    py = jnp.stack([jnp.sin(py[..., 0::2]), jnp.cos(py[..., 1::2])],
                   axis=4).reshape(B, H, W, P)
    pos = jnp.transpose(jnp.concatenate([py, px], axis=3), (0, 3, 1, 2))
    return jnp.transpose(feat, (0, 3, 1, 2)), pos, fmask


# --------------------------------------------------------------------------
if __name__ == "__main__":
    key = jax.random.PRNGKey(0)

    # Conv encoder: 3 layers, 3x3 kernel, stride 2, padding 1.
    channels = [4, 8, 16, 32]
    weights, biases = [], []
    for i in range(3):
        key, kw, kb = jax.random.split(key, 3)
        weights.append(
            jax.random.normal(kw, (channels[i + 1], channels[i], 3, 3),
                              jnp.float32) * 0.1)
        biases.append(
            jax.random.normal(kb, (channels[i + 1],), jnp.float32) * 0.01)

    backbone_layer = 1

    key, kx = jax.random.split(key)
    audio_values = jax.random.normal(kx, (2, 4, 16, 16), jnp.float32)
    audio_mask = jnp.ones((2, 16, 16), dtype=bool).at[1, :, 12:].set(False)

    fwd = jax.jit(grounded_audio_conv_model, static_argnums=(4,))
    feat, pos, out_mask = fwd(audio_values, audio_mask, weights, biases,
                              backbone_layer)
    jax.block_until_ready((feat, pos, out_mask))

    feat_ref, pos_ref, mask_ref = _reference_forward(
        audio_values, audio_mask, weights, biases, backbone_layer)

    assert feat.shape == feat_ref.shape and pos.shape == pos_ref.shape
    # Conv path uses bf16 MXU operands (f32 accumulation) -> compare with a
    # bf16-appropriate tolerance against the f32 reference.
    assert jnp.allclose(feat, feat_ref, atol=5e-2, rtol=5e-2)
    assert jnp.allclose(pos, pos_ref, atol=1e-3, rtol=1e-3)
    assert jnp.array_equal(out_mask, mask_ref)

    print("KERNEL_OK")
</pallas_src>

<mosaic_0001>
module attributes {stable_mosaic.version = 11 : i64} {
  func.func @_conv3x3_s2_relu_kernel(%arg0: i32, %arg1: i32, %arg2: memref<4x8x9x4xbf16, #tpu.memory_space<vmem>>, %arg3: memref<4x1x9x4xbf16, #tpu.memory_space<vmem>>, %arg4: memref<9x4x8xbf16, #tpu.memory_space<vmem>>, %arg5: memref<1x8xf32, #tpu.memory_space<vmem>>, %arg6: memref<1x64x8xbf16, #tpu.memory_space<vmem>>) attributes {dimension_semantics = [#tpu.dimension_semantics<parallel>, #tpu.dimension_semantics<parallel>], iteration_bounds = array<i64: 2, 1>, scalar_prefetch = 0 : i64, scratch_operands = 0 : i64, tpu.core_type = #tpu.core_type<tc>, window_params = [{transform_indices = @transform_0, window_bounds = array<i64: 4, 8, 9, 4>}, {transform_indices = @transform_1, window_bounds = array<i64: 4, 1, 9, 4>}, {pipeline_mode = #tpu.pipeline_mode<synchronous>, transform_indices = @transform_2, window_bounds = array<i64: 9, 4, 8>}, {pipeline_mode = #tpu.pipeline_mode<synchronous>, transform_indices = @transform_3, window_bounds = array<i64: 1, 8>}, {transform_indices = @transform_4, window_bounds = array<i64: 1, 64, 8>}]} {
    %c0 = arith.constant 0 : index
    %c0_0 = arith.constant 0 : index
    %c0_1 = arith.constant 0 : index
    %c0_2 = arith.constant 0 : index
    %0 = vector.load %arg2[%c0, %c0_0, %c0_1, %c0_2] : memref<4x8x9x4xbf16, #tpu.memory_space<vmem>>, vector<4x8x9x4xbf16>
    %c0_3 = arith.constant 0 : index
    %c0_4 = arith.constant 0 : index
    %c0_5 = arith.constant 0 : index
    %c0_6 = arith.constant 0 : index
    %1 = vector.load %arg3[%c0_3, %c0_4, %c0_5, %c0_6] : memref<4x1x9x4xbf16, #tpu.memory_space<vmem>>, vector<4x1x9x4xbf16>
    %2 = tpu.concatenate %0, %1 in 1 : vector<4x8x9x4xbf16>, vector<4x1x9x4xbf16> -> vector<4x9x9x4xbf16>
    %cst = arith.constant 0.000000e+00 : f32
    %3 = vector.broadcast %cst : f32 to vector<64x8xf32>
    %4 = vector.extract_strided_slice %2 {offsets = [0, 0, 0, 0], sizes = [1, 8, 8, 4], strides = [1, 1, 1, 1]} : vector<4x9x9x4xbf16> to vector<1x8x8x4xbf16>
    %5 = vector.shape_cast %4 : vector<1x8x8x4xbf16> to vector<8x8x4xbf16>
    %6 = vector.shape_cast %5 : vector<8x8x4xbf16> to vector<64x4xbf16>
    %c0_7 = arith.constant 0 : index
    %c0_8 = arith.constant 0 : index
    %c0_9 = arith.constant 0 : index
    %7 = vector.load %arg4[%c0_7, %c0_8, %c0_9] : memref<9x4x8xbf16, #tpu.memory_space<vmem>>, vector<1x4x8xbf16>
    %8 = vector.shape_cast %7 : vector<1x4x8xbf16> to vector<4x8xbf16>
    %cst_10 = arith.constant dense<0.000000e+00> : vector<64x8xf32>
    %9 = tpu.matmul %6, %8, %cst_10 {dimension_numbers = #tpu.dot_dimension_numbers<[1], [0], [0], [1], [0, 0, 1, 1], [], []>} : vector<64x4xbf16>, vector<4x8xbf16>, vector<64x8xf32> -> vector<64x8xf32>
    %10 = arith.addf %3, %9 : vector<64x8xf32>
    %11 = vector.extract_strided_slice %2 {offsets = [1, 0, 0, 0], sizes = [1, 8, 8, 4], strides = [1, 1, 1, 1]} : vector<4x9x9x4xbf16> to vector<1x8x8x4xbf16>
    %12 = vector.shape_cast %11 : vector<1x8x8x4xbf16> to vector<8x8x4xbf16>
    %13 = vector.shape_cast %12 : vector<8x8x4xbf16> to vector<64x4xbf16>
    %c1 = arith.constant 1 : index
    %c0_11 = arith.constant 0 : index
    %c0_12 = arith.constant 0 : index
    %14 = vector.load %arg4[%c1, %c0_11, %c0_12] : memref<9x4x8xbf16, #tpu.memory_space<vmem>>, vector<1x4x8xbf16>
    %15 = vector.shape_cast %14 : vector<1x4x8xbf16> to vector<4x8xbf16>
    %cst_13 = arith.constant dense<0.000000e+00> : vector<64x8xf32>
    %16 = tpu.matmul %13, %15, %cst_13 {dimension_numbers = #tpu.dot_dimension_numbers<[1], [0], [0], [1], [0, 0, 1, 1], [], []>} : vector<64x4xbf16>, vector<4x8xbf16>, vector<64x8xf32> -> vector<64x8xf32>
    %17 = arith.addf %10, %16 : vector<64x8xf32>
    %18 = vector.extract_strided_slice %2 {offsets = [0, 0, 1, 0], sizes = [1, 8, 8, 4], strides = [1, 1, 1, 1]} : vector<4x9x9x4xbf16> to vector<1x8x8x4xbf16>
    %19 = vector.shape_cast %18 : vector<1x8x8x4xbf16> to vector<8x8x4xbf16>
    %20 = vector.shape_cast %19 : vector<8x8x4xbf16> to vector<64x4xbf16>
    %c2 = arith.constant 2 : index
    %c0_14 = arith.constant 0 : index
    %c0_15 = arith.constant 0 : index
    %21 = vector.load %arg4[%c2, %c0_14, %c0_15] : memref<9x4x8xbf16, #tpu.memory_space<vmem>>, vector<1x4x8xbf16>
    %22 = vector.shape_cast %21 : vector<1x4x8xbf16> to vector<4x8xbf16>
    %cst_16 = arith.constant dense<0.000000e+00> : vector<64x8xf32>
    %23 = tpu.matmul %20, %22, %cst_16 {dimension_numbers = #tpu.dot_dimension_numbers<[1], [0], [0], [1], [0, 0, 1, 1], [], []>} : vector<64x4xbf16>, vector<4x8xbf16>, vector<64x8xf32> -> vector<64x8xf32>
    %24 = arith.addf %17, %23 : vector<64x8xf32>
    %25 = vector.extract_strided_slice %2 {offsets = [2, 0, 0, 0], sizes = [1, 8, 8, 4], strides = [1, 1, 1, 1]} : vector<4x9x9x4xbf16> to vector<1x8x8x4xbf16>
    %26 = vector.shape_cast %25 : vector<1x8x8x4xbf16> to vector<8x8x4xbf16>
    %27 = vector.shape_cast %26 : vector<8x8x4xbf16> to vector<64x4xbf16>
    %c3 = arith.constant 3 : index
    %c0_17 = arith.constant 0 : index
    %c0_18 = arith.constant 0 : index
    %28 = vector.load %arg4[%c3, %c0_17, %c0_18] : memref<9x4x8xbf16, #tpu.memory_space<vmem>>, vector<1x4x8xbf16>
    %29 = vector.shape_cast %28 : vector<1x4x8xbf16> to vector<4x8xbf16>
    %cst_19 = arith.constant dense<0.000000e+00> : vector<64x8xf32>
    %30 = tpu.matmul %27, %29, %cst_19 {dimension_numbers = #tpu.dot_dimension_numbers<[1], [0], [0], [1], [0, 0, 1, 1], [], []>} : vector<64x4xbf16>, vector<4x8xbf16>, vector<64x8xf32> -> vector<64x8xf32>
    %31 = arith.addf %24, %30 : vector<64x8xf32>
    %32 = vector.extract_strided_slice %2 {offsets = [3, 0, 0, 0], sizes = [1, 8, 8, 4], strides = [1, 1, 1, 1]} : vector<4x9x9x4xbf16> to vector<1x8x8x4xbf16>
    %33 = vector.shape_cast %32 : vector<1x8x8x4xbf16> to vector<8x8x4xbf16>
    %34 = vector.shape_cast %33 : vector<8x8x4xbf16> to vector<64x4xbf16>
    %c4 = arith.constant 4 : index
    %c0_20 = arith.constant 0 : index
    %c0_21 = arith.constant 0 : index
    %35 = vector.load %arg4[%c4, %c0_20, %c0_21] : memref<9x4x8xbf16, #tpu.memory_space<vmem>>, vector<1x4x8xbf16>
    %36 = vector.shape_cast %35 : vector<1x4x8xbf16> to vector<4x8xbf16>
    %cst_22 = arith.constant dense<0.000000e+00> : vector<64x8xf32>
    %37 = tpu.matmul %34, %36, %cst_22 {dimension_numbers = #tpu.dot_dimension_numbers<[1], [0], [0], [1], [0, 0, 1, 1], [], []>} : vector<64x4xbf16>, vector<4x8xbf16>, vector<64x8xf32> -> vector<64x8xf32>
    %38 = arith.addf %31, %37 : vector<64x8xf32>
    %39 = vector.extract_strided_slice %2 {offsets = [2, 0, 1, 0], sizes = [1, 8, 8, 4], strides = [1, 1, 1, 1]} : vector<4x9x9x4xbf16> to vector<1x8x8x4xbf16>
    %40 = vector.shape_cast %39 : vector<1x8x8x4xbf16> to vector<8x8x4xbf16>
    %41 = vector.shape_cast %40 : vector<8x8x4xbf16> to vector<64x4xbf16>
    %c5 = arith.constant 5 : index
    %c0_23 = arith.constant 0 : index
    %c0_24 = arith.constant 0 : index
    %42 = vector.load %arg4[%c5, %c0_23, %c0_24] : memref<9x4x8xbf16, #tpu.memory_space<vmem>>, vector<1x4x8xbf16>
    %43 = vector.shape_cast %42 : vector<1x4x8xbf16> to vector<4x8xbf16>
    %cst_25 = arith.constant dense<0.000000e+00> : vector<64x8xf32>
    %44 = tpu.matmul %41, %43, %cst_25 {dimension_numbers = #tpu.dot_dimension_numbers<[1], [0], [0], [1], [0, 0, 1, 1], [], []>} : vector<64x4xbf16>, vector<4x8xbf16>, vector<64x8xf32> -> vector<64x8xf32>
    %45 = arith.addf %38, %44 : vector<64x8xf32>
    %46 = vector.extract_strided_slice %2 {offsets = [0, 1, 0, 0], sizes = [1, 8, 8, 4], strides = [1, 1, 1, 1]} : vector<4x9x9x4xbf16> to vector<1x8x8x4xbf16>
    %47 = vector.shape_cast %46 : vector<1x8x8x4xbf16> to vector<8x8x4xbf16>
    %48 = vector.shape_cast %47 : vector<8x8x4xbf16> to vector<64x4xbf16>
    %c6 = arith.constant 6 : index
    %c0_26 = arith.constant 0 : index
    %c0_27 = arith.constant 0 : index
    %49 = vector.load %arg4[%c6, %c0_26, %c0_27] : memref<9x4x8xbf16, #tpu.memory_space<vmem>>, vector<1x4x8xbf16>
    %50 = vector.shape_cast %49 : vector<1x4x8xbf16> to vector<4x8xbf16>
    %cst_28 = arith.constant dense<0.000000e+00> : vector<64x8xf32>
    %51 = tpu.matmul %48, %50, %cst_28 {dimension_numbers = #tpu.dot_dimension_numbers<[1], [0], [0], [1], [0, 0, 1, 1], [], []>} : vector<64x4xbf16>, vector<4x8xbf16>, vector<64x8xf32> -> vector<64x8xf32>
    %52 = arith.addf %45, %51 : vector<64x8xf32>
    %53 = vector.extract_strided_slice %2 {offsets = [1, 1, 0, 0], sizes = [1, 8, 8, 4], strides = [1, 1, 1, 1]} : vector<4x9x9x4xbf16> to vector<1x8x8x4xbf16>
    %54 = vector.shape_cast %53 : vector<1x8x8x4xbf16> to vector<8x8x4xbf16>
    %55 = vector.shape_cast %54 : vector<8x8x4xbf16> to vector<64x4xbf16>
    %c7 = arith.constant 7 : index
    %c0_29 = arith.constant 0 : index
    %c0_30 = arith.constant 0 : index
    %56 = vector.load %arg4[%c7, %c0_29, %c0_30] : memref<9x4x8xbf16, #tpu.memory_space<vmem>>, vector<1x4x8xbf16>
    %57 = vector.shape_cast %56 : vector<1x4x8xbf16> to vector<4x8xbf16>
    %cst_31 = arith.constant dense<0.000000e+00> : vector<64x8xf32>
    %58 = tpu.matmul %55, %57, %cst_31 {dimension_numbers = #tpu.dot_dimension_numbers<[1], [0], [0], [1], [0, 0, 1, 1], [], []>} : vector<64x4xbf16>, vector<4x8xbf16>, vector<64x8xf32> -> vector<64x8xf32>
    %59 = arith.addf %52, %58 : vector<64x8xf32>
    %60 = vector.extract_strided_slice %2 {offsets = [0, 1, 1, 0], sizes = [1, 8, 8, 4], strides = [1, 1, 1, 1]} : vector<4x9x9x4xbf16> to vector<1x8x8x4xbf16>
    %61 = vector.shape_cast %60 : vector<1x8x8x4xbf16> to vector<8x8x4xbf16>
    %62 = vector.shape_cast %61 : vector<8x8x4xbf16> to vector<64x4xbf16>
    %c8 = arith.constant 8 : index
    %c0_32 = arith.constant 0 : index
    %c0_33 = arith.constant 0 : index
    %63 = vector.load %arg4[%c8, %c0_32, %c0_33] : memref<9x4x8xbf16, #tpu.memory_space<vmem>>, vector<1x4x8xbf16>
    %64 = vector.shape_cast %63 : vector<1x4x8xbf16> to vector<4x8xbf16>
    %cst_34 = arith.constant dense<0.000000e+00> : vector<64x8xf32>
    %65 = tpu.matmul %62, %64, %cst_34 {dimension_numbers = #tpu.dot_dimension_numbers<[1], [0], [0], [1], [0, 0, 1, 1], [], []>} : vector<64x4xbf16>, vector<4x8xbf16>, vector<64x8xf32> -> vector<64x8xf32>
    %66 = arith.addf %59, %65 : vector<64x8xf32>
    %c0_35 = arith.constant 0 : index
    %c0_36 = arith.constant 0 : index
    %67 = vector.load %arg5[%c0_35, %c0_36] : memref<1x8xf32, #tpu.memory_space<vmem>>, vector<1x8xf32>
    %68 = vector.broadcast %67 : vector<1x8xf32> to vector<64x8xf32>
    %69 = arith.addf %66, %68 : vector<64x8xf32>
    %cst_37 = arith.constant 0.000000e+00 : f32
    %70 = vector.broadcast %cst_37 : f32 to vector<64x8xf32>
    %71 = arith.maximumf %69, %70 : vector<64x8xf32>
    %72 = arith.truncf %71 : vector<64x8xf32> to vector<64x8xbf16>
    %c0_38 = arith.constant 0 : index
    %c0_39 = arith.constant 0 : index
    %c0_40 = arith.constant 0 : index
    %73 = vector.load %arg6[%c0_38, %c0_39, %c0_40] : memref<1x64x8xbf16, #tpu.memory_space<vmem>>, vector<1x64x8xbf16>
    %74 = vector.shape_cast %73 : vector<1x64x8xbf16> to vector<64x8xbf16>
    %75 = vector.shape_cast %72 : vector<64x8xbf16> to vector<1x64x8xbf16>
    tpu.vector_store %arg6[%c0_38, %c0_39, %c0_40], %75 {strides = array<i32>} : memref<1x64x8xbf16, #tpu.memory_space<vmem>>, vector<1x64x8xbf16>,
    return
  }
  func.func @transform_0(%arg0: i32, %arg1: i32) -> (i32, i32, i32, i32) {
    %c0_i32 = arith.constant 0 : i32
    %c0_i32_0 = arith.constant 0 : i32
    %c0_i32_1 = arith.constant 0 : i32
    return %arg0, %arg1, %c0_i32, %c0_i32_0 : i32, i32, i32, i32
  }
  func.func @transform_1(%arg0: i32, %arg1: i32) -> (i32, i32, i32, i32) {
    %c1_i32 = arith.constant 1 : i32
    %0 = arith.addi %arg1, %c1_i32 : i32
    %c8_i32 = arith.constant 8 : i32
    %1 = arith.muli %0, %c8_i32 : i32
    %c0_i32 = arith.constant 0 : i32
    %c0_i32_0 = arith.constant 0 : i32
    %c0_i32_1 = arith.constant 0 : i32
    return %arg0, %1, %c0_i32, %c0_i32_0 : i32, i32, i32, i32
  }
  func.func @transform_2(%arg0: i32, %arg1: i32) -> (i32, i32, i32) {
    %c0_i32 = arith.constant 0 : i32
    %c0_i32_0 = arith.constant 0 : i32
    %c0_i32_1 = arith.constant 0 : i32
    %c0_i32_2 = arith.constant 0 : i32
    return %c0_i32, %c0_i32_0, %c0_i32_1 : i32, i32, i32
  }
  func.func @transform_3(%arg0: i32, %arg1: i32) -> (i32, i32) {
    %c0_i32 = arith.constant 0 : i32
    %c0_i32_0 = arith.constant 0 : i32
    %c0_i32_1 = arith.constant 0 : i32
    return %c0_i32, %c0_i32_0 : i32, i32
  }
  func.func @transform_4(%arg0: i32, %arg1: i32) -> (i32, i32, i32) {
    %c0_i32 = arith.constant 0 : i32
    %c0_i32_0 = arith.constant 0 : i32
    return %arg0, %arg1, %c0_i32 : i32, i32, i32
  }
}

module attributes {stable_mosaic.version = 11 : i64} {
  func.func @_conv3x3_s2_relu_kernel(%arg0: i32, %arg1: i32, %arg2: memref<4x4x5x8xbf16, #tpu.memory_space<vmem>>, %arg3: memref<4x1x5x8xbf16, #tpu.memory_space<vmem>>, %arg4: memref<9x8x16xbf16, #tpu.memory_space<vmem>>, %arg5: memref<1x16xf32, #tpu.memory_space<vmem>>, %arg6: memref<1x16x16xbf16, #tpu.memory_space<vmem>>) attributes {dimension_semantics = [#tpu.dimension_semantics<parallel>, #tpu.dimension_semantics<parallel>], iteration_bounds = array<i64: 2, 1>, scalar_prefetch = 0 : i64, scratch_operands = 0 : i64, tpu.core_type = #tpu.core_type<tc>, window_params = [{transform_indices = @transform_0, window_bounds = array<i64: 4, 4, 5, 8>}, {transform_indices = @transform_1, window_bounds = array<i64: 4, 1, 5, 8>}, {pipeline_mode = #tpu.pipeline_mode<synchronous>, transform_indices = @transform_2, window_bounds = array<i64: 9, 8, 16>}, {pipeline_mode = #tpu.pipeline_mode<synchronous>, transform_indices = @transform_3, window_bounds = array<i64: 1, 16>}, {transform_indices = @transform_4, window_bounds = array<i64: 1, 16, 16>}]} {
    %c0 = arith.constant 0 : index
    %c0_0 = arith.constant 0 : index
    %c0_1 = arith.constant 0 : index
    %c0_2 = arith.constant 0 : index
    %0 = vector.load %arg2[%c0, %c0_0, %c0_1, %c0_2] : memref<4x4x5x8xbf16, #tpu.memory_space<vmem>>, vector<4x4x5x8xbf16>
    %c0_3 = arith.constant 0 : index
    %c0_4 = arith.constant 0 : index
    %c0_5 = arith.constant 0 : index
    %c0_6 = arith.constant 0 : index
    %1 = vector.load %arg3[%c0_3, %c0_4, %c0_5, %c0_6] : memref<4x1x5x8xbf16, #tpu.memory_space<vmem>>, vector<4x1x5x8xbf16>
    %2 = tpu.concatenate %0, %1 in 1 : vector<4x4x5x8xbf16>, vector<4x1x5x8xbf16> -> vector<4x5x5x8xbf16>
    %cst = arith.constant 0.000000e+00 : f32
    %3 = vector.broadcast %cst : f32 to vector<16x16xf32>
    %4 = vector.extract_strided_slice %2 {offsets = [0, 0, 0, 0], sizes = [1, 4, 4, 8], strides = [1, 1, 1, 1]} : vector<4x5x5x8xbf16> to vector<1x4x4x8xbf16>
    %5 = vector.shape_cast %4 : vector<1x4x4x8xbf16> to vector<4x4x8xbf16>
    %6 = vector.shape_cast %5 : vector<4x4x8xbf16> to vector<16x8xbf16>
    %c0_7 = arith.constant 0 : index
    %c0_8 = arith.constant 0 : index
    %c0_9 = arith.constant 0 : index
    %7 = vector.load %arg4[%c0_7, %c0_8, %c0_9] : memref<9x8x16xbf16, #tpu.memory_space<vmem>>, vector<1x8x16xbf16>
    %8 = vector.shape_cast %7 : vector<1x8x16xbf16> to vector<8x16xbf16>
    %cst_10 = arith.constant dense<0.000000e+00> : vector<16x16xf32>
    %9 = tpu.matmul %6, %8, %cst_10 {dimension_numbers = #tpu.dot_dimension_numbers<[1], [0], [0], [1], [0, 0, 1, 1], [], []>} : vector<16x8xbf16>, vector<8x16xbf16>, vector<16x16xf32> -> vector<16x16xf32>
    %10 = arith.addf %3, %9 : vector<16x16xf32>
    %11 = vector.extract_strided_slice %2 {offsets = [1, 0, 0, 0], sizes = [1, 4, 4, 8], strides = [1, 1, 1, 1]} : vector<4x5x5x8xbf16> to vector<1x4x4x8xbf16>
    %12 = vector.shape_cast %11 : vector<1x4x4x8xbf16> to vector<4x4x8xbf16>
    %13 = vector.shape_cast %12 : vector<4x4x8xbf16> to vector<16x8xbf16>
    %c1 = arith.constant 1 : index
    %c0_11 = arith.constant 0 : index
    %c0_12 = arith.constant 0 : index
    %14 = vector.load %arg4[%c1, %c0_11, %c0_12] : memref<9x8x16xbf16, #tpu.memory_space<vmem>>, vector<1x8x16xbf16>
    %15 = vector.shape_cast %14 : vector<1x8x16xbf16> to vector<8x16xbf16>
    %cst_13 = arith.constant dense<0.000000e+00> : vector<16x16xf32>
    %16 = tpu.matmul %13, %15, %cst_13 {dimension_numbers = #tpu.dot_dimension_numbers<[1], [0], [0], [1], [0, 0, 1, 1], [], []>} : vector<16x8xbf16>, vector<8x16xbf16>, vector<16x16xf32> -> vector<16x16xf32>
    %17 = arith.addf %10, %16 : vector<16x16xf32>
    %18 = vector.extract_strided_slice %2 {offsets = [0, 0, 1, 0], sizes = [1, 4, 4, 8], strides = [1, 1, 1, 1]} : vector<4x5x5x8xbf16> to vector<1x4x4x8xbf16>
    %19 = vector.shape_cast %18 : vector<1x4x4x8xbf16> to vector<4x4x8xbf16>
    %20 = vector.shape_cast %19 : vector<4x4x8xbf16> to vector<16x8xbf16>
    %c2 = arith.constant 2 : index
    %c0_14 = arith.constant 0 : index
    %c0_15 = arith.constant 0 : index
    %21 = vector.load %arg4[%c2, %c0_14, %c0_15] : memref<9x8x16xbf16, #tpu.memory_space<vmem>>, vector<1x8x16xbf16>
    %22 = vector.shape_cast %21 : vector<1x8x16xbf16> to vector<8x16xbf16>
    %cst_16 = arith.constant dense<0.000000e+00> : vector<16x16xf32>
    %23 = tpu.matmul %20, %22, %cst_16 {dimension_numbers = #tpu.dot_dimension_numbers<[1], [0], [0], [1], [0, 0, 1, 1], [], []>} : vector<16x8xbf16>, vector<8x16xbf16>, vector<16x16xf32> -> vector<16x16xf32>
    %24 = arith.addf %17, %23 : vector<16x16xf32>
    %25 = vector.extract_strided_slice %2 {offsets = [2, 0, 0, 0], sizes = [1, 4, 4, 8], strides = [1, 1, 1, 1]} : vector<4x5x5x8xbf16> to vector<1x4x4x8xbf16>
    %26 = vector.shape_cast %25 : vector<1x4x4x8xbf16> to vector<4x4x8xbf16>
    %27 = vector.shape_cast %26 : vector<4x4x8xbf16> to vector<16x8xbf16>
    %c3 = arith.constant 3 : index
    %c0_17 = arith.constant 0 : index
    %c0_18 = arith.constant 0 : index
    %28 = vector.load %arg4[%c3, %c0_17, %c0_18] : memref<9x8x16xbf16, #tpu.memory_space<vmem>>, vector<1x8x16xbf16>
    %29 = vector.shape_cast %28 : vector<1x8x16xbf16> to vector<8x16xbf16>
    %cst_19 = arith.constant dense<0.000000e+00> : vector<16x16xf32>
    %30 = tpu.matmul %27, %29, %cst_19 {dimension_numbers = #tpu.dot_dimension_numbers<[1], [0], [0], [1], [0, 0, 1, 1], [], []>} : vector<16x8xbf16>, vector<8x16xbf16>, vector<16x16xf32> -> vector<16x16xf32>
    %31 = arith.addf %24, %30 : vector<16x16xf32>
    %32 = vector.extract_strided_slice %2 {offsets = [3, 0, 0, 0], sizes = [1, 4, 4, 8], strides = [1, 1, 1, 1]} : vector<4x5x5x8xbf16> to vector<1x4x4x8xbf16>
    %33 = vector.shape_cast %32 : vector<1x4x4x8xbf16> to vector<4x4x8xbf16>
    %34 = vector.shape_cast %33 : vector<4x4x8xbf16> to vector<16x8xbf16>
    %c4 = arith.constant 4 : index
    %c0_20 = arith.constant 0 : index
    %c0_21 = arith.constant 0 : index
    %35 = vector.load %arg4[%c4, %c0_20, %c0_21] : memref<9x8x16xbf16, #tpu.memory_space<vmem>>, vector<1x8x16xbf16>
    %36 = vector.shape_cast %35 : vector<1x8x16xbf16> to vector<8x16xbf16>
    %cst_22 = arith.constant dense<0.000000e+00> : vector<16x16xf32>
    %37 = tpu.matmul %34, %36, %cst_22 {dimension_numbers = #tpu.dot_dimension_numbers<[1], [0], [0], [1], [0, 0, 1, 1], [], []>} : vector<16x8xbf16>, vector<8x16xbf16>, vector<16x16xf32> -> vector<16x16xf32>
    %38 = arith.addf %31, %37 : vector<16x16xf32>
    %39 = vector.extract_strided_slice %2 {offsets = [2, 0, 1, 0], sizes = [1, 4, 4, 8], strides = [1, 1, 1, 1]} : vector<4x5x5x8xbf16> to vector<1x4x4x8xbf16>
    %40 = vector.shape_cast %39 : vector<1x4x4x8xbf16> to vector<4x4x8xbf16>
    %41 = vector.shape_cast %40 : vector<4x4x8xbf16> to vector<16x8xbf16>
    %c5 = arith.constant 5 : index
    %c0_23 = arith.constant 0 : index
    %c0_24 = arith.constant 0 : index
    %42 = vector.load %arg4[%c5, %c0_23, %c0_24] : memref<9x8x16xbf16, #tpu.memory_space<vmem>>, vector<1x8x16xbf16>
    %43 = vector.shape_cast %42 : vector<1x8x16xbf16> to vector<8x16xbf16>
    %cst_25 = arith.constant dense<0.000000e+00> : vector<16x16xf32>
    %44 = tpu.matmul %41, %43, %cst_25 {dimension_numbers = #tpu.dot_dimension_numbers<[1], [0], [0], [1], [0, 0, 1, 1], [], []>} : vector<16x8xbf16>, vector<8x16xbf16>, vector<16x16xf32> -> vector<16x16xf32>
    %45 = arith.addf %38, %44 : vector<16x16xf32>
    %46 = vector.extract_strided_slice %2 {offsets = [0, 1, 0, 0], sizes = [1, 4, 4, 8], strides = [1, 1, 1, 1]} : vector<4x5x5x8xbf16> to vector<1x4x4x8xbf16>
    %47 = vector.shape_cast %46 : vector<1x4x4x8xbf16> to vector<4x4x8xbf16>
    %48 = vector.shape_cast %47 : vector<4x4x8xbf16> to vector<16x8xbf16>
    %c6 = arith.constant 6 : index
    %c0_26 = arith.constant 0 : index
    %c0_27 = arith.constant 0 : index
    %49 = vector.load %arg4[%c6, %c0_26, %c0_27] : memref<9x8x16xbf16, #tpu.memory_space<vmem>>, vector<1x8x16xbf16>
    %50 = vector.shape_cast %49 : vector<1x8x16xbf16> to vector<8x16xbf16>
    %cst_28 = arith.constant dense<0.000000e+00> : vector<16x16xf32>
    %51 = tpu.matmul %48, %50, %cst_28 {dimension_numbers = #tpu.dot_dimension_numbers<[1], [0], [0], [1], [0, 0, 1, 1], [], []>} : vector<16x8xbf16>, vector<8x16xbf16>, vector<16x16xf32> -> vector<16x16xf32>
    %52 = arith.addf %45, %51 : vector<16x16xf32>
    %53 = vector.extract_strided_slice %2 {offsets = [1, 1, 0, 0], sizes = [1, 4, 4, 8], strides = [1, 1, 1, 1]} : vector<4x5x5x8xbf16> to vector<1x4x4x8xbf16>
    %54 = vector.shape_cast %53 : vector<1x4x4x8xbf16> to vector<4x4x8xbf16>
    %55 = vector.shape_cast %54 : vector<4x4x8xbf16> to vector<16x8xbf16>
    %c7 = arith.constant 7 : index
    %c0_29 = arith.constant 0 : index
    %c0_30 = arith.constant 0 : index
    %56 = vector.load %arg4[%c7, %c0_29, %c0_30] : memref<9x8x16xbf16, #tpu.memory_space<vmem>>, vector<1x8x16xbf16>
    %57 = vector.shape_cast %56 : vector<1x8x16xbf16> to vector<8x16xbf16>
    %cst_31 = arith.constant dense<0.000000e+00> : vector<16x16xf32>
    %58 = tpu.matmul %55, %57, %cst_31 {dimension_numbers = #tpu.dot_dimension_numbers<[1], [0], [0], [1], [0, 0, 1, 1], [], []>} : vector<16x8xbf16>, vector<8x16xbf16>, vector<16x16xf32> -> vector<16x16xf32>
    %59 = arith.addf %52, %58 : vector<16x16xf32>
    %60 = vector.extract_strided_slice %2 {offsets = [0, 1, 1, 0], sizes = [1, 4, 4, 8], strides = [1, 1, 1, 1]} : vector<4x5x5x8xbf16> to vector<1x4x4x8xbf16>
    %61 = vector.shape_cast %60 : vector<1x4x4x8xbf16> to vector<4x4x8xbf16>
    %62 = vector.shape_cast %61 : vector<4x4x8xbf16> to vector<16x8xbf16>
    %c8 = arith.constant 8 : index
    %c0_32 = arith.constant 0 : index
    %c0_33 = arith.constant 0 : index
    %63 = vector.load %arg4[%c8, %c0_32, %c0_33] : memref<9x8x16xbf16, #tpu.memory_space<vmem>>, vector<1x8x16xbf16>
    %64 = vector.shape_cast %63 : vector<1x8x16xbf16> to vector<8x16xbf16>
    %cst_34 = arith.constant dense<0.000000e+00> : vector<16x16xf32>
    %65 = tpu.matmul %62, %64, %cst_34 {dimension_numbers = #tpu.dot_dimension_numbers<[1], [0], [0], [1], [0, 0, 1, 1], [], []>} : vector<16x8xbf16>, vector<8x16xbf16>, vector<16x16xf32> -> vector<16x16xf32>
    %66 = arith.addf %59, %65 : vector<16x16xf32>
    %c0_35 = arith.constant 0 : index
    %c0_36 = arith.constant 0 : index
    %67 = vector.load %arg5[%c0_35, %c0_36] : memref<1x16xf32, #tpu.memory_space<vmem>>, vector<1x16xf32>
    %68 = vector.broadcast %67 : vector<1x16xf32> to vector<16x16xf32>
    %69 = arith.addf %66, %68 : vector<16x16xf32>
    %cst_37 = arith.constant 0.000000e+00 : f32
    %70 = vector.broadcast %cst_37 : f32 to vector<16x16xf32>
    %71 = arith.maximumf %69, %70 : vector<16x16xf32>
    %72 = arith.truncf %71 : vector<16x16xf32> to vector<16x16xbf16>
    %c0_38 = arith.constant 0 : index
    %c0_39 = arith.constant 0 : index
    %c0_40 = arith.constant 0 : index
    %73 = vector.load %arg6[%c0_38, %c0_39, %c0_40] : memref<1x16x16xbf16, #tpu.memory_space<vmem>>, vector<1x16x16xbf16>
    %74 = vector.shape_cast %73 : vector<1x16x16xbf16> to vector<16x16xbf16>
    %75 = vector.shape_cast %72 : vector<16x16xbf16> to vector<1x16x16xbf16>
    tpu.vector_store %arg6[%c0_38, %c0_39, %c0_40], %75 {strides = array<i32>} : memref<1x16x16xbf16, #tpu.memory_space<vmem>>, vector<1x16x16xbf16>,
    return
  }
  func.func @transform_0(%arg0: i32, %arg1: i32) -> (i32, i32, i32, i32) {
    %c0_i32 = arith.constant 0 : i32
    %c0_i32_0 = arith.constant 0 : i32
    %c0_i32_1 = arith.constant 0 : i32
    return %arg0, %arg1, %c0_i32, %c0_i32_0 : i32, i32, i32, i32
  }
  func.func @transform_1(%arg0: i32, %arg1: i32) -> (i32, i32, i32, i32) {
    %c1_i32 = arith.constant 1 : i32
    %0 = arith.addi %arg1, %c1_i32 : i32
    %c4_i32 = arith.constant 4 : i32
    %1 = arith.muli %0, %c4_i32 : i32
    %c0_i32 = arith.constant 0 : i32
    %c0_i32_0 = arith.constant 0 : i32
    %c0_i32_1 = arith.constant 0 : i32
    return %arg0, %1, %c0_i32, %c0_i32_0 : i32, i32, i32, i32
  }
  func.func @transform_2(%arg0: i32, %arg1: i32) -> (i32, i32, i32) {
    %c0_i32 = arith.constant 0 : i32
    %c0_i32_0 = arith.constant 0 : i32
    %c0_i32_1 = arith.constant 0 : i32
    %c0_i32_2 = arith.constant 0 : i32
    return %c0_i32, %c0_i32_0, %c0_i32_1 : i32, i32, i32
  }
  func.func @transform_3(%arg0: i32, %arg1: i32) -> (i32, i32) {
    %c0_i32 = arith.constant 0 : i32
    %c0_i32_0 = arith.constant 0 : i32
    %c0_i32_1 = arith.constant 0 : i32
    return %c0_i32, %c0_i32_0 : i32, i32
  }
  func.func @transform_4(%arg0: i32, %arg1: i32) -> (i32, i32, i32) {
    %c0_i32 = arith.constant 0 : i32
    %c0_i32_0 = arith.constant 0 : i32
    return %arg0, %arg1, %c0_i32 : i32, i32, i32
  }
}

module attributes {stable_mosaic.version = 11 : i64} {
  func.func @_sine_pos_kernel(%arg0: i32, %arg1: memref<1x4x4xf32, #tpu.memory_space<vmem>>, %arg2: memref<4x4xf32, #tpu.memory_space<vmem>>, %arg3: memref<4x4xf32, #tpu.memory_space<vmem>>, %arg4: memref<4x32xf32, #tpu.memory_space<vmem>>, %arg5: memref<1x32xf32, #tpu.memory_space<vmem>>, %arg6: memref<1x4x32xf32, #tpu.memory_space<vmem>>, %arg7: memref<1x4x32xf32, #tpu.memory_space<vmem>>) attributes {dimension_semantics = [#tpu.dimension_semantics<parallel>], iteration_bounds = array<i64: 2>, scalar_prefetch = 0 : i64, scratch_operands = 0 : i64, tpu.core_type = #tpu.core_type<tc>, window_params = [{transform_indices = @transform_0, window_bounds = array<i64: 1, 4, 4>}, {pipeline_mode = #tpu.pipeline_mode<synchronous>, transform_indices = @transform_1, window_bounds = array<i64: 4, 4>}, {pipeline_mode = #tpu.pipeline_mode<synchronous>, transform_indices = @transform_2, window_bounds = array<i64: 4, 4>}, {pipeline_mode = #tpu.pipeline_mode<synchronous>, transform_indices = @transform_3, window_bounds = array<i64: 4, 32>}, {pipeline_mode = #tpu.pipeline_mode<synchronous>, transform_indices = @transform_4, window_bounds = array<i64: 1, 32>}, {transform_indices = @transform_5, window_bounds = array<i64: 1, 4, 32>}, {transform_indices = @transform_6, window_bounds = array<i64: 1, 4, 32>}]} {
    %c0 = arith.constant 0 : index
    %c0_0 = arith.constant 0 : index
    %c0_1 = arith.constant 0 : index
    %0 = vector.load %arg1[%c0, %c0_0, %c0_1] : memref<1x4x4xf32, #tpu.memory_space<vmem>>, vector<1x4x4xf32>
    %1 = vector.shape_cast %0 : vector<1x4x4xf32> to vector<4x4xf32>
    %c0_2 = arith.constant 0 : index
    %c0_3 = arith.constant 0 : index
    %2 = vector.load %arg2[%c0_2, %c0_3] : memref<4x4xf32, #tpu.memory_space<vmem>>, vector<4x4xf32>
    %cst = arith.constant dense<0.000000e+00> : vector<4x4xf32>
    %3 = tpu.matmul %2, %1, %cst {dimension_numbers = #tpu.dot_dimension_numbers<[1], [0], [0], [1], [0, 0, 1, 1], [], []>} : vector<4x4xf32>, vector<4x4xf32>, vector<4x4xf32> -> vector<4x4xf32>
    %c0_4 = arith.constant 0 : index
    %c0_5 = arith.constant 0 : index
    %4 = vector.load %arg3[%c0_4, %c0_5] : memref<4x4xf32, #tpu.memory_space<vmem>>, vector<4x4xf32>
    %cst_6 = arith.constant dense<0.000000e+00> : vector<4x4xf32>
    %5 = tpu.matmul %1, %4, %cst_6 {dimension_numbers = #tpu.dot_dimension_numbers<[1], [0], [0], [1], [0, 0, 1, 1], [], []>} : vector<4x4xf32>, vector<4x4xf32>, vector<4x4xf32> -> vector<4x4xf32>
    %6 = vector.extract_strided_slice %3 {offsets = [3, 0], sizes = [1, 4], strides = [1, 1]} : vector<4x4xf32> to vector<1x4xf32>
    %cst_7 = arith.constant 9.99999997E-7 : f32
    %7 = vector.broadcast %cst_7 : f32 to vector<1x4xf32>
    %8 = arith.addf %6, %7 : vector<1x4xf32>
    %cst_8 = arith.constant 6.28318548 : f32
    %9 = vector.broadcast %cst_8 : f32 to vector<1x4xf32>
    %10 = arith.divf %9, %8 : vector<1x4xf32>
    %11 = vector.broadcast %10 : vector<1x4xf32> to vector<4x4xf32>
    %12 = arith.mulf %3, %11 : vector<4x4xf32>
    %13 = vector.extract_strided_slice %5 {offsets = [0, 3], sizes = [4, 1], strides = [1, 1]} : vector<4x4xf32> to vector<4x1xf32>
    %cst_9 = arith.constant 9.99999997E-7 : f32
    %14 = vector.broadcast %cst_9 : f32 to vector<4x1xf32>
    %15 = arith.addf %13, %14 : vector<4x1xf32>
    %cst_10 = arith.constant 6.28318548 : f32
    %16 = vector.broadcast %cst_10 : f32 to vector<4x1xf32>
    %17 = arith.divf %16, %15 : vector<4x1xf32>
    %18 = vector.broadcast %17 : vector<4x1xf32> to vector<4x4xf32>
    %19 = arith.mulf %5, %18 : vector<4x4xf32>
    %c0_11 = arith.constant 0 : index
    %c0_12 = arith.constant 0 : index
    %20 = vector.load %arg4[%c0_11, %c0_12] : memref<4x32xf32, #tpu.memory_space<vmem>>, vector<4x32xf32>
    %cst_13 = arith.constant dense<0.000000e+00> : vector<4x32xf32>
    %21 = tpu.matmul %12, %20, %cst_13 {dimension_numbers = #tpu.dot_dimension_numbers<[1], [0], [0], [1], [0, 0, 1, 1], [], []>} : vector<4x4xf32>, vector<4x32xf32>, vector<4x32xf32> -> vector<4x32xf32>
    %c0_14 = arith.constant 0 : index
    %c0_15 = arith.constant 0 : index
    %22 = vector.load %arg4[%c0_14, %c0_15] : memref<4x32xf32, #tpu.memory_space<vmem>>, vector<4x32xf32>
    %cst_16 = arith.constant dense<0.000000e+00> : vector<4x32xf32>
    %23 = tpu.matmul %19, %22, %cst_16 {dimension_numbers = #tpu.dot_dimension_numbers<[1], [0], [0], [1], [0, 0, 1, 1], [], []>} : vector<4x4xf32>, vector<4x32xf32>, vector<4x32xf32> -> vector<4x32xf32>
    %c0_17 = arith.constant 0 : index
    %c0_18 = arith.constant 0 : index
    %24 = vector.load %arg5[%c0_17, %c0_18] : memref<1x32xf32, #tpu.memory_space<vmem>>, vector<1x32xf32>
    %25 = vector.broadcast %24 : vector<1x32xf32> to vector<4x32xf32>
    %26 = arith.addf %21, %25 : vector<4x32xf32>
    %27 = math.sin %26 : vector<4x32xf32>
    %c0_19 = arith.constant 0 : index
    %c0_20 = arith.constant 0 : index
    %c0_21 = arith.constant 0 : index
    %28 = vector.load %arg6[%c0_19, %c0_20, %c0_21] : memref<1x4x32xf32, #tpu.memory_space<vmem>>, vector<1x4x32xf32>
    %29 = vector.shape_cast %28 : vector<1x4x32xf32> to vector<4x32xf32>
    %30 = vector.shape_cast %27 : vector<4x32xf32> to vector<1x4x32xf32>
    tpu.vector_store %arg6[%c0_19, %c0_20, %c0_21], %30 {strides = array<i32>} : memref<1x4x32xf32, #tpu.memory_space<vmem>>, vector<1x4x32xf32>,
    %31 = vector.broadcast %24 : vector<1x32xf32> to vector<4x32xf32>
    %32 = arith.addf %23, %31 : vector<4x32xf32>
    %33 = math.sin %32 : vector<4x32xf32>
    %c0_22 = arith.constant 0 : index
    %c0_23 = arith.constant 0 : index
    %c0_24 = arith.constant 0 : index
    %34 = vector.load %arg7[%c0_22, %c0_23, %c0_24] : memref<1x4x32xf32, #tpu.memory_space<vmem>>, vector<1x4x32xf32>
    %35 = vector.shape_cast %34 : vector<1x4x32xf32> to vector<4x32xf32>
    %36 = vector.shape_cast %33 : vector<4x32xf32> to vector<1x4x32xf32>
    tpu.vector_store %arg7[%c0_22, %c0_23, %c0_24], %36 {strides = array<i32>} : memref<1x4x32xf32, #tpu.memory_space<vmem>>, vector<1x4x32xf32>,
    return
  }
  func.func @transform_0(%arg0: i32) -> (i32, i32, i32) {
    %c0_i32 = arith.constant 0 : i32
    %c0_i32_0 = arith.constant 0 : i32
    %c0_i32_1 = arith.constant 0 : i32
    return %arg0, %c0_i32, %c0_i32_0 : i32, i32, i32
  }
  func.func @transform_1(%arg0: i32) -> (i32, i32) {
    %c0_i32 = arith.constant 0 : i32
    %c0_i32_0 = arith.constant 0 : i32
    %c0_i32_1 = arith.constant 0 : i32
    return %c0_i32, %c0_i32_0 : i32, i32
  }
  func.func @transform_2(%arg0: i32) -> (i32, i32) {
    %c0_i32 = arith.constant 0 : i32
    %c0_i32_0 = arith.constant 0 : i32
    %c0_i32_1 = arith.constant 0 : i32
    return %c0_i32, %c0_i32_0 : i32, i32
  }
  func.func @transform_3(%arg0: i32) -> (i32, i32) {
    %c0_i32 = arith.constant 0 : i32
    %c0_i32_0 = arith.constant 0 : i32
    %c0_i32_1 = arith.constant 0 : i32
    return %c0_i32, %c0_i32_0 : i32, i32
  }
  func.func @transform_4(%arg0: i32) -> (i32, i32) {
    %c0_i32 = arith.constant 0 : i32
    %c0_i32_0 = arith.constant 0 : i32
    %c0_i32_1 = arith.constant 0 : i32
    return %c0_i32, %c0_i32_0 : i32, i32
  }
  func.func @transform_5(%arg0: i32) -> (i32, i32, i32) {
    %c0_i32 = arith.constant 0 : i32
    %c0_i32_0 = arith.constant 0 : i32
    %c0_i32_1 = arith.constant 0 : i32
    return %arg0, %c0_i32, %c0_i32_0 : i32, i32, i32
  }
  func.func @transform_6(%arg0: i32) -> (i32, i32, i32) {
    %c0_i32 = arith.constant 0 : i32
    %c0_i32_0 = arith.constant 0 : i32
    %c0_i32_1 = arith.constant 0 : i32
    return %arg0, %c0_i32, %c0_i32_0 : i32, i32, i32
  }
}

</mosaic_0001>

<llo_original>
// kernel: tile.9
$region0: #{tile.9}
  %s0 = inlined_call_operand.vmem [shape: f32[4,8], index: 0, kind: input, shape index: {}]
  %s1 = inlined_call_operand.vmem [shape: f32[1,32], index: 1, kind: output, shape index: {}]
  $region1: #{tile.9} parent=0
    #allocation0 [shape = 'u8[4096]{0}', space=vmem, size = 0x1000, scoped, tag = 'scoped mem for output reshape']
    #allocation1 [shape = 'u8[4096]{0}', space=vmem, size = 0x1000, scoped, tag = 'scoped mem for input reshape']
    %s3 = ssub.s32 16, 1
    %v4 = vld [vmem:[%s0] sm:%s3]
    %5 = vst [vmem:[#allocation1] sm:%s3] %v4
    %v6 = vld [vmem:[#allocation1] sm:$0x1]
    %vm7 = vcmask 64512
    %8 = vst.msk [vmem:[#allocation0] sm:$0x1] %vm7, %v6
    %s9 = scalar_lea.vmem [#allocation1], 3
    %v10 = vld [vmem:[%s9] sm:$0x1]
    %11 = vrot.lane.b32.xlu0 %v10, 24
    %v12 = vpop.permute.xlu0 %11
    %vm13 = vcmask 261312
    %14 = vst.msk [vmem:[#allocation0] sm:$0x1] %vm13, %v12
    %s15 = scalar_lea.vmem [#allocation1], 2
    %v16 = vld [vmem:[%s15] sm:$0x1]
    %17 = vrot.lane.b32.xlu0 %v16, 16
    %v18 = vpop.permute.xlu0 %17
    %vm19 = vcmask 195712
    %20 = vst.msk [vmem:[#allocation0] sm:$0x1] %vm19, %v18
    %s21 = scalar_lea.vmem [#allocation1], 1
    %v22 = vld [vmem:[%s21] sm:$0x1]
    %23 = vrot.lane.b32.xlu0 %v22, 8
    %v24 = vpop.permute.xlu0 %23
    %vm25 = vcmask 130112
    %26 = vst.msk [vmem:[#allocation0] sm:$0x1] %vm25, %v24
    %s28 = ssub.s32 2, 1
    %v29 = vld [vmem:[#allocation0] sm:%s28]
    %s31 = ssub.s32 2, 1
    %32 = vst [vmem:[%s1] sm:%s31] %v29

// kernel: grounded_audio_conv_model.4
$region0: #{grounded_audio_conv_model.4}
  #allocation0 [shape = 'u32[]', space=smem, size = 0x4, offset = 0x4, fixed_abs, tag = 'smem constant byte address 0x4 - core index']
  #allocation1 [shape = 'u32[72,128]{1,0:T(1,128)}', space=vmem, size = 0x9000, scoped, tag = 'internal scratch']
  %s0 = inlined_call_operand.vmem [shape: bf16[8,5,5,8], index: 0, kind: input, shape index: {}, may-alias: {0,1}]
  %s1 = inlined_call_operand.vmem [shape: bf16[8,5,5,8], index: 1, kind: input, shape index: {}, may-alias: {0,1}]
  %s2 = inlined_call_operand.vmem [shape: bf16[9,8,16], index: 2, kind: input, shape index: {}]
  %s3 = inlined_call_operand.vmem [shape: f32[1,16], index: 3, kind: input, shape index: {}]
  %s4 = inlined_call_operand.vmem [shape: bf16[2,16,16], index: 4, kind: output, shape index: {}]
  %s5 = sld [smem:[#allocation0]]
  $region152: #{grounded_audio_conv_model.4} parent=0
    _
  %s7 = ssub.s32 1, %s5
  %s8 = scalar_select 0, %s7, %s5
  $region1: #{grounded_audio_conv_model.4} parent=0
    #allocation2 [shape = 'u8[65536]{0}', space=vmem, size = 0x10000, scoped, tag = 'input window, operand 0']
    #allocation3 [shape = 'u8[16384]{0}', space=vmem, size = 0x4000, scoped, tag = 'input window, operand 1']
    loop: start=0, step=1, limit=4
    $region2: #{grounded_audio_conv_model.4} parent=1 // loop_pre_header
      _
    $region3: #{grounded_audio_conv_model.4} parent=1 // loop_header
      %s10 = sphi 0, %s14
      %p11 = scmp.ge.s32.totalorder %s10, 4
      %s17 = sphi 0, %s29
      %s18 = sphi 0, %s25
      %s19 = sphi 0, %s17
      %s20 = sphi 0, %s18
      %s21 = sphi 0, %s19
      %s22 = sphi 0, %s20
      %s34 = sphi 0, %s36
      %s37 = sphi 0, %s34
      %s38 = sphi 0, %s37
      %s54 = sphi 0, %s38
      %s66 = sphi 0, %s68
      %s69 = sphi 0, %s66
      %s70 = sphi 0, %s69
      %s86 = sphi 0, %s70
      %s90 = sphi 0, %s90
      %s92 = sphi 0, %s90
      %s93 = sphi 0, %s92
      %s107 = sphi 0, %s93
      %s111 = sphi 0, %s111
      %s113 = sphi 0, %s111
      %s114 = sphi 0, %s113
      %s128 = sphi 0, %s114
      %s136 = sphi 0, %s138
      %s139 = sphi 0, %s136
      %s140 = sphi 0, %s139
      %s156 = sphi 0, %s140
    $region4: #{grounded_audio_conv_model.4} parent=1 // loop_header_branch
      %13 = sbr.rel (%p11) target = $region8
    $region5: #{grounded_audio_conv_model.4} parent=1 // loop_body
      %s15 = ssub.s32 %s10, 1
      %s16 = ssub.s32 %s10, 2
      %s23 = sadd.s32 1, %s18
      %p24 = scmp.ge.s32.totalorder %s23, 1
      %s25 = scalar_select %p24, 0, %s23
      %s26 = sadd.s32 1, %s17
      %s27 = scalar_select %p24, %s26, %s17
      %p28 = scmp.ge.s32.totalorder %s27, 2
      %s29 = scalar_select %p28, 0, %s27
      %s30 = ssub.s32 %s17, %s29
      %s31 = ssub.s32 %s18, %s25
      %s32 = sor.u32 %s30, %s31
      %p33 = scmp.eq.s32.totalorder %s32, 0
      %s35 = sadd.s32 %s34, 1
      %s36 = scalar_select %p33, %s34, %s35
      %p39 = pneg %p33
      %p40 = scmp.eq.s32.totalorder %s10, 1
      %p41 = por %p39, %p40
      %p42 = scmp.ne.s32.totalorder %s34, %s37
      %p43 = scmp.eq.s32.totalorder %s10, 0
      %p44 = por %p42, %p43
      %p45 = scmp.ne.s32.totalorder %s34, %s37
      %p46 = scmp.eq.s32.totalorder %s15, 1
      %p47 = por %p45, %p46
      %p48 = scmp.ne.s32.totalorder %s37, %s38
      %p49 = scmp.eq.s32.totalorder %s15, 0
      %p50 = por %p48, %p49
      %p51 = scmp.ne.s32.totalorder %s37, %s38
      %p52 = scmp.eq.s32.totalorder %s16, 1
      %p53 = por %p51, %p52
      %p55 = scmp.ne.s32.totalorder %s38, %s54
      %p56 = scmp.eq.s32.totalorder %s16, 0
      %p57 = por %p55, %p56
      %s58 = sadd.s32 %s18, 1
      %s59 = smul.u32 %s58, 4
      %s60 = sadd.s32 %s25, 1
      %s61 = smul.u32 %s60, 4
      %s62 = ssub.s32 %s17, %s29
      %s63 = ssub.s32 %s59, %s61
      %s64 = sor.u32 %s62, %s63
      %p65 = scmp.eq.s32.totalorder %s64, 0
      %s67 = sadd.s32 %s66, 1
      %s68 = scalar_select %p65, %s66, %s67
      %p71 = pneg %p65
      %p72 = scmp.eq.s32.totalorder %s10, 1
      %p73 = por %p71, %p72
      %p74 = scmp.ne.s32.totalorder %s66, %s69
      %p75 = scmp.eq.s32.totalorder %s10, 0
      %p76 = por %p74, %p75
      %p77 = scmp.ne.s32.totalorder %s66, %s69
      %p78 = scmp.eq.s32.totalorder %s15, 1
      %p79 = por %p77, %p78
      %p80 = scmp.ne.s32.totalorder %s69, %s70
      %p81 = scmp.eq.s32.totalorder %s15, 0
      %p82 = por %p80, %p81
      %p83 = scmp.ne.s32.totalorder %s69, %s70
      %p84 = scmp.eq.s32.totalorder %s16, 1
      %p85 = por %p83, %p84
      %p87 = scmp.ne.s32.totalorder %s70, %s86
      %p88 = scmp.eq.s32.totalorder %s16, 0
      %p89 = por %p87, %p88
      %s91 = sadd.s32 %s90, 1
      %p94 = scmp.eq.s32.totalorder %s10, 1
      %p95 = scmp.ne.s32.totalorder %s90, %s92
      %p96 = scmp.eq.s32.totalorder %s10, 0
      %p97 = por %p95, %p96
      %p98 = scmp.ne.s32.totalorder %s90, %s92
      %p99 = scmp.eq.s32.totalorder %s15, 1
      %p100 = por %p98, %p99
      %p101 = scmp.ne.s32.totalorder %s92, %s93
      %p102 = scmp.eq.s32.totalorder %s15, 0
      %p103 = por %p101, %p102
      %p104 = scmp.ne.s32.totalorder %s92, %s93
      %p105 = scmp.eq.s32.totalorder %s16, 1
      %p106 = por %p104, %p105
      %p108 = scmp.ne.s32.totalorder %s93, %s107
      %p109 = scmp.eq.s32.totalorder %s16, 0
      %p110 = por %p108, %p109
      %s112 = sadd.s32 %s111, 1
      %p115 = scmp.eq.s32.totalorder %s10, 1
      %p116 = scmp.ne.s32.totalorder %s111, %s113
      %p117 = scmp.eq.s32.totalorder %s10, 0
      %p118 = por %p116, %p117
      %p119 = scmp.ne.s32.totalorder %s111, %s113
      %p120 = scmp.eq.s32.totalorder %s15, 1
      %p121 = por %p119, %p120
      %p122 = scmp.ne.s32.totalorder %s113, %s114
      %p123 = scmp.eq.s32.totalorder %s15, 0
      %p124 = por %p122, %p123
      %p125 = scmp.ne.s32.totalorder %s113, %s114
      %p126 = scmp.eq.s32.totalorder %s16, 1
      %p127 = por %p125, %p126
      %p129 = scmp.ne.s32.totalorder %s114, %s128
      %p130 = scmp.eq.s32.totalorder %s16, 0
      %p131 = por %p129, %p130
      %s132 = ssub.s32 %s17, %s29
      %s133 = ssub.s32 %s18, %s25
      %s134 = sor.u32 %s132, %s133
      %p135 = scmp.eq.s32.totalorder %s134, 0
      %s137 = sadd.s32 %s136, 1
      %s138 = scalar_select %p135, %s136, %s137
      %p141 = pneg %p135
      %p142 = scmp.eq.s32.totalorder %s10, 1
      %p143 = por %p141, %p142
      %p144 = scmp.ne.s32.totalorder %s136, %s139
      %p145 = scmp.eq.s32.totalorder %s10, 0
      %p146 = por %p144, %p145
      %p147 = scmp.ne.s32.totalorder %s136, %s139
      %p148 = scmp.eq.s32.totalorder %s15, 1
      %p149 = por %p147, %p148
      %p150 = scmp.ne.s32.totalorder %s139, %s140
      %p151 = scmp.eq.s32.totalorder %s15, 0
      %p152 = por %p150, %p151
      %p153 = scmp.ne.s32.totalorder %s139, %s140
      %p154 = scmp.eq.s32.totalorder %s16, 1
      %p155 = por %p153, %p154
      %p157 = scmp.ne.s32.totalorder %s140, %s156
      %p158 = scmp.eq.s32.totalorder %s16, 0
      %p159 = por %p157, %p158
      %p160 = scmp.le.s32.totalorder 1, %s10
      %p161 = scmp.lt.s32.totalorder %s10, 3
      %p162 = pnand %p160, %p161
      %p163 = pneg %p162
      // Predicated region
      $region9: #{grounded_audio_conv_model.4} parent=5 // pred_check
        _
      $region10: #{grounded_audio_conv_model.4} parent=5 // pred_check_branch
        %165 = sbr.rel (%p162) target = $region12
      $region11: #{grounded_audio_conv_model.4} parent=5 // pred_region
        %s166 = ssub.s32 %s10, 1
        // Predicated region
        $region13: #{grounded_audio_conv_model.4} parent=11 // pred_check
          %p167 = pneg %p103
        $region14: #{grounded_audio_conv_model.4} parent=11 // pred_check_branch
          %169 = sbr.rel (%p167) target = $region16
        $region15: #{grounded_audio_conv_model.4} parent=11 // pred_region
          _
        $region16: #{grounded_audio_conv_model.4} parent=11 // pred_fallthru
          _
        // Predicated region
        $region17: #{grounded_audio_conv_model.4} parent=11 // pred_check
          %p170 = pneg %p124
        $region18: #{grounded_audio_conv_model.4} parent=11 // pred_check_branch
          %172 = sbr.rel (%p170) target = $region20
        $region19: #{grounded_audio_conv_model.4} parent=11 // pred_region
          _
        $region20: #{grounded_audio_conv_model.4} parent=11 // pred_fallthru
          _
      $region12: #{grounded_audio_conv_model.4} parent=5 // pred_fallthru
        _
      %p173 = scmp.lt.s32.totalorder %s10, 2
      // Predicated region
      $region21: #{grounded_audio_conv_model.4} parent=5 // pred_check
        %p174 = pneg %p173
      $region22: #{grounded_audio_conv_model.4} parent=5 // pred_check_branch
        %176 = sbr.rel (%p174) target = $region24
      $region23: #{grounded_audio_conv_model.4} parent=5 // pred_region
        // Predicated region
        $region25: #{grounded_audio_conv_model.4} parent=23 // pred_check
          %p177 = pneg %p44
        $region26: #{grounded_audio_conv_model.4} parent=23 // pred_check_branch
          %179 = sbr.rel (%p177) target = $region28
        $region27: #{grounded_audio_conv_model.4} parent=23 // pred_region
          %s180 = sand.u32 %s34, 1
          %s181 = sand.u32 %s34, 1
          %s182 = smul.addr %s181, 64
          %s183 = scalar_lea.vmem [#allocation2], %s182
          %s184 = smul.u32 4, %s17
          %s185 = smul.u32 4, %s18
          %s186 = ssub.s32 5, %s185
          %p187 = scmp.lt.s32.totalorder %s186, 4
          %s188 = scalar_select %p187, %s186, 4
          %s189 = smul.u32 16, %s188
          %p190 = scmp.ne.s32.totalorder 0, %s189
          %s191 = smul.addr %s184, 5
          %s192 = sadd.s32 %s185, %s191
          %s193 = smul.addr %s192, 4
          %s194 = scalar_lea.vmem %s0, %s193
          // Predicated region
          $region29: #{grounded_audio_conv_model.4} parent=27 // pred_check
            %p195 = pneg %p190
          $region30: #{grounded_audio_conv_model.4} parent=27 // pred_check_branch
            %197 = sbr.rel (%p195) target = $region32
          $region31: #{grounded_audio_conv_model.4} parent=27 // pred_region
            // Predicated region
            $region33: #{grounded_audio_conv_model.4} parent=31 // pred_check
              _
            $region34: #{grounded_audio_conv_model.4} parent=31 // pred_check_branch
              %199 = sbr.rel target = $region36
            $region35: #{grounded_audio_conv_model.4} parent=31 // pred_region
              // Predicated region
              $region55: #{grounded_audio_conv_model.4} parent=35 // pred_check
                _
              $region56: #{grounded_audio_conv_model.4} parent=35 // pred_check_branch
                %285 = sbr.rel (0) target = $region58
              $region57: #{grounded_audio_conv_model.4} parent=35 // pred_region
                %s286 = sshrl.u32 %s188, 2
                // While loop
                $region59: #{grounded_audio_conv_model.4} parent=57 // loop_pre_header
                  _
                $region60: #{grounded_audio_conv_model.4} parent=57 // loop_header
                  %s288 = sphi 0, %s290
                  %p289 = scmp.ge.s32.totalorder %s288, %s286
                  %s293 = sphi 0, %s298
                  %s294 = sphi %s194, %s301
                  %s295 = sphi %s183, %s302
                $region61: #{grounded_audio_conv_model.4} parent=57 // loop_header_branch
                  %292 = sbr.rel (%p289) target = $region65
                $region62: #{grounded_audio_conv_model.4} parent=57 // loop_body
                  %s296 = sadd.s32 1, %s293
                  %p297 = scmp.ge.s32.totalorder %s296, %s286
                  %s298 = scalar_select %p297, 0, %s296
                  %s299 = smul.u32 %s298, 16
                  %s300 = smul.u32 %s298, 16
                  %s301 = scalar_lea.vmem %s194, %s299
                  %s302 = scalar_lea.vmem %s183, %s300 [#allocation2]
                $region63: #{grounded_audio_conv_model.4} parent=57 // loop_footer
                  %s290 = sadd.s32 %s288, 1
                $region64: #{grounded_audio_conv_model.4} parent=57 // loop_footer_branch
                  %287 = sbr.rel target = $region60
                $region65: #{grounded_audio_conv_model.4} parent=57 // loop_exit
                  _
                %s303 = sshrl.u32 %s188, 2
                %s304 = sand.u32 %s188, 3
                %s305 = smul.u32 %s303, 4
                %s306 = smul.u32 4, %s305
                %s307 = scalar_lea.vmem %s194, %s306
                %s308 = smul.u32 4, %s305
                %s309 = scalar_lea.vmem %s183, %s308 [#allocation2]
                // While loop
                $region66: #{grounded_audio_conv_model.4} parent=57 // loop_pre_header
                  _
                $region67: #{grounded_audio_conv_model.4} parent=57 // loop_header
                  %s311 = sphi 0, %s313
                  %p312 = scmp.ge.s32.totalorder %s311, %s304
                  %s316 = sphi 0, %s321
                  %s317 = sphi %s307, %s324
                  %s318 = sphi %s309, %s325
                $region68: #{grounded_audio_conv_model.4} parent=57 // loop_header_branch
                  %315 = sbr.rel (%p312) target = $region72
                $region69: #{grounded_audio_conv_model.4} parent=57 // loop_body
                  %s319 = sadd.s32 1, %s316
                  %p320 = scmp.ge.s32.totalorder %s319, %s304
                  %s321 = scalar_select %p320, 0, %s319
                  %s322 = smul.u32 %s321, 4
                  %s323 = smul.u32 %s321, 4
                  %s324 = scalar_lea.vmem %s307, %s322
                  %s325 = scalar_lea.vmem %s309, %s323 [#allocation2]
                $region70: #{grounded_audio_conv_model.4} parent=57 // loop_footer
                  %s313 = sadd.s32 %s311, 1
                $region71: #{grounded_audio_conv_model.4} parent=57 // loop_footer_branch
                  %310 = sbr.rel target = $region67
                $region72: #{grounded_audio_conv_model.4} parent=57 // loop_exit
                  _
                %s327 = ssub.s32 16, 1
                %s328 = sshrl.u32 %s188, 2
                // While loop
                $region73: #{grounded_audio_conv_model.4} parent=57 // loop_pre_header
                  _
                $region74: #{grounded_audio_conv_model.4} parent=57 // loop_header
                  %s330 = sphi 0, %s332
                  %p331 = scmp.ge.s32.totalorder %s330, %s328
                  %s335 = sphi 0, %s372
                  %s336 = sphi %s194, %s375
                  %s337 = sphi %s183, %s376
                $region75: #{grounded_audio_conv_model.4} parent=57 // loop_header_branch
                  %334 = sbr.rel (%p331) target = $region79
                $region76: #{grounded_audio_conv_model.4} parent=57 // loop_body
                  %v338 = vld [vmem:[%s336] sm:%s327]
                  %339 = vst [vmem:[%s337] sm:%s327] %v338
                  %v340 = vld [vmem:[%s336 + $0x4] sm:%s327]
                  %341 = vst [vmem:[%s337 + $0x4] sm:%s327] %v340
                  %v342 = vld [vmem:[%s336 + $0x8] sm:%s327]
                  %343 = vst [vmem:[%s337 + $0x8] sm:%s327] %v342
                  %v344 = vld [vmem:[%s336 + $0xc] sm:%s327]
                  %345 = vst [vmem:[%s337 + $0xc] sm:%s327] %v344
                  %v346 = vld [vmem:[%s336 + $0x14] sm:%s327]
                  %347 = vst [vmem:[%s337 + $0x10] sm:%s327] %v346
                  %v348 = vld [vmem:[%s336 + $0x18] sm:%s327]
                  %349 = vst [vmem:[%s337 + $0x14] sm:%s327] %v348
                  %v350 = vld [vmem:[%s336 + $0x1c] sm:%s327]
                  %351 = vst [vmem:[%s337 + $0x18] sm:%s327] %v350
                  %v352 = vld [vmem:[%s336 + $0x20] sm:%s327]
                  %353 = vst [vmem:[%s337 + $0x1c] sm:%s327] %v352
                  %v354 = vld [vmem:[%s336 + $0x28] sm:%s327]
                  %355 = vst [vmem:[%s337 + $0x20] sm:%s327] %v354
                  %v356 = vld [vmem:[%s336 + $0x2c] sm:%s327]
                  %357 = vst [vmem:[%s337 + $0x24] sm:%s327] %v356
                  %v358 = vld [vmem:[%s336 + $0x30] sm:%s327]
                  %359 = vst [vmem:[%s337 + $0x28] sm:%s327] %v358
                  %v360 = vld [vmem:[%s336 + $0x34] sm:%s327]
                  %361 = vst [vmem:[%s337 + $0x2c] sm:%s327] %v360
                  %v362 = vld [vmem:[%s336 + $0x3c] sm:%s327]
                  %363 = vst [vmem:[%s337 + $0x30] sm:%s327] %v362
                  %v364 = vld [vmem:[%s336 + $0x40] sm:%s327]
                  %365 = vst [vmem:[%s337 + $0x34] sm:%s327] %v364
                  %v366 = vld [vmem:[%s336 + $0x44] sm:%s327]
                  %367 = vst [vmem:[%s337 + $0x38] sm:%s327] %v366
                  %v368 = vld [vmem:[%s336 + $0x48] sm:%s327]
                  %369 = vst [vmem:[%s337 + $0x3c] sm:%s327] %v368
                  %s370 = sadd.s32 1, %s335
                  %p371 = scmp.ge.s32.totalorder %s370, %s328
                  %s372 = scalar_select %p371, 0, %s370
                  %s373 = smul.u32 %s372, 16
                  %s374 = smul.u32 %s372, 16
                  %s375 = scalar_lea.vmem %s194, %s373
                  %s376 = scalar_lea.vmem %s183, %s374 [#allocation2]
                $region77: #{grounded_audio_conv_model.4} parent=57 // loop_footer
                  %s332 = sadd.s32 %s330, 1
                $region78: #{grounded_audio_conv_model.4} parent=57 // loop_footer_branch
                  %329 = sbr.rel target = $region74
                $region79: #{grounded_audio_conv_model.4} parent=57 // loop_exit
                  _
                %s377 = sshrl.u32 %s188, 2
                %s378 = sand.u32 %s188, 3
                %s379 = smul.u32 %s377, 4
                %s380 = smul.u32 4, %s379
                %s381 = scalar_lea.vmem %s194, %s380
                %s382 = smul.u32 4, %s379
                %s383 = scalar_lea.vmem %s183, %s382 [#allocation2]
                // While loop
                $region80: #{grounded_audio_conv_model.4} parent=57 // loop_pre_header
                  _
                $region81: #{grounded_audio_conv_model.4} parent=57 // loop_header
                  %s385 = sphi 0, %s387
                  %p386 = scmp.ge.s32.totalorder %s385, %s378
                  %s390 = sphi 0, %s403
                  %s391 = sphi %s381, %s406
                  %s392 = sphi %s383, %s407
                $region82: #{grounded_audio_conv_model.4} parent=57 // loop_header_branch
                  %389 = sbr.rel (%p386) target = $region86
                $region83: #{grounded_audio_conv_model.4} parent=57 // loop_body
                  %v393 = vld [vmem:[%s391] sm:%s327]
                  %394 = vst [vmem:[%s392] sm:%s327] %v393
                  %v395 = vld [vmem:[%s391 + $0x14] sm:%s327]
                  %396 = vst [vmem:[%s392 + $0x10] sm:%s327] %v395
                  %v397 = vld [vmem:[%s391 + $0x28] sm:%s327]
                  %398 = vst [vmem:[%s392 + $0x20] sm:%s327] %v397
                  %v399 = vld [vmem:[%s391 + $0x3c] sm:%s327]
                  %400 = vst [vmem:[%s392 + $0x30] sm:%s327] %v399
                  %s401 = sadd.s32 1, %s390
                  %p402 = scmp.ge.s32.totalorder %s401, %s378
                  %s403 = scalar_select %p402, 0, %s401
                  %s404 = smul.u32 %s403, 4
                  %s405 = smul.u32 %s403, 4
                  %s406 = scalar_lea.vmem %s381, %s404
                  %s407 = scalar_lea.vmem %s383, %s405 [#allocation2]
                $region84: #{grounded_audio_conv_model.4} parent=57 // loop_footer
                  %s387 = sadd.s32 %s385, 1
                $region85: #{grounded_audio_conv_model.4} parent=57 // loop_footer_branch
                  %384 = sbr.rel target = $region81
                $region86: #{grounded_audio_conv_model.4} parent=57 // loop_exit
                  _
              $region58: #{grounded_audio_conv_model.4} parent=35 // pred_fallthru
                _
            $region36: #{grounded_audio_conv_model.4} parent=31 // pred_fallthru
              _
            // Predicated region
            $region37: #{grounded_audio_conv_model.4} parent=31 // pred_check
              _
            $region38: #{grounded_audio_conv_model.4} parent=31 // pred_check_branch
              %201 = sbr.rel (0) target = $region40
            $region39: #{grounded_audio_conv_model.4} parent=31 // pred_region
              %s203 = ssub.s32 16, 1
              %s204 = sshrl.u32 %s188, 2
              // While loop
              $region41: #{grounded_audio_conv_model.4} parent=39 // loop_pre_header
                _
              $region42: #{grounded_audio_conv_model.4} parent=39 // loop_header
                %s206 = sphi 0, %s208
                %p207 = scmp.ge.s32.totalorder %s206, %s204
                %s211 = sphi 0, %s248
                %s212 = sphi %s194, %s251
                %s213 = sphi %s183, %s252
              $region43: #{grounded_audio_conv_model.4} parent=39 // loop_header_branch
                %210 = sbr.rel (%p207) target = $region47
              $region44: #{grounded_audio_conv_model.4} parent=39 // loop_body
                %v214 = vld [vmem:[%s212] sm:%s203]
                %215 = vst [vmem:[%s213] sm:%s203] %v214
                %v216 = vld [vmem:[%s212 + $0x4] sm:%s203]
                %217 = vst [vmem:[%s213 + $0x4] sm:%s203] %v216
                %v218 = vld [vmem:[%s212 + $0x8] sm:%s203]
                %219 = vst [vmem:[%s213 + $0x8] sm:%s203] %v218
                %v220 = vld [vmem:[%s212 + $0xc] sm:%s203]
                %221 = vst [vmem:[%s213 + $0xc] sm:%s203] %v220
                %v222 = vld [vmem:[%s212 + $0x14] sm:%s203]
                %223 = vst [vmem:[%s213 + $0x10] sm:%s203] %v222
                %v224 = vld [vmem:[%s212 + $0x18] sm:%s203]
                %225 = vst [vmem:[%s213 + $0x14] sm:%s203] %v224
                %v226 = vld [vmem:[%s212 + $0x1c] sm:%s203]
                %227 = vst [vmem:[%s213 + $0x18] sm:%s203] %v226
                %v228 = vld [vmem:[%s212 + $0x20] sm:%s203]
                %229 = vst [vmem:[%s213 + $0x1c] sm:%s203] %v228
                %v230 = vld [vmem:[%s212 + $0x28] sm:%s203]
                %231 = vst [vmem:[%s213 + $0x20] sm:%s203] %v230
                %v232 = vld [vmem:[%s212 + $0x2c] sm:%s203]
                %233 = vst [vmem:[%s213 + $0x24] sm:%s203] %v232
                %v234 = vld [vmem:[%s212 + $0x30] sm:%s203]
                %235 = vst [vmem:[%s213 + $0x28] sm:%s203] %v234
                %v236 = vld [vmem:[%s212 + $0x34] sm:%s203]
                %237 = vst [vmem:[%s213 + $0x2c] sm:%s203] %v236
                %v238 = vld [vmem:[%s212 + $0x3c] sm:%s203]
                %239 = vst [vmem:[%s213 + $0x30] sm:%s203] %v238
                %v240 = vld [vmem:[%s212 + $0x40] sm:%s203]
                %241 = vst [vmem:[%s213 + $0x34] sm:%s203] %v240
                %v242 = vld [vmem:[%s212 + $0x44] sm:%s203]
                %243 = vst [vmem:[%s213 + $0x38] sm:%s203] %v242
                %v244 = vld [vmem:[%s212 + $0x48] sm:%s203]
                %245 = vst [vmem:[%s213 + $0x3c] sm:%s203] %v244
                %s246 = sadd.s32 1, %s211
                %p247 = scmp.ge.s32.totalorder %s246, %s204
                %s248 = scalar_select %p247, 0, %s246
                %s249 = smul.u32 %s248, 16
                %s250 = smul.u32 %s248, 16
                %s251 = scalar_lea.vmem %s194, %s249
                %s252 = scalar_lea.vmem %s183, %s250 [#allocation2]
              $region45: #{grounded_audio_conv_model.4} parent=39 // loop_footer
                %s208 = sadd.s32 %s206, 1
              $region46: #{grounded_audio_conv_model.4} parent=39 // loop_footer_branch
                %205 = sbr.rel target = $region42
              $region47: #{grounded_audio_conv_model.4} parent=39 // loop_exit
                _
              %s253 = sshrl.u32 %s188, 2
              %s254 = sand.u32 %s188, 3
              %s255 = smul.u32 %s253, 4
              %s256 = smul.u32 4, %s255
              %s257 = scalar_lea.vmem %s194, %s256
              %s258 = smul.u32 4, %s255
              %s259 = scalar_lea.vmem %s183, %s258 [#allocation2]
              // While loop
              $region48: #{grounded_audio_conv_model.4} parent=39 // loop_pre_header
                _
              $region49: #{grounded_audio_conv_model.4} parent=39 // loop_header
                %s261 = sphi 0, %s263
                %p262 = scmp.ge.s32.totalorder %s261, %s254
                %s266 = sphi 0, %s279
                %s267 = sphi %s257, %s282
                %s268 = sphi %s259, %s283
              $region50: #{grounded_audio_conv_model.4} parent=39 // loop_header_branch
                %265 = sbr.rel (%p262) target = $region54
              $region51: #{grounded_audio_conv_model.4} parent=39 // loop_body
                %v269 = vld [vmem:[%s267] sm:%s203]
                %270 = vst [vmem:[%s268] sm:%s203] %v269
                %v271 = vld [vmem:[%s267 + $0x14] sm:%s203]
                %272 = vst [vmem:[%s268 + $0x10] sm:%s203] %v271
                %v273 = vld [vmem:[%s267 + $0x28] sm:%s203]
                %274 = vst [vmem:[%s268 + $0x20] sm:%s203] %v273
                %v275 = vld [vmem:[%s267 + $0x3c] sm:%s203]
                %276 = vst [vmem:[%s268 + $0x30] sm:%s203] %v275
                %s277 = sadd.s32 1, %s266
                %p278 = scmp.ge.s32.totalorder %s277, %s254
                %s279 = scalar_select %p278, 0, %s277
                %s280 = smul.u32 %s279, 4
                %s281 = smul.u32 %s279, 4
                %s282 = scalar_lea.vmem %s257, %s280
                %s283 = scalar_lea.vmem %s259, %s281 [#allocation2]
              $region52: #{grounded_audio_conv_model.4} parent=39 // loop_footer
                %s263 = sadd.s32 %s261, 1
              $region53: #{grounded_audio_conv_model.4} parent=39 // loop_footer_branch
                %260 = sbr.rel target = $region49
              $region54: #{grounded_audio_conv_model.4} parent=39 // loop_exit
                _
            $region40: #{grounded_audio_conv_model.4} parent=31 // pred_fallthru
              _
          $region32: #{grounded_audio_conv_model.4} parent=27 // pred_fallthru
            _
          %408 = vnop
        $region28: #{grounded_audio_conv_model.4} parent=23 // pred_fallthru
          _
        // Predicated region
        $region87: #{grounded_audio_conv_model.4} parent=23 // pred_check
          %p409 = pneg %p76
        $region88: #{grounded_audio_conv_model.4} parent=23 // pred_check_branch
          %411 = sbr.rel (%p409) target = $region90
        $region89: #{grounded_audio_conv_model.4} parent=23 // pred_region
          %s412 = sand.u32 %s66, 1
          %s413 = sand.u32 %s66, 1
          %s414 = smul.addr %s413, 16
          %s415 = scalar_lea.vmem [#allocation3], %s414
          %s416 = sadd.s32 %s18, 1
          %s417 = smul.u32 %s416, 4
          %s418 = smul.u32 4, %s17
          %s419 = smul.addr %s418, 5
          %s420 = sadd.s32 %s417, %s419
          %s421 = smul.addr %s420, 4
          %s422 = scalar_lea.vmem %s1, %s421
          // Predicated region
          $region91: #{grounded_audio_conv_model.4} parent=89 // pred_check
            _
          $region92: #{grounded_audio_conv_model.4} parent=89 // pred_check_branch
            %424 = sbr.rel (0) target = $region94
          $region93: #{grounded_audio_conv_model.4} parent=89 // pred_region
            // Predicated region
            $region95: #{grounded_audio_conv_model.4} parent=93 // pred_check
              _
            $region96: #{grounded_audio_conv_model.4} parent=93 // pred_check_branch
              %426 = sbr.rel target = $region98
            $region97: #{grounded_audio_conv_model.4} parent=93 // pred_region
              // Predicated region
              $region110: #{grounded_audio_conv_model.4} parent=97 // pred_check
                _
              $region111: #{grounded_audio_conv_model.4} parent=97 // pred_check_branch
                %448 = sbr.rel (0) target = $region113
              $region112: #{grounded_audio_conv_model.4} parent=97 // pred_region
                loop: start=0, step=1, limit=1
                $region114: #{grounded_audio_conv_model.4} parent=112 // loop_pre_header
                  _
                $region115: #{grounded_audio_conv_model.4} parent=112 // loop_header
                  %s450 = sphi 0, %s454
                  %p451 = scmp.ge.s32.totalorder %s450, 1
                  %s455 = sphi %s422, %s422
                  %s456 = sphi %s415, %s415
                $region116: #{grounded_audio_conv_model.4} parent=112 // loop_header_branch
                  %453 = sbr.rel (%p451) target = $region120
                $region117: #{grounded_audio_conv_model.4} parent=112 // loop_body
                  _
                $region118: #{grounded_audio_conv_model.4} parent=112 // loop_footer
                  %s454 = sadd.s32 1, %s450
                $region119: #{grounded_audio_conv_model.4} parent=112 // loop_footer_branch
                  %449 = sbr.rel target = $region115
                $region120: #{grounded_audio_conv_model.4} parent=112 // loop_exit
                  _
                %s458 = ssub.s32 16, 1
                loop: start=0, step=1, limit=1
                $region121: #{grounded_audio_conv_model.4} parent=112 // loop_pre_header
                  _
                $region122: #{grounded_audio_conv_model.4} parent=112 // loop_header
                  %s460 = sphi 0, %s464
                  %p461 = scmp.ge.s32.totalorder %s460, 1
                  %s465 = sphi %s422, %s422
                  %s466 = sphi %s415, %s415
                $region123: #{grounded_audio_conv_model.4} parent=112 // loop_header_branch
                  %463 = sbr.rel (%p461) target = $region127
                $region124: #{grounded_audio_conv_model.4} parent=112 // loop_body
                  %v467 = vld [vmem:[%s465] sm:%s458]
                  %468 = vst [vmem:[%s466] sm:%s458] %v467
                  %v469 = vld [vmem:[%s465 + $0x14] sm:%s458]
                  %470 = vst [vmem:[%s466 + $0x4] sm:%s458] %v469
                  %v471 = vld [vmem:[%s465 + $0x28] sm:%s458]
                  %472 = vst [vmem:[%s466 + $0x8] sm:%s458] %v471
                  %v473 = vld [vmem:[%s465 + $0x3c] sm:%s458]
                  %474 = vst [vmem:[%s466 + $0xc] sm:%s458] %v473
                $region125: #{grounded_audio_conv_model.4} parent=112 // loop_footer
                  %s464 = sadd.s32 1, %s460
                $region126: #{grounded_audio_conv_model.4} parent=112 // loop_footer_branch
                  %459 = sbr.rel target = $region122
                $region127: #{grounded_audio_conv_model.4} parent=112 // loop_exit
                  _
              $region113: #{grounded_audio_conv_model.4} parent=97 // pred_fallthru
                _
            $region98: #{grounded_audio_conv_model.4} parent=93 // pred_fallthru
              _
            // Predicated region
            $region99: #{grounded_audio_conv_model.4} parent=93 // pred_check
              _
            $region100: #{grounded_audio_conv_model.4} parent=93 // pred_check_branch
              %428 = sbr.rel (0) target = $region102
            $region101: #{grounded_audio_conv_model.4} parent=93 // pred_region
              %s430 = ssub.s32 16, 1
              loop: start=0, step=1, limit=1
              $region103: #{grounded_audio_conv_model.4} parent=101 // loop_pre_header
                _
              $region104: #{grounded_audio_conv_model.4} parent=101 // loop_header
                %s432 = sphi 0, %s436
                %p433 = scmp.ge.s32.totalorder %s432, 1
                %s437 = sphi %s422, %s422
                %s438 = sphi %s415, %s415
              $region105: #{grounded_audio_conv_model.4} parent=101 // loop_header_branch
                %435 = sbr.rel (%p433) target = $region109
              $region106: #{grounded_audio_conv_model.4} parent=101 // loop_body
                %v439 = vld [vmem:[%s437] sm:%s430]
                %440 = vst [vmem:[%s438] sm:%s430] %v439
                %v441 = vld [vmem:[%s437 + $0x14] sm:%s430]
                %442 = vst [vmem:[%s438 + $0x4] sm:%s430] %v441
                %v443 = vld [vmem:[%s437 + $0x28] sm:%s430]
                %444 = vst [vmem:[%s438 + $0x8] sm:%s430] %v443
                %v445 = vld [vmem:[%s437 + $0x3c] sm:%s430]
                %446 = vst [vmem:[%s438 + $0xc] sm:%s430] %v445
              $region107: #{grounded_audio_conv_model.4} parent=101 // loop_footer
                %s436 = sadd.s32 1, %s432
              $region108: #{grounded_audio_conv_model.4} parent=101 // loop_footer_branch
                %431 = sbr.rel target = $region104
              $region109: #{grounded_audio_conv_model.4} parent=101 // loop_exit
                _
            $region102: #{grounded_audio_conv_model.4} parent=93 // pred_fallthru
              _
          $region94: #{grounded_audio_conv_model.4} parent=89 // pred_fallthru
            _
          %475 = vnop
        $region90: #{grounded_audio_conv_model.4} parent=23 // pred_fallthru
          _
      $region24: #{grounded_audio_conv_model.4} parent=5 // pred_fallthru
        _
      %p476 = scmp.le.s32.totalorder 1, %s10
      %p477 = scmp.lt.s32.totalorder %s10, 3
      %p478 = pnand %p476, %p477
      %p479 = pneg %p478
      // Predicated region
      $region128: #{grounded_audio_conv_model.4} parent=5 // pred_check
        _
      $region129: #{grounded_audio_conv_model.4} parent=5 // pred_check_branch
        %481 = sbr.rel (%p478) target = $region131
      $region130: #{grounded_audio_conv_model.4} parent=5 // pred_region
        %s482 = ssub.s32 %s10, 1
        %s483 = sand.u32 %s37, 1
        %s484 = sand.u32 %s37, 1
        %s485 = smul.addr %s484, 64
        %s486 = scalar_lea.vmem [#allocation2], %s485
        // Predicated region
        $region132: #{grounded_audio_conv_model.4} parent=130 // pred_check
          %p487 = pneg %p50
        $region133: #{grounded_audio_conv_model.4} parent=130 // pred_check_branch
          %489 = sbr.rel (%p487) target = $region135
        $region134: #{grounded_audio_conv_model.4} parent=130 // pred_region
          _
        $region135: #{grounded_audio_conv_model.4} parent=130 // pred_fallthru
          _
        %s490 = sand.u32 %s69, 1
        %s491 = sand.u32 %s69, 1
        %s492 = smul.addr %s491, 16
        %s493 = scalar_lea.vmem [#allocation3], %s492
        // Predicated region
        $region136: #{grounded_audio_conv_model.4} parent=130 // pred_check
          %p494 = pneg %p82
        $region137: #{grounded_audio_conv_model.4} parent=130 // pred_check_branch
          %496 = sbr.rel (%p494) target = $region139
        $region138: #{grounded_audio_conv_model.4} parent=130 // pred_region
          _
        $region139: #{grounded_audio_conv_model.4} parent=130 // pred_fallthru
          _
        %s497 = sand.u32 %s37, 1
        %s498 = sand.u32 %s37, 1
        %s499 = smul.addr %s498, 64
        %s500 = scalar_lea.vmem [#allocation2], %s499
        %p501 = pneg %p50
        %p502 = pneg %p47
        %s503 = sand.u32 %s69, 1
        %s504 = sand.u32 %s69, 1
        %s505 = smul.addr %s504, 16
        %s506 = scalar_lea.vmem [#allocation3], %s505
        %p507 = pneg %p82
        %p508 = pneg %p79
        %p509 = pneg %p103
        %p510 = pneg %p100
        %p511 = pneg %p124
        %p512 = pneg %p121
        %p513 = pneg %p152
        %p514 = pneg %p149
        %s515 = smul.u32 2, %s20
        %p516 = scmp.lt.s32.totalorder %s19, 1
        %s517 = scalar_select %p516, %s19, 1
        %p518 = scmp.lt.s32.totalorder %s515, 1
        %s519 = scalar_select %p518, %s515, 1
        %s520 = smul.addr %s517, 2
        %s521 = sadd.s32 %s519, %s520
        %s522 = smul.addr %s521, 4
        %s523 = scalar_lea.vmem %s4, %s522
        %s524 = smul.u32 4, %s19
        %s525 = smul.u32 4, %s20
        %s526 = ssub.s32 5, %s525
        %p527 = scmp.lt.s32.totalorder %s526, 4
        %s528 = scalar_select %p527, %s526, 4
        %s529 = smul.u32 16, %s528
        %s530 = sadd.s32 %s20, 1
        %s531 = smul.u32 %s530, 4
        %s532 = smul.u32 4, %s19
        %s533 = smul.u32 2, %s20
        %p534 = scmp.lt.s32.totalorder %s19, 1
        %s535 = scalar_select %p534, %s19, 1
        %p536 = scmp.lt.s32.totalorder %s533, 1
        %s537 = scalar_select %p536, %s533, 1
        %s538 = smul.addr %s535, 2
        %s539 = sadd.s32 %s537, %s538
        %s540 = smul.addr %s539, 4
        %s541 = scalar_lea.vmem %s4, %s540
        %s542 = smul.u32 2, %s20
        %v544 = vld [vmem:[%s486] sm:$0x7]
        %v545 = vld [vmem:[%s486 + $0x4] sm:$0x7]
        %v546 = vld [vmem:[%s486 + $0x8] sm:$0x7]
        %v547 = vld [vmem:[%s486 + $0xc] sm:$0x7]
        %v548 = vld [vmem:[%s486 + $0x10] sm:$0x7]
        %v549 = vld [vmem:[%s486 + $0x14] sm:$0x7]
        %v550 = vld [vmem:[%s486 + $0x18] sm:$0x7]
        %v551 = vld [vmem:[%s486 + $0x1c] sm:$0x7]
        %v552 = vld [vmem:[%s486 + $0x20] sm:$0x7]
        %v553 = vld [vmem:[%s486 + $0x24] sm:$0x7]
        %v554 = vld [vmem:[%s486 + $0x28] sm:$0x7]
        %v555 = vld [vmem:[%s486 + $0x2c] sm:$0x7]
        %v556 = vld [vmem:[%s486 + $0x30] sm:$0x7]
        %v557 = vld [vmem:[%s486 + $0x34] sm:$0x7]
        %v558 = vld [vmem:[%s486 + $0x38] sm:$0x7]
        %v559 = vld [vmem:[%s486 + $0x3c] sm:$0x7]
        %v560 = vld [vmem:[%s493] sm:$0x7]
        %v561 = vld [vmem:[%s493 + $0x4] sm:$0x7]
        %v562 = vld [vmem:[%s2] sm:$0xf]
        %s563 = scalar_lea.vmem %s2, 4
        %v564 = vld [vmem:[%s563] sm:$0xf]
        %566 = vst [vmem:[#allocation1] ss:$4 sm:$0xff] %v548
        %s568 = scalar_lea.vmem [#allocation1], 1
        %569 = vst [vmem:[%s568] ss:$4 sm:$0xff] %v549
        %s571 = scalar_lea.vmem [#allocation1], 2
        %572 = vst [vmem:[%s571] ss:$4 sm:$0xff] %v550
        %s574 = scalar_lea.vmem [#allocation1], 3
        %575 = vst [vmem:[%s574] ss:$4 sm:$0xff] %v551
        %v576 = vld.sshfl [vmem:[#allocation1] sm:$0xff pattern:$0x73625140]
        %vm577 = vcmask 64512
        %v578 = vsel %vm577, %v576, 0
        %vm580 = vcmask 1043456
        %v582 = vsel %vm580, %v564, 0
        %584 = vmatpush.bf16.msra.mxu0 0
        %585 = vmatpush.bf16.msra.mxu0 0
        %586 = vmatpush.bf16.msra.mxu0 0
        %587 = vmatpush.bf16.msra.mxu0 0
        %588 = vmatpush.bf16.msra.mxu0 0
        %589 = vmatpush.bf16.msra.mxu0 0
        %590 = vmatpush.bf16.msra.mxu0 0
        %591 = vmatpush.bf16.msra.mxu0 %v582
        %592 = vmatmul.bf16.gmra.mxu0 %v578
        %v593 = vpop.f32.mrf.mxu0
        %v594 = vadd.f32 0.0, %v593
        %v595 = vpop.f32.mrf.mxu0
        %v596 = vadd.f32 0.0, %v595
        %597 = vdwg.mxu0
        %599 = vst [vmem:[#allocation1] ss:$4 sm:$0xff] %v544
        %s601 = scalar_lea.vmem [#allocation1], 1
        %602 = vst [vmem:[%s601] ss:$4 sm:$0xff] %v545
        %s604 = scalar_lea.vmem [#allocation1], 2
        %605 = vst [vmem:[%s604] ss:$4 sm:$0xff] %v546
        %s607 = scalar_lea.vmem [#allocation1], 3
        %608 = vst [vmem:[%s607] ss:$4 sm:$0xff] %v547
        %v609 = vld.sshfl [vmem:[#allocation1] sm:$0xff pattern:$0x73625140]
        %v610 = vsel %vm577, %v609, 0
        %v613 = vsel %vm580, %v562, 0
        %615 = vmatpush.bf16.msra.mxu0 0
        %616 = vmatpush.bf16.msra.mxu0 0
        %617 = vmatpush.bf16.msra.mxu0 0
        %618 = vmatpush.bf16.msra.mxu0 0
        %619 = vmatpush.bf16.msra.mxu0 0
        %620 = vmatpush.bf16.msra.mxu0 0
        %621 = vmatpush.bf16.msra.mxu0 0
        %622 = vmatpush.bf16.msra.mxu0 %v613
        %623 = vmatmul.bf16.gmra.mxu0 %v610
        %v624 = vpop.f32.mrf.mxu0
        %v625 = vadd.f32 %v594, %v624
        %v626 = vpop.f32.mrf.mxu0
        %v627 = vadd.f32 %v596, %v626
        %628 = vdwg.mxu0
        %v633 = vrot.slane %v544, 2
        %v634 = vrot.slane %v545, 2
        %v635 = vrot.slane %v546, 2
        %v636 = vrot.slane %v547, 2
        %vm637 = vcmask 1041408
        %v639 = vsel %vm637, %v544, %v633
        %vm640 = vcmask 1043458
        %v641 = vsel %vm640, %v544, %v633
        %v643 = vrot.slane %v641, 2
        %v645 = vsel %vm637, %v545, %v634
        %v646 = vsel %vm640, %v545, %v634
        %v648 = vrot.slane %v646, 2
        %v650 = vsel %vm637, %v546, %v635
        %v651 = vsel %vm640, %v546, %v635
        %v653 = vrot.slane %v651, 2
        %v655 = vsel %vm637, %v547, %v636
        %v656 = vsel %vm640, %v547, %v636
        %v658 = vrot.slane %v656, 2
        %vm659 = vsmask.f32 1280
        %vm660 = vsmask.f32 3336
        %vm661 = vmor %vm659, %vm660
        %vm662 = vsmask.f32 5392
        %vm663 = vmor %vm661, %vm662
        %vm664 = vsmask.f32 7448
        %vm665 = vmor %vm663, %vm664
        %v666 = vshrl.u32 %v639, 16
        %v668 = vrot.slane %v666, 6
        %v669 = vshll.u32 %v639, 16
        %v671 = vrot.slane %v669, 7
        %v672 = vor.u32 %v668, %v671
        %v673 = vrot.slane %v672, 2
        %v675 = vshll.u32 %v643, 16
        %v677 = vrot.slane %v675, 7
        %v678 = vsel %vm665, %v673, %v677
        %v679 = vshrl.u32 %v645, 16
        %v681 = vrot.slane %v679, 6
        %v682 = vshll.u32 %v645, 16
        %v684 = vrot.slane %v682, 7
        %v685 = vor.u32 %v681, %v684
        %v686 = vrot.slane %v685, 2
        %v688 = vshll.u32 %v648, 16
        %v690 = vrot.slane %v688, 7
        %v691 = vsel %vm665, %v686, %v690
        %v692 = vshrl.u32 %v650, 16
        %v694 = vrot.slane %v692, 6
        %v695 = vshll.u32 %v650, 16
        %v697 = vrot.slane %v695, 7
        %v698 = vor.u32 %v694, %v697
        %v699 = vrot.slane %v698, 2
        %v701 = vshll.u32 %v653, 16
        %v703 = vrot.slane %v701, 7
        %v704 = vsel %vm665, %v699, %v703
        %v705 = vshrl.u32 %v655, 16
        %v707 = vrot.slane %v705, 6
        %v708 = vshll.u32 %v655, 16
        %v710 = vrot.slane %v708, 7
        %v711 = vor.u32 %v707, %v710
        %v712 = vrot.slane %v711, 2
        %v714 = vshll.u32 %v658, 16
        %v716 = vrot.slane %v714, 7
        %v717 = vsel %vm665, %v712, %v716
        %s718 = scalar_lea.vmem %s2, 8
        %v719 = vld [vmem:[%s718] sm:$0xf]
        %721 = vst [vmem:[#allocation1] ss:$4 sm:$0xff] %v678
        %s723 = scalar_lea.vmem [#allocation1], 1
        %724 = vst [vmem:[%s723] ss:$4 sm:$0xff] %v691
        %s726 = scalar_lea.vmem [#allocation1], 2
        %727 = vst [vmem:[%s726] ss:$4 sm:$0xff] %v704
        %s729 = scalar_lea.vmem [#allocation1], 3
        %730 = vst [vmem:[%s729] ss:$4 sm:$0xff] %v717
        %v731 = vld.sshfl [vmem:[#allocation1] sm:$0xff pattern:$0x73625140]
        %v732 = vsel %vm577, %v731, 0
        %v735 = vsel %vm580, %v719, 0
        %737 = vmatpush.bf16.msra.mxu0 0
        %738 = vmatpush.bf16.msra.mxu0 0
        %739 = vmatpush.bf16.msra.mxu0 0
        %740 = vmatpush.bf16.msra.mxu0 0
        %741 = vmatpush.bf16.msra.mxu0 0
        %742 = vmatpush.bf16.msra.mxu0 0
        %743 = vmatpush.bf16.msra.mxu0 0
        %744 = vmatpush.bf16.msra.mxu0 %v735
        %745 = vmatmul.bf16.gmra.mxu0 %v732
        %v746 = vpop.f32.mrf.mxu0
        %v747 = vadd.f32 0.0, %v746
        %v748 = vpop.f32.mrf.mxu0
        %v749 = vadd.f32 0.0, %v748
        %750 = vdwg.mxu0
        %v751 = vadd.f32 %v625, %v747
        %v752 = vadd.f32 %v627, %v749
        %s753 = scalar_lea.vmem %s2, 12
        %v754 = vld [vmem:[%s753] sm:$0xf]
        %756 = vst [vmem:[#allocation1] ss:$4 sm:$0xff] %v552
        %s758 = scalar_lea.vmem [#allocation1], 1
        %759 = vst [vmem:[%s758] ss:$4 sm:$0xff] %v553
        %s761 = scalar_lea.vmem [#allocation1], 2
        %762 = vst [vmem:[%s761] ss:$4 sm:$0xff] %v554
        %s764 = scalar_lea.vmem [#allocation1], 3
        %765 = vst [vmem:[%s764] ss:$4 sm:$0xff] %v555
        %v766 = vld.sshfl [vmem:[#allocation1] sm:$0xff pattern:$0x73625140]
        %v767 = vsel %vm577, %v766, 0
        %v770 = vsel %vm580, %v754, 0
        %772 = vmatpush.bf16.msra.mxu0 0
        %773 = vmatpush.bf16.msra.mxu0 0
        %774 = vmatpush.bf16.msra.mxu0 0
        %775 = vmatpush.bf16.msra.mxu0 0
        %776 = vmatpush.bf16.msra.mxu0 0
        %777 = vmatpush.bf16.msra.mxu0 0
        %778 = vmatpush.bf16.msra.mxu0 0
        %779 = vmatpush.bf16.msra.mxu0 %v770
        %780 = vmatmul.bf16.gmra.mxu0 %v767
        %v781 = vpop.f32.mrf.mxu0
        %v782 = vadd.f32 0.0, %v781
        %v783 = vpop.f32.mrf.mxu0
        %v784 = vadd.f32 0.0, %v783
        %785 = vdwg.mxu0
        %v786 = vadd.f32 %v751, %v782
        %v787 = vadd.f32 %v752, %v784
        %s788 = scalar_lea.vmem %s2, 16
        %v789 = vld [vmem:[%s788] sm:$0xf]
        %791 = vst [vmem:[#allocation1] ss:$4 sm:$0xff] %v556
        %s793 = scalar_lea.vmem [#allocation1], 1
        %794 = vst [vmem:[%s793] ss:$4 sm:$0xff] %v557
        %s796 = scalar_lea.vmem [#allocation1], 2
        %797 = vst [vmem:[%s796] ss:$4 sm:$0xff] %v558
        %s799 = scalar_lea.vmem [#allocation1], 3
        %800 = vst [vmem:[%s799] ss:$4 sm:$0xff] %v559
        %v801 = vld.sshfl [vmem:[#allocation1] sm:$0xff pattern:$0x73625140]
        %v802 = vsel %vm577, %v801, 0
        %v805 = vsel %vm580, %v789, 0
        %807 = vmatpush.bf16.msra.mxu0 0
        %808 = vmatpush.bf16.msra.mxu0 0
        %809 = vmatpush.bf16.msra.mxu0 0
        %810 = vmatpush.bf16.msra.mxu0 0
        %811 = vmatpush.bf16.msra.mxu0 0
        %812 = vmatpush.bf16.msra.mxu0 0
        %813 = vmatpush.bf16.msra.mxu0 0
        %814 = vmatpush.bf16.msra.mxu0 %v805
        %815 = vmatmul.bf16.gmra.mxu0 %v802
        %v816 = vpop.f32.mrf.mxu0
        %v817 = vadd.f32 0.0, %v816
        %v818 = vpop.f32.mrf.mxu0
        %v819 = vadd.f32 0.0, %v818
        %820 = vdwg.mxu0
        %v821 = vadd.f32 %v786, %v817
        %v822 = vadd.f32 %v787, %v819
        %v827 = vrot.slane %v552, 2
        %v828 = vrot.slane %v553, 2
        %v829 = vrot.slane %v554, 2
        %v830 = vrot.slane %v555, 2
        %v832 = vsel %vm637, %v552, %v827
        %v833 = vsel %vm640, %v552, %v827
        %v835 = vrot.slane %v833, 2
        %v837 = vsel %vm637, %v553, %v828
        %v838 = vsel %vm640, %v553, %v828
        %v840 = vrot.slane %v838, 2
        %v842 = vsel %vm637, %v554, %v829
        %v843 = vsel %vm640, %v554, %v829
        %v845 = vrot.slane %v843, 2
        %v847 = vsel %vm637, %v555, %v830
        %v848 = vsel %vm640, %v555, %v830
        %v850 = vrot.slane %v848, 2
        %v851 = vshrl.u32 %v832, 16
        %v853 = vrot.slane %v851, 6
        %v854 = vshll.u32 %v832, 16
        %v856 = vrot.slane %v854, 7
        %v857 = vor.u32 %v853, %v856
        %v858 = vrot.slane %v857, 2
        %v860 = vshll.u32 %v835, 16
        %v862 = vrot.slane %v860, 7
        %v863 = vsel %vm665, %v858, %v862
        %v864 = vshrl.u32 %v837, 16
        %v866 = vrot.slane %v864, 6
        %v867 = vshll.u32 %v837, 16
        %v869 = vrot.slane %v867, 7
        %v870 = vor.u32 %v866, %v869
        %v871 = vrot.slane %v870, 2
        %v873 = vshll.u32 %v840, 16
        %v875 = vrot.slane %v873, 7
        %v876 = vsel %vm665, %v871, %v875
        %v877 = vshrl.u32 %v842, 16
        %v879 = vrot.slane %v877, 6
        %v880 = vshll.u32 %v842, 16
        %v882 = vrot.slane %v880, 7
        %v883 = vor.u32 %v879, %v882
        %v884 = vrot.slane %v883, 2
        %v886 = vshll.u32 %v845, 16
        %v888 = vrot.slane %v886, 7
        %v889 = vsel %vm665, %v884, %v888
        %v890 = vshrl.u32 %v847, 16
        %v892 = vrot.slane %v890, 6
        %v893 = vshll.u32 %v847, 16
        %v895 = vrot.slane %v893, 7
        %v896 = vor.u32 %v892, %v895
        %v897 = vrot.slane %v896, 2
        %v899 = vshll.u32 %v850, 16
        %v901 = vrot.slane %v899, 7
        %v902 = vsel %vm665, %v897, %v901
        %s903 = scalar_lea.vmem %s2, 20
        %v904 = vld [vmem:[%s903] sm:$0xf]
        %906 = vst [vmem:[#allocation1] ss:$4 sm:$0xff] %v863
        %s908 = scalar_lea.vmem [#allocation1], 1
        %909 = vst [vmem:[%s908] ss:$4 sm:$0xff] %v876
        %s911 = scalar_lea.vmem [#allocation1], 2
        %912 = vst [vmem:[%s911] ss:$4 sm:$0xff] %v889
        %s914 = scalar_lea.vmem [#allocation1], 3
        %915 = vst [vmem:[%s914] ss:$4 sm:$0xff] %v902
        %v916 = vld.sshfl [vmem:[#allocation1] sm:$0xff pattern:$0x73625140]
        %v917 = vsel %vm577, %v916, 0
        %v920 = vsel %vm580, %v904, 0
        %922 = vmatpush.bf16.msra.mxu0 0
        %923 = vmatpush.bf16.msra.mxu0 0
        %924 = vmatpush.bf16.msra.mxu0 0
        %925 = vmatpush.bf16.msra.mxu0 0
        %926 = vmatpush.bf16.msra.mxu0 0
        %927 = vmatpush.bf16.msra.mxu0 0
        %928 = vmatpush.bf16.msra.mxu0 0
        %929 = vmatpush.bf16.msra.mxu0 %v920
        %930 = vmatmul.bf16.gmra.mxu0 %v917
        %v931 = vpop.f32.mrf.mxu0
        %v932 = vadd.f32 0.0, %v931
        %v933 = vpop.f32.mrf.mxu0
        %v934 = vadd.f32 0.0, %v933
        %935 = vdwg.mxu0
        %v936 = vadd.f32 %v821, %v932
        %v937 = vadd.f32 %v822, %v934
        %s938 = scalar_lea.vmem %s2, 24
        %v939 = vld [vmem:[%s938] sm:$0xf]
        %940 = vst [vmem:[#allocation1] ss:$4 sm:$0xff] %v545
        %s941 = scalar_lea.vmem [#allocation1], 1
        %942 = vst [vmem:[%s941] ss:$4 sm:$0xff] %v546
        %s943 = scalar_lea.vmem [#allocation1], 2
        %944 = vst [vmem:[%s943] ss:$4 sm:$0xff] %v547
        %s946 = scalar_lea.vmem [#allocation1], 3
        %947 = vst [vmem:[%s946] ss:$4 sm:$0xff] %v560
        %v948 = vld.sshfl [vmem:[#allocation1] sm:$0xff pattern:$0x73625140]
        %v949 = vsel %vm577, %v948, 0
        %v952 = vsel %vm580, %v939, 0
        %954 = vmatpush.bf16.msra.mxu0 0
        %955 = vmatpush.bf16.msra.mxu0 0
        %956 = vmatpush.bf16.msra.mxu0 0
        %957 = vmatpush.bf16.msra.mxu0 0
        %958 = vmatpush.bf16.msra.mxu0 0
        %959 = vmatpush.bf16.msra.mxu0 0
        %960 = vmatpush.bf16.msra.mxu0 0
        %961 = vmatpush.bf16.msra.mxu0 %v952
        %962 = vmatmul.bf16.gmra.mxu0 %v949
        %v963 = vpop.f32.mrf.mxu0
        %v964 = vadd.f32 0.0, %v963
        %v965 = vpop.f32.mrf.mxu0
        %v966 = vadd.f32 0.0, %v965
        %967 = vdwg.mxu0
        %v968 = vadd.f32 %v936, %v964
        %v969 = vadd.f32 %v937, %v966
        %s970 = scalar_lea.vmem %s2, 28
        %v971 = vld [vmem:[%s970] sm:$0xf]
        %972 = vst [vmem:[#allocation1] ss:$4 sm:$0xff] %v549
        %s973 = scalar_lea.vmem [#allocation1], 1
        %974 = vst [vmem:[%s973] ss:$4 sm:$0xff] %v550
        %s975 = scalar_lea.vmem [#allocation1], 2
        %976 = vst [vmem:[%s975] ss:$4 sm:$0xff] %v551
        %s978 = scalar_lea.vmem [#allocation1], 3
        %979 = vst [vmem:[%s978] ss:$4 sm:$0xff] %v561
        %v980 = vld.sshfl [vmem:[#allocation1] sm:$0xff pattern:$0x73625140]
        %v981 = vsel %vm577, %v980, 0
        %v984 = vsel %vm580, %v971, 0
        %986 = vmatpush.bf16.msra.mxu0 0
        %987 = vmatpush.bf16.msra.mxu0 0
        %988 = vmatpush.bf16.msra.mxu0 0
        %989 = vmatpush.bf16.msra.mxu0 0
        %990 = vmatpush.bf16.msra.mxu0 0
        %991 = vmatpush.bf16.msra.mxu0 0
        %992 = vmatpush.bf16.msra.mxu0 0
        %993 = vmatpush.bf16.msra.mxu0 %v984
        %994 = vmatmul.bf16.gmra.mxu0 %v981
        %v995 = vpop.f32.mrf.mxu0
        %v996 = vadd.f32 0.0, %v995
        %v997 = vpop.f32.mrf.mxu0
        %v998 = vadd.f32 0.0, %v997
        %999 = vdwg.mxu0
        %v1000 = vadd.f32 %v968, %v996
        %v1001 = vadd.f32 %v969, %v998
        %v1003 = vrot.slane %v560, 2
        %v1005 = vsel %vm637, %v560, %v1003
        %v1006 = vsel %vm640, %v560, %v1003
        %v1008 = vrot.slane %v1006, 2
        %v1009 = vshrl.u32 %v1005, 16
        %v1011 = vrot.slane %v1009, 6
        %v1012 = vshll.u32 %v1005, 16
        %v1014 = vrot.slane %v1012, 7
        %v1015 = vor.u32 %v1011, %v1014
        %v1016 = vrot.slane %v1015, 2
        %v1018 = vshll.u32 %v1008, 16
        %v1020 = vrot.slane %v1018, 7
        %v1021 = vsel %vm665, %v1016, %v1020
        %s1022 = scalar_lea.vmem %s2, 32
        %v1023 = vld [vmem:[%s1022] sm:$0xf]
        %1024 = vst [vmem:[#allocation1] ss:$4 sm:$0xff] %v691
        %s1025 = scalar_lea.vmem [#allocation1], 1
        %1026 = vst [vmem:[%s1025] ss:$4 sm:$0xff] %v704
        %s1027 = scalar_lea.vmem [#allocation1], 2
        %1028 = vst [vmem:[%s1027] ss:$4 sm:$0xff] %v717
        %s1030 = scalar_lea.vmem [#allocation1], 3
        %1031 = vst [vmem:[%s1030] ss:$4 sm:$0xff] %v1021
        %v1032 = vld.sshfl [vmem:[#allocation1] sm:$0xff pattern:$0x73625140]
        %v1033 = vsel %vm577, %v1032, 0
        %v1036 = vsel %vm580, %v1023, 0
        %1038 = vmatpush.bf16.msra.mxu0 0
        %1039 = vmatpush.bf16.msra.mxu0 0
        %1040 = vmatpush.bf16.msra.mxu0 0
        %1041 = vmatpush.bf16.msra.mxu0 0
        %1042 = vmatpush.bf16.msra.mxu0 0
        %1043 = vmatpush.bf16.msra.mxu0 0
        %1044 = vmatpush.bf16.msra.mxu0 0
        %1045 = vmatpush.bf16.msra.mxu0 %v1036
        %1046 = vmatmul.bf16.gmra.mxu0 %v1033
        %v1047 = vpop.f32.mrf.mxu0
        %v1048 = vadd.f32 0.0, %v1047
        %v1049 = vpop.f32.mrf.mxu0
        %v1050 = vadd.f32 0.0, %v1049
        %1051 = vdwg.mxu0
        %v1052 = vadd.f32 %v1000, %v1048
        %v1053 = vadd.f32 %v1001, %v1050
        %v1054 = vld [vmem:[%s3] sm:$0x1]
        %v1056 = vperm.slane %v1054, 0
        %v1058 = vadd.f32 %v1052, %v1056
        %v1059 = vadd.f32 %v1053, %v1056
        %v1060 = vmax.f32 %v1058, 0.0
        %v1061 = vmax.f32 %v1059, 0.0
        %v1062 = vpack.c.bf16 %v1060, %v1060
        %v1063 = vpack.c.bf16 %v1061, %v1061
        %vm1064 = vcmask 125952
        %1065 = vst.msk [vmem:[%s541] sm:$0xf] %vm1064, %v1062
        %1066 = vst.msk [vmem:[%s541 + $0x4] sm:$0xf] %vm1064, %v1063
        %s1067 = smul.u32 2, %s20
        %p1068 = scmp.lt.s32.totalorder %s19, 1
        %s1069 = scalar_select %p1068, %s19, 1
        %p1070 = scmp.lt.s32.totalorder %s1067, 1
        %s1071 = scalar_select %p1070, %s1067, 1
        %s1072 = smul.addr %s1069, 2
        %s1073 = sadd.s32 %s1071, %s1072
        %s1074 = smul.addr %s1073, 4
        %s1075 = scalar_lea.vmem %s4, %s1074
        // Predicated region
        $region140: #{grounded_audio_conv_model.4} parent=130 // pred_check
          %p1076 = pneg %p149
        $region141: #{grounded_audio_conv_model.4} parent=130 // pred_check_branch
          %1078 = sbr.rel (%p1076) target = $region143
        $region142: #{grounded_audio_conv_model.4} parent=130 // pred_region
          %s1079 = smul.u32 2, %s20
        $region143: #{grounded_audio_conv_model.4} parent=130 // pred_fallthru
          _
      $region131: #{grounded_audio_conv_model.4} parent=5 // pred_fallthru
        _
      %p1080 = scmp.le.s32.totalorder 2, %s10
      // Predicated region
      $region144: #{grounded_audio_conv_model.4} parent=5 // pred_check
        %p1081 = pneg %p1080
      $region145: #{grounded_audio_conv_model.4} parent=5 // pred_check_branch
        %1083 = sbr.rel (%p1081) target = $region147
      $region146: #{grounded_audio_conv_model.4} parent=5 // pred_region
        %s1084 = ssub.s32 %s10, 2
        // Predicated region
        $region148: #{grounded_audio_conv_model.4} parent=146 // pred_check
          %p1085 = pneg %p155
        $region149: #{grounded_audio_conv_model.4} parent=146 // pred_check_branch
          %1087 = sbr.rel (%p1085) target = $region151
        $region150: #{grounded_audio_conv_model.4} parent=146 // pred_region
          %s1088 = smul.u32 2, %s22
          %p1089 = scmp.lt.s32.totalorder %s21, 1
          %s1090 = scalar_select %p1089, %s21, 1
          %p1091 = scmp.lt.s32.totalorder %s1088, 1
          %s1092 = scalar_select %p1091, %s1088, 1
          %s1093 = smul.addr %s1090, 2
          %s1094 = sadd.s32 %s1092, %s1093
          %s1095 = smul.addr %s1094, 4
          %s1096 = scalar_lea.vmem %s4, %s1095
        $region151: #{grounded_audio_conv_model.4} parent=146 // pred_fallthru
          _
      $region147: #{grounded_audio_conv_model.4} parent=5 // pred_fallthru
        _
    $region6: #{grounded_audio_conv_model.4} parent=1 // loop_footer
      %s14 = sadd.s32 1, %s10
    $region7: #{grounded_audio_conv_model.4} parent=1 // loop_footer_branch
      %9 = sbr.rel target = $region3
    $region8: #{grounded_audio_conv_model.4} parent=1 // loop_exit
      _

// kernel: grounded_audio_conv_model.3
$region0: #{grounded_audio_conv_model.3}
  #allocation0 [shape = 'u32[]', space=smem, size = 0x4, offset = 0x4, fixed_abs, tag = 'smem constant byte address 0x4 - core index']
  #allocation1 [shape = 'u32[72,128]{1,0:T(1,128)}', space=vmem, size = 0x9000, scoped, tag = 'internal scratch']
  %s0 = inlined_call_operand.vmem [shape: bf16[8,9,9,4], index: 0, kind: input, shape index: {}, may-alias: {0,1}]
  %s1 = inlined_call_operand.vmem [shape: bf16[8,9,9,4], index: 1, kind: input, shape index: {}, may-alias: {0,1}]
  %s2 = inlined_call_operand.vmem [shape: bf16[9,4,8], index: 2, kind: input, shape index: {}]
  %s3 = inlined_call_operand.vmem [shape: f32[1,8], index: 3, kind: input, shape index: {}]
  %s4 = inlined_call_operand.vmem [shape: bf16[2,64,8], index: 4, kind: output, shape index: {}]
  %s5 = sld [smem:[#allocation0]]
  $region152: #{grounded_audio_conv_model.3} parent=0
    _
  %s7 = ssub.s32 1, %s5
  %s8 = scalar_select 0, %s7, %s5
  $region1: #{grounded_audio_conv_model.3} parent=0
    #allocation2 [shape = 'u8[262144]{0}', space=vmem, size = 0x40000, scoped, tag = 'input window, operand 0']
    #allocation3 [shape = 'u8[32768]{0}', space=vmem, size = 0x8000, scoped, tag = 'input window, operand 1']
    loop: start=0, step=1, limit=4
    $region2: #{grounded_audio_conv_model.3} parent=1 // loop_pre_header
      _
    $region3: #{grounded_audio_conv_model.3} parent=1 // loop_header
      %s10 = sphi 0, %s14
      %p11 = scmp.ge.s32.totalorder %s10, 4
      %s17 = sphi 0, %s29
      %s18 = sphi 0, %s25
      %s19 = sphi 0, %s17
      %s20 = sphi 0, %s18
      %s21 = sphi 0, %s19
      %s22 = sphi 0, %s20
      %s34 = sphi 0, %s36
      %s37 = sphi 0, %s34
      %s38 = sphi 0, %s37
      %s54 = sphi 0, %s38
      %s66 = sphi 0, %s68
      %s69 = sphi 0, %s66
      %s70 = sphi 0, %s69
      %s86 = sphi 0, %s70
      %s90 = sphi 0, %s90
      %s92 = sphi 0, %s90
      %s93 = sphi 0, %s92
      %s107 = sphi 0, %s93
      %s111 = sphi 0, %s111
      %s113 = sphi 0, %s111
      %s114 = sphi 0, %s113
      %s128 = sphi 0, %s114
      %s136 = sphi 0, %s138
      %s139 = sphi 0, %s136
      %s140 = sphi 0, %s139
      %s156 = sphi 0, %s140
    $region4: #{grounded_audio_conv_model.3} parent=1 // loop_header_branch
      %13 = sbr.rel (%p11) target = $region8
    $region5: #{grounded_audio_conv_model.3} parent=1 // loop_body
      %s15 = ssub.s32 %s10, 1
      %s16 = ssub.s32 %s10, 2
      %s23 = sadd.s32 1, %s18
      %p24 = scmp.ge.s32.totalorder %s23, 1
      %s25 = scalar_select %p24, 0, %s23
      %s26 = sadd.s32 1, %s17
      %s27 = scalar_select %p24, %s26, %s17
      %p28 = scmp.ge.s32.totalorder %s27, 2
      %s29 = scalar_select %p28, 0, %s27
      %s30 = ssub.s32 %s17, %s29
      %s31 = ssub.s32 %s18, %s25
      %s32 = sor.u32 %s30, %s31
      %p33 = scmp.eq.s32.totalorder %s32, 0
      %s35 = sadd.s32 %s34, 1
      %s36 = scalar_select %p33, %s34, %s35
      %p39 = pneg %p33
      %p40 = scmp.eq.s32.totalorder %s10, 1
      %p41 = por %p39, %p40
      %p42 = scmp.ne.s32.totalorder %s34, %s37
      %p43 = scmp.eq.s32.totalorder %s10, 0
      %p44 = por %p42, %p43
      %p45 = scmp.ne.s32.totalorder %s34, %s37
      %p46 = scmp.eq.s32.totalorder %s15, 1
      %p47 = por %p45, %p46
      %p48 = scmp.ne.s32.totalorder %s37, %s38
      %p49 = scmp.eq.s32.totalorder %s15, 0
      %p50 = por %p48, %p49
      %p51 = scmp.ne.s32.totalorder %s37, %s38
      %p52 = scmp.eq.s32.totalorder %s16, 1
      %p53 = por %p51, %p52
      %p55 = scmp.ne.s32.totalorder %s38, %s54
      %p56 = scmp.eq.s32.totalorder %s16, 0
      %p57 = por %p55, %p56
      %s58 = sadd.s32 %s18, 1
      %s59 = smul.u32 %s58, 8
      %s60 = sadd.s32 %s25, 1
      %s61 = smul.u32 %s60, 8
      %s62 = ssub.s32 %s17, %s29
      %s63 = ssub.s32 %s59, %s61
      %s64 = sor.u32 %s62, %s63
      %p65 = scmp.eq.s32.totalorder %s64, 0
      %s67 = sadd.s32 %s66, 1
      %s68 = scalar_select %p65, %s66, %s67
      %p71 = pneg %p65
      %p72 = scmp.eq.s32.totalorder %s10, 1
      %p73 = por %p71, %p72
      %p74 = scmp.ne.s32.totalorder %s66, %s69
      %p75 = scmp.eq.s32.totalorder %s10, 0
      %p76 = por %p74, %p75
      %p77 = scmp.ne.s32.totalorder %s66, %s69
      %p78 = scmp.eq.s32.totalorder %s15, 1
      %p79 = por %p77, %p78
      %p80 = scmp.ne.s32.totalorder %s69, %s70
      %p81 = scmp.eq.s32.totalorder %s15, 0
      %p82 = por %p80, %p81
      %p83 = scmp.ne.s32.totalorder %s69, %s70
      %p84 = scmp.eq.s32.totalorder %s16, 1
      %p85 = por %p83, %p84
      %p87 = scmp.ne.s32.totalorder %s70, %s86
      %p88 = scmp.eq.s32.totalorder %s16, 0
      %p89 = por %p87, %p88
      %s91 = sadd.s32 %s90, 1
      %p94 = scmp.eq.s32.totalorder %s10, 1
      %p95 = scmp.ne.s32.totalorder %s90, %s92
      %p96 = scmp.eq.s32.totalorder %s10, 0
      %p97 = por %p95, %p96
      %p98 = scmp.ne.s32.totalorder %s90, %s92
      %p99 = scmp.eq.s32.totalorder %s15, 1
      %p100 = por %p98, %p99
      %p101 = scmp.ne.s32.totalorder %s92, %s93
      %p102 = scmp.eq.s32.totalorder %s15, 0
      %p103 = por %p101, %p102
      %p104 = scmp.ne.s32.totalorder %s92, %s93
      %p105 = scmp.eq.s32.totalorder %s16, 1
      %p106 = por %p104, %p105
      %p108 = scmp.ne.s32.totalorder %s93, %s107
      %p109 = scmp.eq.s32.totalorder %s16, 0
      %p110 = por %p108, %p109
      %s112 = sadd.s32 %s111, 1
      %p115 = scmp.eq.s32.totalorder %s10, 1
      %p116 = scmp.ne.s32.totalorder %s111, %s113
      %p117 = scmp.eq.s32.totalorder %s10, 0
      %p118 = por %p116, %p117
      %p119 = scmp.ne.s32.totalorder %s111, %s113
      %p120 = scmp.eq.s32.totalorder %s15, 1
      %p121 = por %p119, %p120
      %p122 = scmp.ne.s32.totalorder %s113, %s114
      %p123 = scmp.eq.s32.totalorder %s15, 0
      %p124 = por %p122, %p123
      %p125 = scmp.ne.s32.totalorder %s113, %s114
      %p126 = scmp.eq.s32.totalorder %s16, 1
      %p127 = por %p125, %p126
      %p129 = scmp.ne.s32.totalorder %s114, %s128
      %p130 = scmp.eq.s32.totalorder %s16, 0
      %p131 = por %p129, %p130
      %s132 = ssub.s32 %s17, %s29
      %s133 = ssub.s32 %s18, %s25
      %s134 = sor.u32 %s132, %s133
      %p135 = scmp.eq.s32.totalorder %s134, 0
      %s137 = sadd.s32 %s136, 1
      %s138 = scalar_select %p135, %s136, %s137
      %p141 = pneg %p135
      %p142 = scmp.eq.s32.totalorder %s10, 1
      %p143 = por %p141, %p142
      %p144 = scmp.ne.s32.totalorder %s136, %s139
      %p145 = scmp.eq.s32.totalorder %s10, 0
      %p146 = por %p144, %p145
      %p147 = scmp.ne.s32.totalorder %s136, %s139
      %p148 = scmp.eq.s32.totalorder %s15, 1
      %p149 = por %p147, %p148
      %p150 = scmp.ne.s32.totalorder %s139, %s140
      %p151 = scmp.eq.s32.totalorder %s15, 0
      %p152 = por %p150, %p151
      %p153 = scmp.ne.s32.totalorder %s139, %s140
      %p154 = scmp.eq.s32.totalorder %s16, 1
      %p155 = por %p153, %p154
      %p157 = scmp.ne.s32.totalorder %s140, %s156
      %p158 = scmp.eq.s32.totalorder %s16, 0
      %p159 = por %p157, %p158
      %p160 = scmp.le.s32.totalorder 1, %s10
      %p161 = scmp.lt.s32.totalorder %s10, 3
      %p162 = pnand %p160, %p161
      %p163 = pneg %p162
      // Predicated region
      $region9: #{grounded_audio_conv_model.3} parent=5 // pred_check
        _
      $region10: #{grounded_audio_conv_model.3} parent=5 // pred_check_branch
        %165 = sbr.rel (%p162) target = $region12
      $region11: #{grounded_audio_conv_model.3} parent=5 // pred_region
        %s166 = ssub.s32 %s10, 1
        // Predicated region
        $region13: #{grounded_audio_conv_model.3} parent=11 // pred_check
          %p167 = pneg %p103
        $region14: #{grounded_audio_conv_model.3} parent=11 // pred_check_branch
          %169 = sbr.rel (%p167) target = $region16
        $region15: #{grounded_audio_conv_model.3} parent=11 // pred_region
          _
        $region16: #{grounded_audio_conv_model.3} parent=11 // pred_fallthru
          _
        // Predicated region
        $region17: #{grounded_audio_conv_model.3} parent=11 // pred_check
          %p170 = pneg %p124
        $region18: #{grounded_audio_conv_model.3} parent=11 // pred_check_branch
          %172 = sbr.rel (%p170) target = $region20
        $region19: #{grounded_audio_conv_model.3} parent=11 // pred_region
          _
        $region20: #{grounded_audio_conv_model.3} parent=11 // pred_fallthru
          _
      $region12: #{grounded_audio_conv_model.3} parent=5 // pred_fallthru
        _
      %p173 = scmp.lt.s32.totalorder %s10, 2
      // Predicated region
      $region21: #{grounded_audio_conv_model.3} parent=5 // pred_check
        %p174 = pneg %p173
      $region22: #{grounded_audio_conv_model.3} parent=5 // pred_check_branch
        %176 = sbr.rel (%p174) target = $region24
      $region23: #{grounded_audio_conv_model.3} parent=5 // pred_region
        // Predicated region
        $region25: #{grounded_audio_conv_model.3} parent=23 // pred_check
          %p177 = pneg %p44
        $region26: #{grounded_audio_conv_model.3} parent=23 // pred_check_branch
          %179 = sbr.rel (%p177) target = $region28
        $region27: #{grounded_audio_conv_model.3} parent=23 // pred_region
          %s180 = sand.u32 %s34, 1
          %s181 = sand.u32 %s34, 1
          %s182 = smul.addr %s181, 256
          %s183 = scalar_lea.vmem [#allocation2], %s182
          %s184 = smul.u32 4, %s17
          %s185 = smul.u32 8, %s18
          %s186 = ssub.s32 9, %s185
          %p187 = scmp.lt.s32.totalorder %s186, 8
          %s188 = scalar_select %p187, %s186, 8
          %s189 = smul.u32 16, %s188
          %s190 = smul.u32 %s189, 2
          %p191 = scmp.ne.s32.totalorder 0, %s190
          %s192 = smul.addr %s185, 2
          %s193 = smul.addr %s184, 18
          %s194 = sadd.s32 %s192, %s193
          %s195 = smul.addr %s194, 4
          %s196 = scalar_lea.vmem %s0, %s195
          %s197 = smul.u32 %s188, 2
          // Predicated region
          $region29: #{grounded_audio_conv_model.3} parent=27 // pred_check
            %p198 = pneg %p191
          $region30: #{grounded_audio_conv_model.3} parent=27 // pred_check_branch
            %200 = sbr.rel (%p198) target = $region32
          $region31: #{grounded_audio_conv_model.3} parent=27 // pred_region
            // Predicated region
            $region33: #{grounded_audio_conv_model.3} parent=31 // pred_check
              _
            $region34: #{grounded_audio_conv_model.3} parent=31 // pred_check_branch
              %202 = sbr.rel target = $region36
            $region35: #{grounded_audio_conv_model.3} parent=31 // pred_region
              // Predicated region
              $region55: #{grounded_audio_conv_model.3} parent=35 // pred_check
                _
              $region56: #{grounded_audio_conv_model.3} parent=35 // pred_check_branch
                %320 = sbr.rel (0) target = $region58
              $region57: #{grounded_audio_conv_model.3} parent=35 // pred_region
                %s321 = sshrl.u32 %s197, 4
                // While loop
                $region59: #{grounded_audio_conv_model.3} parent=57 // loop_pre_header
                  _
                $region60: #{grounded_audio_conv_model.3} parent=57 // loop_header
                  %s323 = sphi 0, %s325
                  %p324 = scmp.ge.s32.totalorder %s323, %s321
                  %s328 = sphi 0, %s333
                  %s329 = sphi %s196, %s336
                  %s330 = sphi %s183, %s337
                $region61: #{grounded_audio_conv_model.3} parent=57 // loop_header_branch
                  %327 = sbr.rel (%p324) target = $region65
                $region62: #{grounded_audio_conv_model.3} parent=57 // loop_body
                  %s331 = sadd.s32 1, %s328
                  %p332 = scmp.ge.s32.totalorder %s331, %s321
                  %s333 = scalar_select %p332, 0, %s331
                  %s334 = smul.u32 %s333, 64
                  %s335 = smul.u32 %s333, 64
                  %s336 = scalar_lea.vmem %s196, %s334
                  %s337 = scalar_lea.vmem %s183, %s335 [#allocation2]
                $region63: #{grounded_audio_conv_model.3} parent=57 // loop_footer
                  %s325 = sadd.s32 %s323, 1
                $region64: #{grounded_audio_conv_model.3} parent=57 // loop_footer_branch
                  %322 = sbr.rel target = $region60
                $region65: #{grounded_audio_conv_model.3} parent=57 // loop_exit
                  _
                %s338 = sshrl.u32 %s197, 4
                %s339 = sand.u32 %s197, 15
                %s340 = smul.u32 %s338, 16
                %s341 = smul.u32 4, %s340
                %s342 = scalar_lea.vmem %s196, %s341
                %s343 = smul.u32 4, %s340
                %s344 = scalar_lea.vmem %s183, %s343 [#allocation2]
                // While loop
                $region66: #{grounded_audio_conv_model.3} parent=57 // loop_pre_header
                  _
                $region67: #{grounded_audio_conv_model.3} parent=57 // loop_header
                  %s346 = sphi 0, %s348
                  %p347 = scmp.ge.s32.totalorder %s346, %s339
                  %s351 = sphi 0, %s356
                  %s352 = sphi %s342, %s359
                  %s353 = sphi %s344, %s360
                $region68: #{grounded_audio_conv_model.3} parent=57 // loop_header_branch
                  %350 = sbr.rel (%p347) target = $region72
                $region69: #{grounded_audio_conv_model.3} parent=57 // loop_body
                  %s354 = sadd.s32 1, %s351
                  %p355 = scmp.ge.s32.totalorder %s354, %s339
                  %s356 = scalar_select %p355, 0, %s354
                  %s357 = smul.u32 %s356, 4
                  %s358 = smul.u32 %s356, 4
                  %s359 = scalar_lea.vmem %s342, %s357
                  %s360 = scalar_lea.vmem %s344, %s358 [#allocation2]
                $region70: #{grounded_audio_conv_model.3} parent=57 // loop_footer
                  %s348 = sadd.s32 %s346, 1
                $region71: #{grounded_audio_conv_model.3} parent=57 // loop_footer_branch
                  %345 = sbr.rel target = $region67
                $region72: #{grounded_audio_conv_model.3} parent=57 // loop_exit
                  _
                %s362 = ssub.s32 16, 1
                %s363 = sshrl.u32 %s197, 3
                // While loop
                $region73: #{grounded_audio_conv_model.3} parent=57 // loop_pre_header
                  _
                $region74: #{grounded_audio_conv_model.3} parent=57 // loop_header
                  %s365 = sphi 0, %s367
                  %p366 = scmp.ge.s32.totalorder %s365, %s363
                  %s370 = sphi 0, %s439
                  %s371 = sphi %s196, %s442
                  %s372 = sphi %s183, %s443
                $region75: #{grounded_audio_conv_model.3} parent=57 // loop_header_branch
                  %369 = sbr.rel (%p366) target = $region79
                $region76: #{grounded_audio_conv_model.3} parent=57 // loop_body
                  %v373 = vld [vmem:[%s371] sm:%s362]
                  %374 = vst [vmem:[%s372] sm:%s362] %v373
                  %v375 = vld [vmem:[%s371 + $0x4] sm:%s362]
                  %376 = vst [vmem:[%s372 + $0x4] sm:%s362] %v375
                  %v377 = vld [vmem:[%s371 + $0x8] sm:%s362]
                  %378 = vst [vmem:[%s372 + $0x8] sm:%s362] %v377
                  %v379 = vld [vmem:[%s371 + $0xc] sm:%s362]
                  %380 = vst [vmem:[%s372 + $0xc] sm:%s362] %v379
                  %v381 = vld [vmem:[%s371 + $0x10] sm:%s362]
                  %382 = vst [vmem:[%s372 + $0x10] sm:%s362] %v381
                  %v383 = vld [vmem:[%s371 + $0x14] sm:%s362]
                  %384 = vst [vmem:[%s372 + $0x14] sm:%s362] %v383
                  %v385 = vld [vmem:[%s371 + $0x18] sm:%s362]
                  %386 = vst [vmem:[%s372 + $0x18] sm:%s362] %v385
                  %v387 = vld [vmem:[%s371 + $0x1c] sm:%s362]
                  %388 = vst [vmem:[%s372 + $0x1c] sm:%s362] %v387
                  %v389 = vld [vmem:[%s371 + $0x48] sm:%s362]
                  %390 = vst [vmem:[%s372 + $0x40] sm:%s362] %v389
                  %v391 = vld [vmem:[%s371 + $0x4c] sm:%s362]
                  %392 = vst [vmem:[%s372 + $0x44] sm:%s362] %v391
                  %v393 = vld [vmem:[%s371 + $0x50] sm:%s362]
                  %394 = vst [vmem:[%s372 + $0x48] sm:%s362] %v393
                  %v395 = vld [vmem:[%s371 + $0x54] sm:%s362]
                  %396 = vst [vmem:[%s372 + $0x4c] sm:%s362] %v395
                  %v397 = vld [vmem:[%s371 + $0x58] sm:%s362]
                  %398 = vst [vmem:[%s372 + $0x50] sm:%s362] %v397
                  %v399 = vld [vmem:[%s371 + $0x5c] sm:%s362]
                  %400 = vst [vmem:[%s372 + $0x54] sm:%s362] %v399
                  %v401 = vld [vmem:[%s371 + $0x60] sm:%s362]
                  %402 = vst [vmem:[%s372 + $0x58] sm:%s362] %v401
                  %v403 = vld [vmem:[%s371 + $0x64] sm:%s362]
                  %404 = vst [vmem:[%s372 + $0x5c] sm:%s362] %v403
                  %v405 = vld [vmem:[%s371 + $0x90] sm:%s362]
                  %406 = vst [vmem:[%s372 + $0x80] sm:%s362] %v405
                  %v407 = vld [vmem:[%s371 + $0x94] sm:%s362]
                  %408 = vst [vmem:[%s372 + $0x84] sm:%s362] %v407
                  %v409 = vld [vmem:[%s371 + $0x98] sm:%s362]
                  %410 = vst [vmem:[%s372 + $0x88] sm:%s362] %v409
                  %v411 = vld [vmem:[%s371 + $0x9c] sm:%s362]
                  %412 = vst [vmem:[%s372 + $0x8c] sm:%s362] %v411
                  %v413 = vld [vmem:[%s371 + $0xa0] sm:%s362]
                  %414 = vst [vmem:[%s372 + $0x90] sm:%s362] %v413
                  %v415 = vld [vmem:[%s371 + $0xa4] sm:%s362]
                  %416 = vst [vmem:[%s372 + $0x94] sm:%s362] %v415
                  %v417 = vld [vmem:[%s371 + $0xa8] sm:%s362]
                  %418 = vst [vmem:[%s372 + $0x98] sm:%s362] %v417
                  %v419 = vld [vmem:[%s371 + $0xac] sm:%s362]
                  %420 = vst [vmem:[%s372 + $0x9c] sm:%s362] %v419
                  %v421 = vld [vmem:[%s371 + $0xd8] sm:%s362]
                  %422 = vst [vmem:[%s372 + $0xc0] sm:%s362] %v421
                  %v423 = vld [vmem:[%s371 + $0xdc] sm:%s362]
                  %424 = vst [vmem:[%s372 + $0xc4] sm:%s362] %v423
                  %v425 = vld [vmem:[%s371 + $0xe0] sm:%s362]
                  %426 = vst [vmem:[%s372 + $0xc8] sm:%s362] %v425
                  %v427 = vld [vmem:[%s371 + $0xe4] sm:%s362]
                  %428 = vst [vmem:[%s372 + $0xcc] sm:%s362] %v427
                  %v429 = vld [vmem:[%s371 + $0xe8] sm:%s362]
                  %430 = vst [vmem:[%s372 + $0xd0] sm:%s362] %v429
                  %v431 = vld [vmem:[%s371 + $0xec] sm:%s362]
                  %432 = vst [vmem:[%s372 + $0xd4] sm:%s362] %v431
                  %v433 = vld [vmem:[%s371 + $0xf0] sm:%s362]
                  %434 = vst [vmem:[%s372 + $0xd8] sm:%s362] %v433
                  %v435 = vld [vmem:[%s371 + $0xf4] sm:%s362]
                  %436 = vst [vmem:[%s372 + $0xdc] sm:%s362] %v435
                  %s437 = sadd.s32 1, %s370
                  %p438 = scmp.ge.s32.totalorder %s437, %s363
                  %s439 = scalar_select %p438, 0, %s437
                  %s440 = smul.u32 %s439, 32
                  %s441 = smul.u32 %s439, 32
                  %s442 = scalar_lea.vmem %s196, %s440
                  %s443 = scalar_lea.vmem %s183, %s441 [#allocation2]
                $region77: #{grounded_audio_conv_model.3} parent=57 // loop_footer
                  %s367 = sadd.s32 %s365, 1
                $region78: #{grounded_audio_conv_model.3} parent=57 // loop_footer_branch
                  %364 = sbr.rel target = $region74
                $region79: #{grounded_audio_conv_model.3} parent=57 // loop_exit
                  _
                %s444 = sshrl.u32 %s197, 3
                %s445 = sand.u32 %s197, 7
                %s446 = smul.u32 %s444, 8
                %s447 = smul.u32 4, %s446
                %s448 = scalar_lea.vmem %s196, %s447
                %s449 = smul.u32 4, %s446
                %s450 = scalar_lea.vmem %s183, %s449 [#allocation2]
                // While loop
                $region80: #{grounded_audio_conv_model.3} parent=57 // loop_pre_header
                  _
                $region81: #{grounded_audio_conv_model.3} parent=57 // loop_header
                  %s452 = sphi 0, %s454
                  %p453 = scmp.ge.s32.totalorder %s452, %s445
                  %s457 = sphi 0, %s470
                  %s458 = sphi %s448, %s473
                  %s459 = sphi %s450, %s474
                $region82: #{grounded_audio_conv_model.3} parent=57 // loop_header_branch
                  %456 = sbr.rel (%p453) target = $region86
                $region83: #{grounded_audio_conv_model.3} parent=57 // loop_body
                  %v460 = vld [vmem:[%s458] sm:%s362]
                  %461 = vst [vmem:[%s459] sm:%s362] %v460
                  %v462 = vld [vmem:[%s458 + $0x48] sm:%s362]
                  %463 = vst [vmem:[%s459 + $0x40] sm:%s362] %v462
                  %v464 = vld [vmem:[%s458 + $0x90] sm:%s362]
                  %465 = vst [vmem:[%s459 + $0x80] sm:%s362] %v464
                  %v466 = vld [vmem:[%s458 + $0xd8] sm:%s362]
                  %467 = vst [vmem:[%s459 + $0xc0] sm:%s362] %v466
                  %s468 = sadd.s32 1, %s457
                  %p469 = scmp.ge.s32.totalorder %s468, %s445
                  %s470 = scalar_select %p469, 0, %s468
                  %s471 = smul.u32 %s470, 4
                  %s472 = smul.u32 %s470, 4
                  %s473 = scalar_lea.vmem %s448, %s471
                  %s474 = scalar_lea.vmem %s450, %s472 [#allocation2]
                $region84: #{grounded_audio_conv_model.3} parent=57 // loop_footer
                  %s454 = sadd.s32 %s452, 1
                $region85: #{grounded_audio_conv_model.3} parent=57 // loop_footer_branch
                  %451 = sbr.rel target = $region81
                $region86: #{grounded_audio_conv_model.3} parent=57 // loop_exit
                  _
              $region58: #{grounded_audio_conv_model.3} parent=35 // pred_fallthru
                _
            $region36: #{grounded_audio_conv_model.3} parent=31 // pred_fallthru
              _
            // Predicated region
            $region37: #{grounded_audio_conv_model.3} parent=31 // pred_check
              _
            $region38: #{grounded_audio_conv_model.3} parent=31 // pred_check_branch
              %204 = sbr.rel (0) target = $region40
            $region39: #{grounded_audio_conv_model.3} parent=31 // pred_region
              %s206 = ssub.s32 16, 1
              %s207 = sshrl.u32 %s197, 3
              // While loop
              $region41: #{grounded_audio_conv_model.3} parent=39 // loop_pre_header
                _
              $region42: #{grounded_audio_conv_model.3} parent=39 // loop_header
                %s209 = sphi 0, %s211
                %p210 = scmp.ge.s32.totalorder %s209, %s207
                %s214 = sphi 0, %s283
                %s215 = sphi %s196, %s286
                %s216 = sphi %s183, %s287
              $region43: #{grounded_audio_conv_model.3} parent=39 // loop_header_branch
                %213 = sbr.rel (%p210) target = $region47
              $region44: #{grounded_audio_conv_model.3} parent=39 // loop_body
                %v217 = vld [vmem:[%s215] sm:%s206]
                %218 = vst [vmem:[%s216] sm:%s206] %v217
                %v219 = vld [vmem:[%s215 + $0x4] sm:%s206]
                %220 = vst [vmem:[%s216 + $0x4] sm:%s206] %v219
                %v221 = vld [vmem:[%s215 + $0x8] sm:%s206]
                %222 = vst [vmem:[%s216 + $0x8] sm:%s206] %v221
                %v223 = vld [vmem:[%s215 + $0xc] sm:%s206]
                %224 = vst [vmem:[%s216 + $0xc] sm:%s206] %v223
                %v225 = vld [vmem:[%s215 + $0x10] sm:%s206]
                %226 = vst [vmem:[%s216 + $0x10] sm:%s206] %v225
                %v227 = vld [vmem:[%s215 + $0x14] sm:%s206]
                %228 = vst [vmem:[%s216 + $0x14] sm:%s206] %v227
                %v229 = vld [vmem:[%s215 + $0x18] sm:%s206]
                %230 = vst [vmem:[%s216 + $0x18] sm:%s206] %v229
                %v231 = vld [vmem:[%s215 + $0x1c] sm:%s206]
                %232 = vst [vmem:[%s216 + $0x1c] sm:%s206] %v231
                %v233 = vld [vmem:[%s215 + $0x48] sm:%s206]
                %234 = vst [vmem:[%s216 + $0x40] sm:%s206] %v233
                %v235 = vld [vmem:[%s215 + $0x4c] sm:%s206]
                %236 = vst [vmem:[%s216 + $0x44] sm:%s206] %v235
                %v237 = vld [vmem:[%s215 + $0x50] sm:%s206]
                %238 = vst [vmem:[%s216 + $0x48] sm:%s206] %v237
                %v239 = vld [vmem:[%s215 + $0x54] sm:%s206]
                %240 = vst [vmem:[%s216 + $0x4c] sm:%s206] %v239
                %v241 = vld [vmem:[%s215 + $0x58] sm:%s206]
                %242 = vst [vmem:[%s216 + $0x50] sm:%s206] %v241
                %v243 = vld [vmem:[%s215 + $0x5c] sm:%s206]
                %244 = vst [vmem:[%s216 + $0x54] sm:%s206] %v243
                %v245 = vld [vmem:[%s215 + $0x60] sm:%s206]
                %246 = vst [vmem:[%s216 + $0x58] sm:%s206] %v245
                %v247 = vld [vmem:[%s215 + $0x64] sm:%s206]
                %248 = vst [vmem:[%s216 + $0x5c] sm:%s206] %v247
                %v249 = vld [vmem:[%s215 + $0x90] sm:%s206]
                %250 = vst [vmem:[%s216 + $0x80] sm:%s206] %v249
                %v251 = vld [vmem:[%s215 + $0x94] sm:%s206]
                %252 = vst [vmem:[%s216 + $0x84] sm:%s206] %v251
                %v253 = vld [vmem:[%s215 + $0x98] sm:%s206]
                %254 = vst [vmem:[%s216 + $0x88] sm:%s206] %v253
                %v255 = vld [vmem:[%s215 + $0x9c] sm:%s206]
                %256 = vst [vmem:[%s216 + $0x8c] sm:%s206] %v255
                %v257 = vld [vmem:[%s215 + $0xa0] sm:%s206]
                %258 = vst [vmem:[%s216 + $0x90] sm:%s206] %v257
                %v259 = vld [vmem:[%s215 + $0xa4] sm:%s206]
                %260 = vst [vmem:[%s216 + $0x94] sm:%s206] %v259
                %v261 = vld [vmem:[%s215 + $0xa8] sm:%s206]
                %262 = vst [vmem:[%s216 + $0x98] sm:%s206] %v261
                %v263 = vld [vmem:[%s215 + $0xac] sm:%s206]
                %264 = vst [vmem:[%s216 + $0x9c] sm:%s206] %v263
                %v265 = vld [vmem:[%s215 + $0xd8] sm:%s206]
                %266 = vst [vmem:[%s216 + $0xc0] sm:%s206] %v265
                %v267 = vld [vmem:[%s215 + $0xdc] sm:%s206]
                %268 = vst [vmem:[%s216 + $0xc4] sm:%s206] %v267
                %v269 = vld [vmem:[%s215 + $0xe0] sm:%s206]
                %270 = vst [vmem:[%s216 + $0xc8] sm:%s206] %v269
                %v271 = vld [vmem:[%s215 + $0xe4] sm:%s206]
                %272 = vst [vmem:[%s216 + $0xcc] sm:%s206] %v271
                %v273 = vld [vmem:[%s215 + $0xe8] sm:%s206]
                %274 = vst [vmem:[%s216 + $0xd0] sm:%s206] %v273
                %v275 = vld [vmem:[%s215 + $0xec] sm:%s206]
                %276 = vst [vmem:[%s216 + $0xd4] sm:%s206] %v275
                %v277 = vld [vmem:[%s215 + $0xf0] sm:%s206]
                %278 = vst [vmem:[%s216 + $0xd8] sm:%s206] %v277
                %v279 = vld [vmem:[%s215 + $0xf4] sm:%s206]
                %280 = vst [vmem:[%s216 + $0xdc] sm:%s206] %v279
                %s281 = sadd.s32 1, %s214
                %p282 = scmp.ge.s32.totalorder %s281, %s207
                %s283 = scalar_select %p282, 0, %s281
                %s284 = smul.u32 %s283, 32
                %s285 = smul.u32 %s283, 32
                %s286 = scalar_lea.vmem %s196, %s284
                %s287 = scalar_lea.vmem %s183, %s285 [#allocation2]
              $region45: #{grounded_audio_conv_model.3} parent=39 // loop_footer
                %s211 = sadd.s32 %s209, 1
              $region46: #{grounded_audio_conv_model.3} parent=39 // loop_footer_branch
                %208 = sbr.rel target = $region42
              $region47: #{grounded_audio_conv_model.3} parent=39 // loop_exit
                _
              %s288 = sshrl.u32 %s197, 3
              %s289 = sand.u32 %s197, 7
              %s290 = smul.u32 %s288, 8
              %s291 = smul.u32 4, %s290
              %s292 = scalar_lea.vmem %s196, %s291
              %s293 = smul.u32 4, %s290
              %s294 = scalar_lea.vmem %s183, %s293 [#allocation2]
              // While loop
              $region48: #{grounded_audio_conv_model.3} parent=39 // loop_pre_header
                _
              $region49: #{grounded_audio_conv_model.3} parent=39 // loop_header
                %s296 = sphi 0, %s298
                %p297 = scmp.ge.s32.totalorder %s296, %s289
                %s301 = sphi 0, %s314
                %s302 = sphi %s292, %s317
                %s303 = sphi %s294, %s318
              $region50: #{grounded_audio_conv_model.3} parent=39 // loop_header_branch
                %300 = sbr.rel (%p297) target = $region54
              $region51: #{grounded_audio_conv_model.3} parent=39 // loop_body
                %v304 = vld [vmem:[%s302] sm:%s206]
                %305 = vst [vmem:[%s303] sm:%s206] %v304
                %v306 = vld [vmem:[%s302 + $0x48] sm:%s206]
                %307 = vst [vmem:[%s303 + $0x40] sm:%s206] %v306
                %v308 = vld [vmem:[%s302 + $0x90] sm:%s206]
                %309 = vst [vmem:[%s303 + $0x80] sm:%s206] %v308
                %v310 = vld [vmem:[%s302 + $0xd8] sm:%s206]
                %311 = vst [vmem:[%s303 + $0xc0] sm:%s206] %v310
                %s312 = sadd.s32 1, %s301
                %p313 = scmp.ge.s32.totalorder %s312, %s289
                %s314 = scalar_select %p313, 0, %s312
                %s315 = smul.u32 %s314, 4
                %s316 = smul.u32 %s314, 4
                %s317 = scalar_lea.vmem %s292, %s315
                %s318 = scalar_lea.vmem %s294, %s316 [#allocation2]
              $region52: #{grounded_audio_conv_model.3} parent=39 // loop_footer
                %s298 = sadd.s32 %s296, 1
              $region53: #{grounded_audio_conv_model.3} parent=39 // loop_footer_branch
                %295 = sbr.rel target = $region49
              $region54: #{grounded_audio_conv_model.3} parent=39 // loop_exit
                _
            $region40: #{grounded_audio_conv_model.3} parent=31 // pred_fallthru
              _
          $region32: #{grounded_audio_conv_model.3} parent=27 // pred_fallthru
            _
          %475 = vnop
        $region28: #{grounded_audio_conv_model.3} parent=23 // pred_fallthru
          _
        // Predicated region
        $region87: #{grounded_audio_conv_model.3} parent=23 // pred_check
          %p476 = pneg %p76
        $region88: #{grounded_audio_conv_model.3} parent=23 // pred_check_branch
          %478 = sbr.rel (%p476) target = $region90
        $region89: #{grounded_audio_conv_model.3} parent=23 // pred_region
          %s479 = sand.u32 %s66, 1
          %s480 = sand.u32 %s66, 1
          %s481 = smul.addr %s480, 32
          %s482 = scalar_lea.vmem [#allocation3], %s481
          %s483 = sadd.s32 %s18, 1
          %s484 = smul.u32 %s483, 8
          %s485 = smul.u32 4, %s17
          %s486 = smul.addr %s484, 2
          %s487 = smul.addr %s485, 18
          %s488 = sadd.s32 %s486, %s487
          %s489 = smul.addr %s488, 4
          %s490 = scalar_lea.vmem %s1, %s489
          // Predicated region
          $region91: #{grounded_audio_conv_model.3} parent=89 // pred_check
            _
          $region92: #{grounded_audio_conv_model.3} parent=89 // pred_check_branch
            %492 = sbr.rel (0) target = $region94
          $region93: #{grounded_audio_conv_model.3} parent=89 // pred_region
            // Predicated region
            $region95: #{grounded_audio_conv_model.3} parent=93 // pred_check
              _
            $region96: #{grounded_audio_conv_model.3} parent=93 // pred_check_branch
              %494 = sbr.rel target = $region98
            $region97: #{grounded_audio_conv_model.3} parent=93 // pred_region
              // Predicated region
              $region110: #{grounded_audio_conv_model.3} parent=97 // pred_check
                _
              $region111: #{grounded_audio_conv_model.3} parent=97 // pred_check_branch
                %524 = sbr.rel (0) target = $region113
              $region112: #{grounded_audio_conv_model.3} parent=97 // pred_region
                loop: start=0, step=1, limit=1
                $region114: #{grounded_audio_conv_model.3} parent=112 // loop_pre_header
                  _
                $region115: #{grounded_audio_conv_model.3} parent=112 // loop_header
                  %s526 = sphi 0, %s530
                  %p527 = scmp.ge.s32.totalorder %s526, 1
                  %s531 = sphi %s490, %s490
                  %s532 = sphi %s482, %s482
                $region116: #{grounded_audio_conv_model.3} parent=112 // loop_header_branch
                  %529 = sbr.rel (%p527) target = $region120
                $region117: #{grounded_audio_conv_model.3} parent=112 // loop_body
                  _
                $region118: #{grounded_audio_conv_model.3} parent=112 // loop_footer
                  %s530 = sadd.s32 1, %s526
                $region119: #{grounded_audio_conv_model.3} parent=112 // loop_footer_branch
                  %525 = sbr.rel target = $region115
                $region120: #{grounded_audio_conv_model.3} parent=112 // loop_exit
                  _
                %s534 = ssub.s32 16, 1
                loop: start=0, step=1, limit=1
                $region121: #{grounded_audio_conv_model.3} parent=112 // loop_pre_header
                  _
                $region122: #{grounded_audio_conv_model.3} parent=112 // loop_header
                  %s536 = sphi 0, %s540
                  %p537 = scmp.ge.s32.totalorder %s536, 1
                  %s541 = sphi %s490, %s490
                  %s542 = sphi %s482, %s482
                $region123: #{grounded_audio_conv_model.3} parent=112 // loop_header_branch
                  %539 = sbr.rel (%p537) target = $region127
                $region124: #{grounded_audio_conv_model.3} parent=112 // loop_body
                  %v543 = vld [vmem:[%s541] sm:%s534]
                  %544 = vst [vmem:[%s542] sm:%s534] %v543
                  %v545 = vld [vmem:[%s541 + $0x4] sm:%s534]
                  %546 = vst [vmem:[%s542 + $0x4] sm:%s534] %v545
                  %v547 = vld [vmem:[%s541 + $0x48] sm:%s534]
                  %548 = vst [vmem:[%s542 + $0x8] sm:%s534] %v547
                  %v549 = vld [vmem:[%s541 + $0x4c] sm:%s534]
                  %550 = vst [vmem:[%s542 + $0xc] sm:%s534] %v549
                  %v551 = vld [vmem:[%s541 + $0x90] sm:%s534]
                  %552 = vst [vmem:[%s542 + $0x10] sm:%s534] %v551
                  %v553 = vld [vmem:[%s541 + $0x94] sm:%s534]
                  %554 = vst [vmem:[%s542 + $0x14] sm:%s534] %v553
                  %v555 = vld [vmem:[%s541 + $0xd8] sm:%s534]
                  %556 = vst [vmem:[%s542 + $0x18] sm:%s534] %v555
                  %v557 = vld [vmem:[%s541 + $0xdc] sm:%s534]
                  %558 = vst [vmem:[%s542 + $0x1c] sm:%s534] %v557
                $region125: #{grounded_audio_conv_model.3} parent=112 // loop_footer
                  %s540 = sadd.s32 1, %s536
                $region126: #{grounded_audio_conv_model.3} parent=112 // loop_footer_branch
                  %535 = sbr.rel target = $region122
                $region127: #{grounded_audio_conv_model.3} parent=112 // loop_exit
                  _
              $region113: #{grounded_audio_conv_model.3} parent=97 // pred_fallthru
                _
            $region98: #{grounded_audio_conv_model.3} parent=93 // pred_fallthru
              _
            // Predicated region
            $region99: #{grounded_audio_conv_model.3} parent=93 // pred_check
              _
            $region100: #{grounded_audio_conv_model.3} parent=93 // pred_check_branch
              %496 = sbr.rel (0) target = $region102
            $region101: #{grounded_audio_conv_model.3} parent=93 // pred_region
              %s498 = ssub.s32 16, 1
              loop: start=0, step=1, limit=1
              $region103: #{grounded_audio_conv_model.3} parent=101 // loop_pre_header
                _
              $region104: #{grounded_audio_conv_model.3} parent=101 // loop_header
                %s500 = sphi 0, %s504
                %p501 = scmp.ge.s32.totalorder %s500, 1
                %s505 = sphi %s490, %s490
                %s506 = sphi %s482, %s482
              $region105: #{grounded_audio_conv_model.3} parent=101 // loop_header_branch
                %503 = sbr.rel (%p501) target = $region109
              $region106: #{grounded_audio_conv_model.3} parent=101 // loop_body
                %v507 = vld [vmem:[%s505] sm:%s498]
                %508 = vst [vmem:[%s506] sm:%s498] %v507
                %v509 = vld [vmem:[%s505 + $0x4] sm:%s498]
                %510 = vst [vmem:[%s506 + $0x4] sm:%s498] %v509
                %v511 = vld [vmem:[%s505 + $0x48] sm:%s498]
                %512 = vst [vmem:[%s506 + $0x8] sm:%s498] %v511
                %v513 = vld [vmem:[%s505 + $0x4c] sm:%s498]
                %514 = vst [vmem:[%s506 + $0xc] sm:%s498] %v513
                %v515 = vld [vmem:[%s505 + $0x90] sm:%s498]
                %516 = vst [vmem:[%s506 + $0x10] sm:%s498] %v515
                %v517 = vld [vmem:[%s505 + $0x94] sm:%s498]
                %518 = vst [vmem:[%s506 + $0x14] sm:%s498] %v517
                %v519 = vld [vmem:[%s505 + $0xd8] sm:%s498]
                %520 = vst [vmem:[%s506 + $0x18] sm:%s498] %v519
                %v521 = vld [vmem:[%s505 + $0xdc] sm:%s498]
                %522 = vst [vmem:[%s506 + $0x1c] sm:%s498] %v521
              $region107: #{grounded_audio_conv_model.3} parent=101 // loop_footer
                %s504 = sadd.s32 1, %s500
              $region108: #{grounded_audio_conv_model.3} parent=101 // loop_footer_branch
                %499 = sbr.rel target = $region104
              $region109: #{grounded_audio_conv_model.3} parent=101 // loop_exit
                _
            $region102: #{grounded_audio_conv_model.3} parent=93 // pred_fallthru
              _
          $region94: #{grounded_audio_conv_model.3} parent=89 // pred_fallthru
            _
          %559 = vnop
        $region90: #{grounded_audio_conv_model.3} parent=23 // pred_fallthru
          _
      $region24: #{grounded_audio_conv_model.3} parent=5 // pred_fallthru
        _
      %p560 = scmp.le.s32.totalorder 1, %s10
      %p561 = scmp.lt.s32.totalorder %s10, 3
      %p562 = pnand %p560, %p561
      %p563 = pneg %p562
      // Predicated region
      $region128: #{grounded_audio_conv_model.3} parent=5 // pred_check
        _
      $region129: #{grounded_audio_conv_model.3} parent=5 // pred_check_branch
        %565 = sbr.rel (%p562) target = $region131
      $region130: #{grounded_audio_conv_model.3} parent=5 // pred_region
        %s566 = ssub.s32 %s10, 1
        %s567 = sand.u32 %s37, 1
        %s568 = sand.u32 %s37, 1
        %s569 = smul.addr %s568, 256
        %s570 = scalar_lea.vmem [#allocation2], %s569
        // Predicated region
        $region132: #{grounded_audio_conv_model.3} parent=130 // pred_check
          %p571 = pneg %p50
        $region133: #{grounded_audio_conv_model.3} parent=130 // pred_check_branch
          %573 = sbr.rel (%p571) target = $region135
        $region134: #{grounded_audio_conv_model.3} parent=130 // pred_region
          _
        $region135: #{grounded_audio_conv_model.3} parent=130 // pred_fallthru
          _
        %s574 = sand.u32 %s69, 1
        %s575 = sand.u32 %s69, 1
        %s576 = smul.addr %s575, 32
        %s577 = scalar_lea.vmem [#allocation3], %s576
        // Predicated region
        $region136: #{grounded_audio_conv_model.3} parent=130 // pred_check
          %p578 = pneg %p82
        $region137: #{grounded_audio_conv_model.3} parent=130 // pred_check_branch
          %580 = sbr.rel (%p578) target = $region139
        $region138: #{grounded_audio_conv_model.3} parent=130 // pred_region
          _
        $region139: #{grounded_audio_conv_model.3} parent=130 // pred_fallthru
          _
        %s581 = sand.u32 %s37, 1
        %s582 = sand.u32 %s37, 1
        %s583 = smul.addr %s582, 256
        %s584 = scalar_lea.vmem [#allocation2], %s583
        %p585 = pneg %p50
        %p586 = pneg %p47
        %s587 = sand.u32 %s69, 1
        %s588 = sand.u32 %s69, 1
        %s589 = smul.addr %s588, 32
        %s590 = scalar_lea.vmem [#allocation3], %s589
        %p591 = pneg %p82
        %p592 = pneg %p79
        %p593 = pneg %p103
        %p594 = pneg %p100
        %p595 = pneg %p124
        %p596 = pneg %p121
        %p597 = pneg %p152
        %p598 = pneg %p149
        %s599 = smul.u32 8, %s20
        %p600 = scmp.lt.s32.totalorder %s19, 1
        %s601 = scalar_select %p600, %s19, 1
        %p602 = scmp.lt.s32.totalorder %s599, 7
        %s603 = scalar_select %p602, %s599, 7
        %s604 = smul.addr %s601, 8
        %s605 = sadd.s32 %s603, %s604
        %s606 = smul.addr %s605, 4
        %s607 = scalar_lea.vmem %s4, %s606
        %s608 = smul.u32 4, %s19
        %s609 = smul.u32 8, %s20
        %s610 = ssub.s32 9, %s609
        %p611 = scmp.lt.s32.totalorder %s610, 8
        %s612 = scalar_select %p611, %s610, 8
        %s613 = smul.u32 16, %s612
        %s614 = smul.u32 %s613, 2
        %s615 = sadd.s32 %s20, 1
        %s616 = smul.u32 %s615, 8
        %s617 = smul.u32 4, %s19
        %s618 = smul.u32 8, %s20
        %p619 = scmp.lt.s32.totalorder %s19, 1
        %s620 = scalar_select %p619, %s19, 1
        %p621 = scmp.lt.s32.totalorder %s618, 7
        %s622 = scalar_select %p621, %s618, 7
        %s623 = smul.addr %s620, 8
        %s624 = sadd.s32 %s622, %s623
        %s625 = smul.addr %s624, 4
        %s626 = scalar_lea.vmem %s4, %s625
        %s627 = smul.u32 8, %s20
        %v629 = vld [vmem:[%s570] sm:$0xf]
        %v630 = vld [vmem:[%s570 + $0x4] sm:$0x1]
        %v631 = vld [vmem:[%s570 + $0x8] sm:$0xf]
        %v632 = vld [vmem:[%s570 + $0xc] sm:$0x1]
        %v633 = vld [vmem:[%s570 + $0x10] sm:$0xf]
        %v634 = vld [vmem:[%s570 + $0x14] sm:$0x1]
        %v635 = vld [vmem:[%s570 + $0x18] sm:$0xf]
        %v636 = vld [vmem:[%s570 + $0x1c] sm:$0x1]
        %v637 = vld [vmem:[%s570 + $0x20] sm:$0xf]
        %v638 = vld [vmem:[%s570 + $0x24] sm:$0x1]
        %v639 = vld [vmem:[%s570 + $0x28] sm:$0xf]
        %v640 = vld [vmem:[%s570 + $0x2c] sm:$0x1]
        %v641 = vld [vmem:[%s570 + $0x30] sm:$0xf]
        %v642 = vld [vmem:[%s570 + $0x34] sm:$0x1]
        %v643 = vld [vmem:[%s570 + $0x38] sm:$0xf]
        %v644 = vld [vmem:[%s570 + $0x3c] sm:$0x1]
        %v645 = vld [vmem:[%s570 + $0x40] sm:$0xf]
        %v646 = vld [vmem:[%s570 + $0x48] sm:$0xf]
        %v647 = vld [vmem:[%s570 + $0x50] sm:$0xf]
        %v648 = vld [vmem:[%s570 + $0x58] sm:$0xf]
        %v649 = vld [vmem:[%s570 + $0x60] sm:$0xf]
        %v650 = vld [vmem:[%s570 + $0x68] sm:$0xf]
        %v651 = vld [vmem:[%s570 + $0x70] sm:$0xf]
        %v652 = vld [vmem:[%s570 + $0x78] sm:$0xf]
        %v653 = vld [vmem:[%s570 + $0x80] sm:$0xf]
        %v654 = vld [vmem:[%s570 + $0x84] sm:$0x1]
        %v655 = vld [vmem:[%s570 + $0x88] sm:$0xf]
        %v656 = vld [vmem:[%s570 + $0x8c] sm:$0x1]
        %v657 = vld [vmem:[%s570 + $0x90] sm:$0xf]
        %v658 = vld [vmem:[%s570 + $0x94] sm:$0x1]
        %v659 = vld [vmem:[%s570 + $0x98] sm:$0xf]
        %v660 = vld [vmem:[%s570 + $0x9c] sm:$0x1]
        %v661 = vld [vmem:[%s570 + $0xa0] sm:$0xf]
        %v662 = vld [vmem:[%s570 + $0xa4] sm:$0x1]
        %v663 = vld [vmem:[%s570 + $0xa8] sm:$0xf]
        %v664 = vld [vmem:[%s570 + $0xac] sm:$0x1]
        %v665 = vld [vmem:[%s570 + $0xb0] sm:$0xf]
        %v666 = vld [vmem:[%s570 + $0xb4] sm:$0x1]
        %v667 = vld [vmem:[%s570 + $0xb8] sm:$0xf]
        %v668 = vld [vmem:[%s570 + $0xbc] sm:$0x1]
        %v669 = vld [vmem:[%s570 + $0xc0] sm:$0xf]
        %v670 = vld [vmem:[%s570 + $0xc8] sm:$0xf]
        %v671 = vld [vmem:[%s570 + $0xd0] sm:$0xf]
        %v672 = vld [vmem:[%s570 + $0xd8] sm:$0xf]
        %v673 = vld [vmem:[%s570 + $0xe0] sm:$0xf]
        %v674 = vld [vmem:[%s570 + $0xe8] sm:$0xf]
        %v675 = vld [vmem:[%s570 + $0xf0] sm:$0xf]
        %v676 = vld [vmem:[%s570 + $0xf8] sm:$0xf]
        %v677 = vld [vmem:[%s577] sm:$0xf]
        %v678 = vld [vmem:[%s577 + $0x4] sm:$0x1]
        %v679 = vld [vmem:[%s577 + $0x8] sm:$0xf]
        %v680 = vld [vmem:[%s2] sm:$0x3]
        %s681 = scalar_lea.vmem %s2, 2
        %v682 = vld [vmem:[%s681] sm:$0x3]
        %v691 = vunpack.c.l.b16 %v645
        %v692 = vunpack.c.l.b16 %v646
        %v693 = vunpack.c.l.b16 %v647
        %v694 = vunpack.c.l.b16 %v648
        %v695 = vunpack.c.l.b16 %v649
        %v696 = vunpack.c.l.b16 %v650
        %v697 = vunpack.c.l.b16 %v651
        %v698 = vunpack.c.l.b16 %v652
        %v699 = vpack.c.b16 %v692, %v691
        %v700 = vpack.c.b16 %v694, %v693
        %v701 = vpack.c.b16 %v696, %v695
        %v702 = vpack.c.b16 %v698, %v697
        %vm703 = vcmask 31744
        %v705 = vsel %vm703, %v699, 0
        %v708 = vsel %vm703, %v700, 0
        %v711 = vsel %vm703, %v701, 0
        %v714 = vsel %vm703, %v702, 0
        %vm716 = vcmask 1041408
        %v718 = vsel %vm716, %v682, 0
        %720 = vmatpush.bf16.msra.mxu0 0
        %721 = vmatpush.bf16.msra.mxu0 0
        %722 = vmatpush.bf16.msra.mxu0 0
        %723 = vmatpush.bf16.msra.mxu0 0
        %724 = vmatpush.bf16.msra.mxu0 0
        %725 = vmatpush.bf16.msra.mxu0 0
        %726 = vmatpush.bf16.msra.mxu0 0
        %727 = vmatpush.bf16.msra.mxu0 %v718
        %728 = vmatmul.bf16.gmra.mxu0 %v705
        %v729 = vpop.f32.mrf.mxu0
        %v730 = vadd.f32 0.0, %v729
        %v731 = vpop.f32.mrf.mxu0
        %v732 = vadd.f32 0.0, %v731
        %733 = vmatmul.bf16.gmra.mxu0 %v708
        %v734 = vpop.f32.mrf.mxu0
        %v735 = vadd.f32 0.0, %v734
        %v736 = vpop.f32.mrf.mxu0
        %v737 = vadd.f32 0.0, %v736
        %738 = vmatmul.bf16.gmra.mxu0 %v711
        %v739 = vpop.f32.mrf.mxu0
        %v740 = vadd.f32 0.0, %v739
        %v741 = vpop.f32.mrf.mxu0
        %v742 = vadd.f32 0.0, %v741
        %743 = vmatmul.bf16.gmra.mxu0 %v714
        %v744 = vpop.f32.mrf.mxu0
        %v745 = vadd.f32 0.0, %v744
        %v746 = vpop.f32.mrf.mxu0
        %v747 = vadd.f32 0.0, %v746
        %748 = vdwg.mxu0
        %v757 = vunpack.c.l.b16 %v629
        %v758 = vunpack.c.l.b16 %v631
        %v759 = vunpack.c.l.b16 %v633
        %v760 = vunpack.c.l.b16 %v635
        %v761 = vunpack.c.l.b16 %v637
        %v762 = vunpack.c.l.b16 %v639
        %v763 = vunpack.c.l.b16 %v641
        %v764 = vunpack.c.l.b16 %v643
        %v765 = vpack.c.b16 %v758, %v757
        %v766 = vpack.c.b16 %v760, %v759
        %v767 = vpack.c.b16 %v762, %v761
        %v768 = vpack.c.b16 %v764, %v763
        %v770 = vsel %vm703, %v765, 0
        %v773 = vsel %vm703, %v766, 0
        %v776 = vsel %vm703, %v767, 0
        %v779 = vsel %vm703, %v768, 0
        %v782 = vsel %vm716, %v680, 0
        %784 = vmatpush.bf16.msra.mxu0 0
        %785 = vmatpush.bf16.msra.mxu0 0
        %786 = vmatpush.bf16.msra.mxu0 0
        %787 = vmatpush.bf16.msra.mxu0 0
        %788 = vmatpush.bf16.msra.mxu0 0
        %789 = vmatpush.bf16.msra.mxu0 0
        %790 = vmatpush.bf16.msra.mxu0 0
        %791 = vmatpush.bf16.msra.mxu0 %v782
        %792 = vmatmul.bf16.gmra.mxu0 %v770
        %v793 = vpop.f32.mrf.mxu0
        %v794 = vadd.f32 %v730, %v793
        %v795 = vpop.f32.mrf.mxu0
        %v796 = vadd.f32 %v732, %v795
        %797 = vmatmul.bf16.gmra.mxu0 %v773
        %v798 = vpop.f32.mrf.mxu0
        %v799 = vadd.f32 %v735, %v798
        %v800 = vpop.f32.mrf.mxu0
        %v801 = vadd.f32 %v737, %v800
        %802 = vmatmul.bf16.gmra.mxu0 %v776
        %v803 = vpop.f32.mrf.mxu0
        %v804 = vadd.f32 %v740, %v803
        %v805 = vpop.f32.mrf.mxu0
        %v806 = vadd.f32 %v742, %v805
        %807 = vmatmul.bf16.gmra.mxu0 %v779
        %v808 = vpop.f32.mrf.mxu0
        %v809 = vadd.f32 %v745, %v808
        %v810 = vpop.f32.mrf.mxu0
        %v811 = vadd.f32 %v747, %v810
        %812 = vdwg.mxu0
        %vm813 = vsmask.f32 3328
        %vm814 = vsmask.f32 7440
        %vm815 = vmor %vm813, %vm814
        %v817 = vshrl.u32 %v629, 16
        %v819 = vrot.slane %v817, 4
        %v820 = vshll.u32 %v629, 16
        %v822 = vrot.slane %v820, 5
        %v823 = vor.u32 %v819, %v822
        %v824 = vrot.slane %v823, 4
        %v826 = vshll.u32 %v630, 16
        %v828 = vrot.slane %v826, 5
        %v829 = vsel %vm815, %v824, %v828
        %v831 = vshrl.u32 %v631, 16
        %v833 = vrot.slane %v831, 4
        %v834 = vshll.u32 %v631, 16
        %v836 = vrot.slane %v834, 5
        %v837 = vor.u32 %v833, %v836
        %v838 = vrot.slane %v837, 4
        %v840 = vshll.u32 %v632, 16
        %v842 = vrot.slane %v840, 5
        %v843 = vsel %vm815, %v838, %v842
        %v845 = vshrl.u32 %v633, 16
        %v847 = vrot.slane %v845, 4
        %v848 = vshll.u32 %v633, 16
        %v850 = vrot.slane %v848, 5
        %v851 = vor.u32 %v847, %v850
        %v852 = vrot.slane %v851, 4
        %v854 = vshll.u32 %v634, 16
        %v856 = vrot.slane %v854, 5
        %v857 = vsel %vm815, %v852, %v856
        %v859 = vshrl.u32 %v635, 16
        %v861 = vrot.slane %v859, 4
        %v862 = vshll.u32 %v635, 16
        %v864 = vrot.slane %v862, 5
        %v865 = vor.u32 %v861, %v864
        %v866 = vrot.slane %v865, 4
        %v868 = vshll.u32 %v636, 16
        %v870 = vrot.slane %v868, 5
        %v871 = vsel %vm815, %v866, %v870
        %v873 = vshrl.u32 %v637, 16
        %v875 = vrot.slane %v873, 4
        %v876 = vshll.u32 %v637, 16
        %v878 = vrot.slane %v876, 5
        %v879 = vor.u32 %v875, %v878
        %v880 = vrot.slane %v879, 4
        %v882 = vshll.u32 %v638, 16
        %v884 = vrot.slane %v882, 5
        %v885 = vsel %vm815, %v880, %v884
        %v887 = vshrl.u32 %v639, 16
        %v889 = vrot.slane %v887, 4
        %v890 = vshll.u32 %v639, 16
        %v892 = vrot.slane %v890, 5
        %v893 = vor.u32 %v889, %v892
        %v894 = vrot.slane %v893, 4
        %v896 = vshll.u32 %v640, 16
        %v898 = vrot.slane %v896, 5
        %v899 = vsel %vm815, %v894, %v898
        %v901 = vshrl.u32 %v641, 16
        %v903 = vrot.slane %v901, 4
        %v904 = vshll.u32 %v641, 16
        %v906 = vrot.slane %v904, 5
        %v907 = vor.u32 %v903, %v906
        %v908 = vrot.slane %v907, 4
        %v910 = vshll.u32 %v642, 16
        %v912 = vrot.slane %v910, 5
        %v913 = vsel %vm815, %v908, %v912
        %v915 = vshrl.u32 %v643, 16
        %v917 = vrot.slane %v915, 4
        %v918 = vshll.u32 %v643, 16
        %v920 = vrot.slane %v918, 5
        %v921 = vor.u32 %v917, %v920
        %v922 = vrot.slane %v921, 4
        %v924 = vshll.u32 %v644, 16
        %v926 = vrot.slane %v924, 5
        %v927 = vsel %vm815, %v922, %v926
        %s928 = scalar_lea.vmem %s2, 4
        %v929 = vld [vmem:[%s928] sm:$0x3]
        %v930 = vunpack.c.l.b16 %v829
        %v931 = vunpack.c.l.b16 %v843
        %v932 = vunpack.c.l.b16 %v857
        %v933 = vunpack.c.l.b16 %v871
        %v934 = vunpack.c.l.b16 %v885
        %v935 = vunpack.c.l.b16 %v899
        %v936 = vunpack.c.l.b16 %v913
        %v937 = vunpack.c.l.b16 %v927
        %v938 = vpack.c.b16 %v931, %v930
        %v939 = vpack.c.b16 %v933, %v932
        %v940 = vpack.c.b16 %v935, %v934
        %v941 = vpack.c.b16 %v937, %v936
        %v943 = vsel %vm703, %v938, 0
        %v946 = vsel %vm703, %v939, 0
        %v949 = vsel %vm703, %v940, 0
        %v952 = vsel %vm703, %v941, 0
        %v955 = vsel %vm716, %v929, 0
        %957 = vmatpush.bf16.msra.mxu0 0
        %958 = vmatpush.bf16.msra.mxu0 0
        %959 = vmatpush.bf16.msra.mxu0 0
        %960 = vmatpush.bf16.msra.mxu0 0
        %961 = vmatpush.bf16.msra.mxu0 0
        %962 = vmatpush.bf16.msra.mxu0 0
        %963 = vmatpush.bf16.msra.mxu0 0
        %964 = vmatpush.bf16.msra.mxu0 %v955
        %965 = vmatmul.bf16.gmra.mxu0 %v943
        %v966 = vpop.f32.mrf.mxu0
        %v967 = vadd.f32 0.0, %v966
        %v968 = vpop.f32.mrf.mxu0
        %v969 = vadd.f32 0.0, %v968
        %970 = vmatmul.bf16.gmra.mxu0 %v946
        %v971 = vpop.f32.mrf.mxu0
        %v972 = vadd.f32 0.0, %v971
        %v973 = vpop.f32.mrf.mxu0
        %v974 = vadd.f32 0.0, %v973
        %975 = vmatmul.bf16.gmra.mxu0 %v949
        %v976 = vpop.f32.mrf.mxu0
        %v977 = vadd.f32 0.0, %v976
        %v978 = vpop.f32.mrf.mxu0
        %v979 = vadd.f32 0.0, %v978
        %980 = vmatmul.bf16.gmra.mxu0 %v952
        %v981 = vpop.f32.mrf.mxu0
        %v982 = vadd.f32 0.0, %v981
        %v983 = vpop.f32.mrf.mxu0
        %v984 = vadd.f32 0.0, %v983
        %985 = vdwg.mxu0
        %v986 = vadd.f32 %v794, %v967
        %v987 = vadd.f32 %v796, %v969
        %v988 = vadd.f32 %v799, %v972
        %v989 = vadd.f32 %v801, %v974
        %v990 = vadd.f32 %v804, %v977
        %v991 = vadd.f32 %v806, %v979
        %v992 = vadd.f32 %v809, %v982
        %v993 = vadd.f32 %v811, %v984
        %s994 = scalar_lea.vmem %s2, 6
        %v995 = vld [vmem:[%s994] sm:$0x3]
        %v1004 = vunpack.c.l.b16 %v653
        %v1005 = vunpack.c.l.b16 %v655
        %v1006 = vunpack.c.l.b16 %v657
        %v1007 = vunpack.c.l.b16 %v659
        %v1008 = vunpack.c.l.b16 %v661
        %v1009 = vunpack.c.l.b16 %v663
        %v1010 = vunpack.c.l.b16 %v665
        %v1011 = vunpack.c.l.b16 %v667
        %v1012 = vpack.c.b16 %v1005, %v1004
        %v1013 = vpack.c.b16 %v1007, %v1006
        %v1014 = vpack.c.b16 %v1009, %v1008
        %v1015 = vpack.c.b16 %v1011, %v1010
        %v1017 = vsel %vm703, %v1012, 0
        %v1020 = vsel %vm703, %v1013, 0
        %v1023 = vsel %vm703, %v1014, 0
        %v1026 = vsel %vm703, %v1015, 0
        %v1029 = vsel %vm716, %v995, 0
        %1031 = vmatpush.bf16.msra.mxu0 0
        %1032 = vmatpush.bf16.msra.mxu0 0
        %1033 = vmatpush.bf16.msra.mxu0 0
        %1034 = vmatpush.bf16.msra.mxu0 0
        %1035 = vmatpush.bf16.msra.mxu0 0
        %1036 = vmatpush.bf16.msra.mxu0 0
        %1037 = vmatpush.bf16.msra.mxu0 0
        %1038 = vmatpush.bf16.msra.mxu0 %v1029
        %1039 = vmatmul.bf16.gmra.mxu0 %v1017
        %v1040 = vpop.f32.mrf.mxu0
        %v1041 = vadd.f32 0.0, %v1040
        %v1042 = vpop.f32.mrf.mxu0
        %v1043 = vadd.f32 0.0, %v1042
        %1044 = vmatmul.bf16.gmra.mxu0 %v1020
        %v1045 = vpop.f32.mrf.mxu0
        %v1046 = vadd.f32 0.0, %v1045
        %v1047 = vpop.f32.mrf.mxu0
        %v1048 = vadd.f32 0.0, %v1047
        %1049 = vmatmul.bf16.gmra.mxu0 %v1023
        %v1050 = vpop.f32.mrf.mxu0
        %v1051 = vadd.f32 0.0, %v1050
        %v1052 = vpop.f32.mrf.mxu0
        %v1053 = vadd.f32 0.0, %v1052
        %1054 = vmatmul.bf16.gmra.mxu0 %v1026
        %v1055 = vpop.f32.mrf.mxu0
        %v1056 = vadd.f32 0.0, %v1055
        %v1057 = vpop.f32.mrf.mxu0
        %v1058 = vadd.f32 0.0, %v1057
        %1059 = vdwg.mxu0
        %v1060 = vadd.f32 %v986, %v1041
        %v1061 = vadd.f32 %v987, %v1043
        %v1062 = vadd.f32 %v988, %v1046
        %v1063 = vadd.f32 %v989, %v1048
        %v1064 = vadd.f32 %v990, %v1051
        %v1065 = vadd.f32 %v991, %v1053
        %v1066 = vadd.f32 %v992, %v1056
        %v1067 = vadd.f32 %v993, %v1058
        %s1068 = scalar_lea.vmem %s2, 8
        %v1069 = vld [vmem:[%s1068] sm:$0x3]
        %v1078 = vunpack.c.l.b16 %v669
        %v1079 = vunpack.c.l.b16 %v670
        %v1080 = vunpack.c.l.b16 %v671
        %v1081 = vunpack.c.l.b16 %v672
        %v1082 = vunpack.c.l.b16 %v673
        %v1083 = vunpack.c.l.b16 %v674
        %v1084 = vunpack.c.l.b16 %v675
        %v1085 = vunpack.c.l.b16 %v676
        %v1086 = vpack.c.b16 %v1079, %v1078
        %v1087 = vpack.c.b16 %v1081, %v1080
        %v1088 = vpack.c.b16 %v1083, %v1082
        %v1089 = vpack.c.b16 %v1085, %v1084
        %v1091 = vsel %vm703, %v1086, 0
        %v1094 = vsel %vm703, %v1087, 0
        %v1097 = vsel %vm703, %v1088, 0
        %v1100 = vsel %vm703, %v1089, 0
        %v1103 = vsel %vm716, %v1069, 0
        %1105 = vmatpush.bf16.msra.mxu0 0
        %1106 = vmatpush.bf16.msra.mxu0 0
        %1107 = vmatpush.bf16.msra.mxu0 0
        %1108 = vmatpush.bf16.msra.mxu0 0
        %1109 = vmatpush.bf16.msra.mxu0 0
        %1110 = vmatpush.bf16.msra.mxu0 0
        %1111 = vmatpush.bf16.msra.mxu0 0
        %1112 = vmatpush.bf16.msra.mxu0 %v1103
        %1113 = vmatmul.bf16.gmra.mxu0 %v1091
        %v1114 = vpop.f32.mrf.mxu0
        %v1115 = vadd.f32 0.0, %v1114
        %v1116 = vpop.f32.mrf.mxu0
        %v1117 = vadd.f32 0.0, %v1116
        %1118 = vmatmul.bf16.gmra.mxu0 %v1094
        %v1119 = vpop.f32.mrf.mxu0
        %v1120 = vadd.f32 0.0, %v1119
        %v1121 = vpop.f32.mrf.mxu0
        %v1122 = vadd.f32 0.0, %v1121
        %1123 = vmatmul.bf16.gmra.mxu0 %v1097
        %v1124 = vpop.f32.mrf.mxu0
        %v1125 = vadd.f32 0.0, %v1124
        %v1126 = vpop.f32.mrf.mxu0
        %v1127 = vadd.f32 0.0, %v1126
        %1128 = vmatmul.bf16.gmra.mxu0 %v1100
        %v1129 = vpop.f32.mrf.mxu0
        %v1130 = vadd.f32 0.0, %v1129
        %v1131 = vpop.f32.mrf.mxu0
        %v1132 = vadd.f32 0.0, %v1131
        %1133 = vdwg.mxu0
        %v1134 = vadd.f32 %v1060, %v1115
        %v1135 = vadd.f32 %v1061, %v1117
        %v1136 = vadd.f32 %v1062, %v1120
        %v1137 = vadd.f32 %v1063, %v1122
        %v1138 = vadd.f32 %v1064, %v1125
        %v1139 = vadd.f32 %v1065, %v1127
        %v1140 = vadd.f32 %v1066, %v1130
        %v1141 = vadd.f32 %v1067, %v1132
        %v1143 = vshrl.u32 %v653, 16
        %v1145 = vrot.slane %v1143, 4
        %v1146 = vshll.u32 %v653, 16
        %v1148 = vrot.slane %v1146, 5
        %v1149 = vor.u32 %v1145, %v1148
        %v1150 = vrot.slane %v1149, 4
        %v1152 = vshll.u32 %v654, 16
        %v1154 = vrot.slane %v1152, 5
        %v1155 = vsel %vm815, %v1150, %v1154
        %v1157 = vshrl.u32 %v655, 16
        %v1159 = vrot.slane %v1157, 4
        %v1160 = vshll.u32 %v655, 16
        %v1162 = vrot.slane %v1160, 5
        %v1163 = vor.u32 %v1159, %v1162
        %v1164 = vrot.slane %v1163, 4
        %v1166 = vshll.u32 %v656, 16
        %v1168 = vrot.slane %v1166, 5
        %v1169 = vsel %vm815, %v1164, %v1168
        %v1171 = vshrl.u32 %v657, 16
        %v1173 = vrot.slane %v1171, 4
        %v1174 = vshll.u32 %v657, 16
        %v1176 = vrot.slane %v1174, 5
        %v1177 = vor.u32 %v1173, %v1176
        %v1178 = vrot.slane %v1177, 4
        %v1180 = vshll.u32 %v658, 16
        %v1182 = vrot.slane %v1180, 5
        %v1183 = vsel %vm815, %v1178, %v1182
        %v1185 = vshrl.u32 %v659, 16
        %v1187 = vrot.slane %v1185, 4
        %v1188 = vshll.u32 %v659, 16
        %v1190 = vrot.slane %v1188, 5
        %v1191 = vor.u32 %v1187, %v1190
        %v1192 = vrot.slane %v1191, 4
        %v1194 = vshll.u32 %v660, 16
        %v1196 = vrot.slane %v1194, 5
        %v1197 = vsel %vm815, %v1192, %v1196
        %v1199 = vshrl.u32 %v661, 16
        %v1201 = vrot.slane %v1199, 4
        %v1202 = vshll.u32 %v661, 16
        %v1204 = vrot.slane %v1202, 5
        %v1205 = vor.u32 %v1201, %v1204
        %v1206 = vrot.slane %v1205, 4
        %v1208 = vshll.u32 %v662, 16
        %v1210 = vrot.slane %v1208, 5
        %v1211 = vsel %vm815, %v1206, %v1210
        %v1213 = vshrl.u32 %v663, 16
        %v1215 = vrot.slane %v1213, 4
        %v1216 = vshll.u32 %v663, 16
        %v1218 = vrot.slane %v1216, 5
        %v1219 = vor.u32 %v1215, %v1218
        %v1220 = vrot.slane %v1219, 4
        %v1222 = vshll.u32 %v664, 16
        %v1224 = vrot.slane %v1222, 5
        %v1225 = vsel %vm815, %v1220, %v1224
        %v1227 = vshrl.u32 %v665, 16
        %v1229 = vrot.slane %v1227, 4
        %v1230 = vshll.u32 %v665, 16
        %v1232 = vrot.slane %v1230, 5
        %v1233 = vor.u32 %v1229, %v1232
        %v1234 = vrot.slane %v1233, 4
        %v1236 = vshll.u32 %v666, 16
        %v1238 = vrot.slane %v1236, 5
        %v1239 = vsel %vm815, %v1234, %v1238
        %v1241 = vshrl.u32 %v667, 16
        %v1243 = vrot.slane %v1241, 4
        %v1244 = vshll.u32 %v667, 16
        %v1246 = vrot.slane %v1244, 5
        %v1247 = vor.u32 %v1243, %v1246
        %v1248 = vrot.slane %v1247, 4
        %v1250 = vshll.u32 %v668, 16
        %v1252 = vrot.slane %v1250, 5
        %v1253 = vsel %vm815, %v1248, %v1252
        %s1254 = scalar_lea.vmem %s2, 10
        %v1255 = vld [vmem:[%s1254] sm:$0x3]
        %v1256 = vunpack.c.l.b16 %v1155
        %v1257 = vunpack.c.l.b16 %v1169
        %v1258 = vunpack.c.l.b16 %v1183
        %v1259 = vunpack.c.l.b16 %v1197
        %v1260 = vunpack.c.l.b16 %v1211
        %v1261 = vunpack.c.l.b16 %v1225
        %v1262 = vunpack.c.l.b16 %v1239
        %v1263 = vunpack.c.l.b16 %v1253
        %v1264 = vpack.c.b16 %v1257, %v1256
        %v1265 = vpack.c.b16 %v1259, %v1258
        %v1266 = vpack.c.b16 %v1261, %v1260
        %v1267 = vpack.c.b16 %v1263, %v1262
        %v1269 = vsel %vm703, %v1264, 0
        %v1272 = vsel %vm703, %v1265, 0
        %v1275 = vsel %vm703, %v1266, 0
        %v1278 = vsel %vm703, %v1267, 0
        %v1281 = vsel %vm716, %v1255, 0
        %1283 = vmatpush.bf16.msra.mxu0 0
        %1284 = vmatpush.bf16.msra.mxu0 0
        %1285 = vmatpush.bf16.msra.mxu0 0
        %1286 = vmatpush.bf16.msra.mxu0 0
        %1287 = vmatpush.bf16.msra.mxu0 0
        %1288 = vmatpush.bf16.msra.mxu0 0
        %1289 = vmatpush.bf16.msra.mxu0 0
        %1290 = vmatpush.bf16.msra.mxu0 %v1281
        %1291 = vmatmul.bf16.gmra.mxu0 %v1269
        %v1292 = vpop.f32.mrf.mxu0
        %v1293 = vadd.f32 0.0, %v1292
        %v1294 = vpop.f32.mrf.mxu0
        %v1295 = vadd.f32 0.0, %v1294
        %1296 = vmatmul.bf16.gmra.mxu0 %v1272
        %v1297 = vpop.f32.mrf.mxu0
        %v1298 = vadd.f32 0.0, %v1297
        %v1299 = vpop.f32.mrf.mxu0
        %v1300 = vadd.f32 0.0, %v1299
        %1301 = vmatmul.bf16.gmra.mxu0 %v1275
        %v1302 = vpop.f32.mrf.mxu0
        %v1303 = vadd.f32 0.0, %v1302
        %v1304 = vpop.f32.mrf.mxu0
        %v1305 = vadd.f32 0.0, %v1304
        %1306 = vmatmul.bf16.gmra.mxu0 %v1278
        %v1307 = vpop.f32.mrf.mxu0
        %v1308 = vadd.f32 0.0, %v1307
        %v1309 = vpop.f32.mrf.mxu0
        %v1310 = vadd.f32 0.0, %v1309
        %1311 = vdwg.mxu0
        %v1312 = vadd.f32 %v1134, %v1293
        %v1313 = vadd.f32 %v1135, %v1295
        %v1314 = vadd.f32 %v1136, %v1298
        %v1315 = vadd.f32 %v1137, %v1300
        %v1316 = vadd.f32 %v1138, %v1303
        %v1317 = vadd.f32 %v1139, %v1305
        %v1318 = vadd.f32 %v1140, %v1308
        %v1319 = vadd.f32 %v1141, %v1310
        %s1320 = scalar_lea.vmem %s2, 12
        %v1321 = vld [vmem:[%s1320] sm:$0x3]
        %v1323 = vunpack.c.l.b16 %v677
        %v1324 = vpack.c.b16 %v759, %v758
        %v1325 = vpack.c.b16 %v761, %v760
        %v1326 = vpack.c.b16 %v763, %v762
        %v1327 = vpack.c.b16 %v1323, %v764
        %v1329 = vsel %vm703, %v1324, 0
        %v1332 = vsel %vm703, %v1325, 0
        %v1335 = vsel %vm703, %v1326, 0
        %v1338 = vsel %vm703, %v1327, 0
        %v1341 = vsel %vm716, %v1321, 0
        %1343 = vmatpush.bf16.msra.mxu0 0
        %1344 = vmatpush.bf16.msra.mxu0 0
        %1345 = vmatpush.bf16.msra.mxu0 0
        %1346 = vmatpush.bf16.msra.mxu0 0
        %1347 = vmatpush.bf16.msra.mxu0 0
        %1348 = vmatpush.bf16.msra.mxu0 0
        %1349 = vmatpush.bf16.msra.mxu0 0
        %1350 = vmatpush.bf16.msra.mxu0 %v1341
        %1351 = vmatmul.bf16.gmra.mxu0 %v1329
        %v1352 = vpop.f32.mrf.mxu0
        %v1353 = vadd.f32 0.0, %v1352
        %v1354 = vpop.f32.mrf.mxu0
        %v1355 = vadd.f32 0.0, %v1354
        %1356 = vmatmul.bf16.gmra.mxu0 %v1332
        %v1357 = vpop.f32.mrf.mxu0
        %v1358 = vadd.f32 0.0, %v1357
        %v1359 = vpop.f32.mrf.mxu0
        %v1360 = vadd.f32 0.0, %v1359
        %1361 = vmatmul.bf16.gmra.mxu0 %v1335
        %v1362 = vpop.f32.mrf.mxu0
        %v1363 = vadd.f32 0.0, %v1362
        %v1364 = vpop.f32.mrf.mxu0
        %v1365 = vadd.f32 0.0, %v1364
        %1366 = vmatmul.bf16.gmra.mxu0 %v1338
        %v1367 = vpop.f32.mrf.mxu0
        %v1368 = vadd.f32 0.0, %v1367
        %v1369 = vpop.f32.mrf.mxu0
        %v1370 = vadd.f32 0.0, %v1369
        %1371 = vdwg.mxu0
        %v1372 = vadd.f32 %v1312, %v1353
        %v1373 = vadd.f32 %v1313, %v1355
        %v1374 = vadd.f32 %v1314, %v1358
        %v1375 = vadd.f32 %v1315, %v1360
        %v1376 = vadd.f32 %v1316, %v1363
        %v1377 = vadd.f32 %v1317, %v1365
        %v1378 = vadd.f32 %v1318, %v1368
        %v1379 = vadd.f32 %v1319, %v1370
        %s1380 = scalar_lea.vmem %s2, 14
        %v1381 = vld [vmem:[%s1380] sm:$0x3]
        %v1383 = vunpack.c.l.b16 %v679
        %v1384 = vpack.c.b16 %v693, %v692
        %v1385 = vpack.c.b16 %v695, %v694
        %v1386 = vpack.c.b16 %v697, %v696
        %v1387 = vpack.c.b16 %v1383, %v698
        %v1389 = vsel %vm703, %v1384, 0
        %v1392 = vsel %vm703, %v1385, 0
        %v1395 = vsel %vm703, %v1386, 0
        %v1398 = vsel %vm703, %v1387, 0
        %v1401 = vsel %vm716, %v1381, 0
        %1403 = vmatpush.bf16.msra.mxu0 0
        %1404 = vmatpush.bf16.msra.mxu0 0
        %1405 = vmatpush.bf16.msra.mxu0 0
        %1406 = vmatpush.bf16.msra.mxu0 0
        %1407 = vmatpush.bf16.msra.mxu0 0
        %1408 = vmatpush.bf16.msra.mxu0 0
        %1409 = vmatpush.bf16.msra.mxu0 0
        %1410 = vmatpush.bf16.msra.mxu0 %v1401
        %1411 = vmatmul.bf16.gmra.mxu0 %v1389
        %v1412 = vpop.f32.mrf.mxu0
        %v1413 = vadd.f32 0.0, %v1412
        %v1414 = vpop.f32.mrf.mxu0
        %v1415 = vadd.f32 0.0, %v1414
        %1416 = vmatmul.bf16.gmra.mxu0 %v1392
        %v1417 = vpop.f32.mrf.mxu0
        %v1418 = vadd.f32 0.0, %v1417
        %v1419 = vpop.f32.mrf.mxu0
        %v1420 = vadd.f32 0.0, %v1419
        %1421 = vmatmul.bf16.gmra.mxu0 %v1395
        %v1422 = vpop.f32.mrf.mxu0
        %v1423 = vadd.f32 0.0, %v1422
        %v1424 = vpop.f32.mrf.mxu0
        %v1425 = vadd.f32 0.0, %v1424
        %1426 = vmatmul.bf16.gmra.mxu0 %v1398
        %v1427 = vpop.f32.mrf.mxu0
        %v1428 = vadd.f32 0.0, %v1427
        %v1429 = vpop.f32.mrf.mxu0
        %v1430 = vadd.f32 0.0, %v1429
        %1431 = vdwg.mxu0
        %v1432 = vadd.f32 %v1372, %v1413
        %v1433 = vadd.f32 %v1373, %v1415
        %v1434 = vadd.f32 %v1374, %v1418
        %v1435 = vadd.f32 %v1375, %v1420
        %v1436 = vadd.f32 %v1376, %v1423
        %v1437 = vadd.f32 %v1377, %v1425
        %v1438 = vadd.f32 %v1378, %v1428
        %v1439 = vadd.f32 %v1379, %v1430
        %v1441 = vshrl.u32 %v677, 16
        %v1443 = vrot.slane %v1441, 4
        %v1444 = vshll.u32 %v677, 16
        %v1446 = vrot.slane %v1444, 5
        %v1447 = vor.u32 %v1443, %v1446
        %v1448 = vrot.slane %v1447, 4
        %v1450 = vshll.u32 %v678, 16
        %v1452 = vrot.slane %v1450, 5
        %v1453 = vsel %vm815, %v1448, %v1452
        %s1454 = scalar_lea.vmem %s2, 16
        %v1455 = vld [vmem:[%s1454] sm:$0x3]
        %v1456 = vunpack.c.l.b16 %v1453
        %v1457 = vpack.c.b16 %v932, %v931
        %v1458 = vpack.c.b16 %v934, %v933
        %v1459 = vpack.c.b16 %v936, %v935
        %v1460 = vpack.c.b16 %v1456, %v937
        %v1462 = vsel %vm703, %v1457, 0
        %v1465 = vsel %vm703, %v1458, 0
        %v1468 = vsel %vm703, %v1459, 0
        %v1471 = vsel %vm703, %v1460, 0
        %v1474 = vsel %vm716, %v1455, 0
        %1476 = vmatpush.bf16.msra.mxu0 0
        %1477 = vmatpush.bf16.msra.mxu0 0
        %1478 = vmatpush.bf16.msra.mxu0 0
        %1479 = vmatpush.bf16.msra.mxu0 0
        %1480 = vmatpush.bf16.msra.mxu0 0
        %1481 = vmatpush.bf16.msra.mxu0 0
        %1482 = vmatpush.bf16.msra.mxu0 0
        %1483 = vmatpush.bf16.msra.mxu0 %v1474
        %1484 = vmatmul.bf16.gmra.mxu0 %v1462
        %v1485 = vpop.f32.mrf.mxu0
        %v1486 = vadd.f32 0.0, %v1485
        %v1487 = vpop.f32.mrf.mxu0
        %v1488 = vadd.f32 0.0, %v1487
        %1489 = vmatmul.bf16.gmra.mxu0 %v1465
        %v1490 = vpop.f32.mrf.mxu0
        %v1491 = vadd.f32 0.0, %v1490
        %v1492 = vpop.f32.mrf.mxu0
        %v1493 = vadd.f32 0.0, %v1492
        %1494 = vmatmul.bf16.gmra.mxu0 %v1468
        %v1495 = vpop.f32.mrf.mxu0
        %v1496 = vadd.f32 0.0, %v1495
        %v1497 = vpop.f32.mrf.mxu0
        %v1498 = vadd.f32 0.0, %v1497
        %1499 = vmatmul.bf16.gmra.mxu0 %v1471
        %v1500 = vpop.f32.mrf.mxu0
        %v1501 = vadd.f32 0.0, %v1500
        %v1502 = vpop.f32.mrf.mxu0
        %v1503 = vadd.f32 0.0, %v1502
        %1504 = vdwg.mxu0
        %v1505 = vadd.f32 %v1432, %v1486
        %v1506 = vadd.f32 %v1433, %v1488
        %v1507 = vadd.f32 %v1434, %v1491
        %v1508 = vadd.f32 %v1435, %v1493
        %v1509 = vadd.f32 %v1436, %v1496
        %v1510 = vadd.f32 %v1437, %v1498
        %v1511 = vadd.f32 %v1438, %v1501
        %v1512 = vadd.f32 %v1439, %v1503
        %v1513 = vld [vmem:[%s3] sm:$0x1]
        %v1515 = vperm.slane %v1513, 0
        %v1517 = vadd.f32 %v1505, %v1515
        %v1518 = vadd.f32 %v1506, %v1515
        %v1519 = vadd.f32 %v1507, %v1515
        %v1520 = vadd.f32 %v1508, %v1515
        %v1521 = vadd.f32 %v1509, %v1515
        %v1522 = vadd.f32 %v1510, %v1515
        %v1523 = vadd.f32 %v1511, %v1515
        %v1524 = vadd.f32 %v1512, %v1515
        %v1525 = vmax.f32 %v1517, 0.0
        %v1526 = vmax.f32 %v1518, 0.0
        %v1527 = vmax.f32 %v1519, 0.0
        %v1528 = vmax.f32 %v1520, 0.0
        %v1529 = vmax.f32 %v1521, 0.0
        %v1530 = vmax.f32 %v1522, 0.0
        %v1531 = vmax.f32 %v1523, 0.0
        %v1532 = vmax.f32 %v1524, 0.0
        %v1533 = vpack.c.bf16 %v1525, %v1525
        %v1534 = vpack.c.bf16 %v1526, %v1526
        %v1535 = vpack.c.bf16 %v1527, %v1527
        %v1536 = vpack.c.bf16 %v1528, %v1528
        %v1537 = vpack.c.bf16 %v1529, %v1529
        %v1538 = vpack.c.bf16 %v1530, %v1530
        %v1539 = vpack.c.bf16 %v1531, %v1531
        %v1540 = vpack.c.bf16 %v1532, %v1532
        %vm1541 = vcmask 60416
        %1542 = vst.msk [vmem:[%s626] sm:$0xf] %vm1541, %v1533
        %1543 = vst.msk [vmem:[%s626 + $0x4] sm:$0xf] %vm1541, %v1534
        %1544 = vst.msk [vmem:[%s626 + $0x8] sm:$0xf] %vm1541, %v1535
        %1545 = vst.msk [vmem:[%s626 + $0xc] sm:$0xf] %vm1541, %v1536
        %1546 = vst.msk [vmem:[%s626 + $0x10] sm:$0xf] %vm1541, %v1537
        %1547 = vst.msk [vmem:[%s626 + $0x14] sm:$0xf] %vm1541, %v1538
        %1548 = vst.msk [vmem:[%s626 + $0x18] sm:$0xf] %vm1541, %v1539
        %1549 = vst.msk [vmem:[%s626 + $0x1c] sm:$0xf] %vm1541, %v1540
        %s1550 = smul.u32 8, %s20
        %p1551 = scmp.lt.s32.totalorder %s19, 1
        %s1552 = scalar_select %p1551, %s19, 1
        %p1553 = scmp.lt.s32.totalorder %s1550, 7
        %s1554 = scalar_select %p1553, %s1550, 7
        %s1555 = smul.addr %s1552, 8
        %s1556 = sadd.s32 %s1554, %s1555
        %s1557 = smul.addr %s1556, 4
        %s1558 = scalar_lea.vmem %s4, %s1557
        // Predicated region
        $region140: #{grounded_audio_conv_model.3} parent=130 // pred_check
          %p1559 = pneg %p149
        $region141: #{grounded_audio_conv_model.3} parent=130 // pred_check_branch
          %1561 = sbr.rel (%p1559) target = $region143
        $region142: #{grounded_audio_conv_model.3} parent=130 // pred_region
          %s1562 = smul.u32 8, %s20
        $region143: #{grounded_audio_conv_model.3} parent=130 // pred_fallthru
          _
      $region131: #{grounded_audio_conv_model.3} parent=5 // pred_fallthru
        _
      %p1563 = scmp.le.s32.totalorder 2, %s10
      // Predicated region
      $region144: #{grounded_audio_conv_model.3} parent=5 // pred_check
        %p1564 = pneg %p1563
      $region145: #{grounded_audio_conv_model.3} parent=5 // pred_check_branch
        %1566 = sbr.rel (%p1564) target = $region147
      $region146: #{grounded_audio_conv_model.3} parent=5 // pred_region
        %s1567 = ssub.s32 %s10, 2
        // Predicated region
        $region148: #{grounded_audio_conv_model.3} parent=146 // pred_check
          %p1568 = pneg %p155
        $region149: #{grounded_audio_conv_model.3} parent=146 // pred_check_branch
          %1570 = sbr.rel (%p1568) target = $region151
        $region150: #{grounded_audio_conv_model.3} parent=146 // pred_region
          %s1571 = smul.u32 8, %s22
          %p1572 = scmp.lt.s32.totalorder %s21, 1
          %s1573 = scalar_select %p1572, %s21, 1
          %p1574 = scmp.lt.s32.totalorder %s1571, 7
          %s1575 = scalar_select %p1574, %s1571, 7
          %s1576 = smul.addr %s1573, 8
          %s1577 = sadd.s32 %s1575, %s1576
          %s1578 = smul.addr %s1577, 4
          %s1579 = scalar_lea.vmem %s4, %s1578
        $region151: #{grounded_audio_conv_model.3} parent=146 // pred_fallthru
          _
      $region147: #{grounded_audio_conv_model.3} parent=5 // pred_fallthru
        _
    $region6: #{grounded_audio_conv_model.3} parent=1 // loop_footer
      %s14 = sadd.s32 1, %s10
    $region7: #{grounded_audio_conv_model.3} parent=1 // loop_footer_branch
      %9 = sbr.rel target = $region3
    $region8: #{grounded_audio_conv_model.3} parent=1 // loop_exit
      _

// kernel: grounded_audio_conv_model.5
$region0: #{grounded_audio_conv_model.5}
  #allocation0 [shape = 'u32[]', space=smem, size = 0x4, offset = 0x4, fixed_abs, tag = 'smem constant byte address 0x4 - core index']
  #allocation1 [shape = 'u32[72,128]{1,0:T(1,128)}', space=vmem, size = 0x9000, scoped, tag = 'internal scratch']
  %s0 = inlined_call_operand.vmem [shape: f32[2,4,4], index: 0, kind: input, shape index: {}]
  %s1 = inlined_call_operand.vmem [shape: f32[4,4], index: 1, kind: input, shape index: {}]
  %s2 = inlined_call_operand.vmem [shape: f32[4,4], index: 2, kind: input, shape index: {}]
  %s3 = inlined_call_operand.vmem [shape: f32[4,32], index: 3, kind: input, shape index: {}]
  %s4 = inlined_call_operand.vmem [shape: f32[1,32], index: 4, kind: input, shape index: {}]
  %s5 = inlined_call_operand.vmem [shape: f32[2,4,32], index: 5, kind: output, shape index: {0}]
  %s6 = inlined_call_operand.vmem [shape: f32[2,4,32], index: 6, kind: output, shape index: {1}]
  %7 = xla_tuple %s5, %s6
  %s8 = sld [smem:[#allocation0]]
  $region61: #{grounded_audio_conv_model.5} parent=0
    _
  %s10 = ssub.s32 1, %s8
  %s11 = scalar_select 0, %s10, %s8
  loop: start=0, step=1, limit=4
  $region2: #{grounded_audio_conv_model.5} parent=0 // loop_pre_header
    _
  $region3: #{grounded_audio_conv_model.5} parent=0 // loop_header
    %s13 = sphi 0, %s17
    %p14 = scmp.ge.s32.totalorder %s13, 4
    %s23 = sphi 0, %s25
    %s26 = sphi 0, %s23
    %s27 = sphi 0, %s26
    %s43 = sphi 0, %s27
    %s47 = sphi 0, %s47
    %s49 = sphi 0, %s47
    %s50 = sphi 0, %s49
    %s64 = sphi 0, %s50
    %s68 = sphi 0, %s68
    %s70 = sphi 0, %s68
    %s71 = sphi 0, %s70
    %s85 = sphi 0, %s71
    %s89 = sphi 0, %s89
    %s91 = sphi 0, %s89
    %s92 = sphi 0, %s91
    %s106 = sphi 0, %s92
    %s110 = sphi 0, %s110
    %s112 = sphi 0, %s110
    %s113 = sphi 0, %s112
    %s127 = sphi 0, %s113
    %s133 = sphi 0, %s135
    %s136 = sphi 0, %s133
    %s137 = sphi 0, %s136
    %s153 = sphi 0, %s137
    %s159 = sphi 0, %s161
    %s162 = sphi 0, %s159
    %s163 = sphi 0, %s162
    %s179 = sphi 0, %s163
  $region4: #{grounded_audio_conv_model.5} parent=0 // loop_header_branch
    %16 = sbr.rel (%p14) target = $region8
  $region5: #{grounded_audio_conv_model.5} parent=0 // loop_body
    %s18 = ssub.s32 %s13, 1
    %s19 = ssub.s32 %s13, 2
    %s20 = sadd.s32 %s13, 1
    %s21 = ssub.s32 %s13, %s20
    %p22 = scmp.eq.s32.totalorder %s21, 0
    %s24 = sadd.s32 %s23, 1
    %s25 = scalar_select %p22, %s23, %s24
    %p28 = pneg %p22
    %p29 = scmp.eq.s32.totalorder %s13, 1
    %p30 = por %p28, %p29
    %p31 = scmp.ne.s32.totalorder %s23, %s26
    %p32 = scmp.eq.s32.totalorder %s13, 0
    %p33 = por %p31, %p32
    %p34 = scmp.ne.s32.totalorder %s23, %s26
    %p35 = scmp.eq.s32.totalorder %s18, 1
    %p36 = por %p34, %p35
    %p37 = scmp.ne.s32.totalorder %s26, %s27
    %p38 = scmp.eq.s32.totalorder %s18, 0
    %p39 = por %p37, %p38
    %p40 = scmp.ne.s32.totalorder %s26, %s27
    %p41 = scmp.eq.s32.totalorder %s19, 1
    %p42 = por %p40, %p41
    %p44 = scmp.ne.s32.totalorder %s27, %s43
    %p45 = scmp.eq.s32.totalorder %s19, 0
    %p46 = por %p44, %p45
    %s48 = sadd.s32 %s47, 1
    %p51 = scmp.eq.s32.totalorder %s13, 1
    %p52 = scmp.ne.s32.totalorder %s47, %s49
    %p53 = scmp.eq.s32.totalorder %s13, 0
    %p54 = por %p52, %p53
    %p55 = scmp.ne.s32.totalorder %s47, %s49
    %p56 = scmp.eq.s32.totalorder %s18, 1
    %p57 = por %p55, %p56
    %p58 = scmp.ne.s32.totalorder %s49, %s50
    %p59 = scmp.eq.s32.totalorder %s18, 0
    %p60 = por %p58, %p59
    %p61 = scmp.ne.s32.totalorder %s49, %s50
    %p62 = scmp.eq.s32.totalorder %s19, 1
    %p63 = por %p61, %p62
    %p65 = scmp.ne.s32.totalorder %s50, %s64
    %p66 = scmp.eq.s32.totalorder %s19, 0
    %p67 = por %p65, %p66
    %s69 = sadd.s32 %s68, 1
    %p72 = scmp.eq.s32.totalorder %s13, 1
    %p73 = scmp.ne.s32.totalorder %s68, %s70
    %p74 = scmp.eq.s32.totalorder %s13, 0
    %p75 = por %p73, %p74
    %p76 = scmp.ne.s32.totalorder %s68, %s70
    %p77 = scmp.eq.s32.totalorder %s18, 1
    %p78 = por %p76, %p77
    %p79 = scmp.ne.s32.totalorder %s70, %s71
    %p80 = scmp.eq.s32.totalorder %s18, 0
    %p81 = por %p79, %p80
    %p82 = scmp.ne.s32.totalorder %s70, %s71
    %p83 = scmp.eq.s32.totalorder %s19, 1
    %p84 = por %p82, %p83
    %p86 = scmp.ne.s32.totalorder %s71, %s85
    %p87 = scmp.eq.s32.totalorder %s19, 0
    %p88 = por %p86, %p87
    %s90 = sadd.s32 %s89, 1
    %p93 = scmp.eq.s32.totalorder %s13, 1
    %p94 = scmp.ne.s32.totalorder %s89, %s91
    %p95 = scmp.eq.s32.totalorder %s13, 0
    %p96 = por %p94, %p95
    %p97 = scmp.ne.s32.totalorder %s89, %s91
    %p98 = scmp.eq.s32.totalorder %s18, 1
    %p99 = por %p97, %p98
    %p100 = scmp.ne.s32.totalorder %s91, %s92
    %p101 = scmp.eq.s32.totalorder %s18, 0
    %p102 = por %p100, %p101
    %p103 = scmp.ne.s32.totalorder %s91, %s92
    %p104 = scmp.eq.s32.totalorder %s19, 1
    %p105 = por %p103, %p104
    %p107 = scmp.ne.s32.totalorder %s92, %s106
    %p108 = scmp.eq.s32.totalorder %s19, 0
    %p109 = por %p107, %p108
    %s111 = sadd.s32 %s110, 1
    %p114 = scmp.eq.s32.totalorder %s13, 1
    %p115 = scmp.ne.s32.totalorder %s110, %s112
    %p116 = scmp.eq.s32.totalorder %s13, 0
    %p117 = por %p115, %p116
    %p118 = scmp.ne.s32.totalorder %s110, %s112
    %p119 = scmp.eq.s32.totalorder %s18, 1
    %p120 = por %p118, %p119
    %p121 = scmp.ne.s32.totalorder %s112, %s113
    %p122 = scmp.eq.s32.totalorder %s18, 0
    %p123 = por %p121, %p122
    %p124 = scmp.ne.s32.totalorder %s112, %s113
    %p125 = scmp.eq.s32.totalorder %s19, 1
    %p126 = por %p124, %p125
    %p128 = scmp.ne.s32.totalorder %s113, %s127
    %p129 = scmp.eq.s32.totalorder %s19, 0
    %p130 = por %p128, %p129
    %s131 = ssub.s32 %s13, %s20
    %p132 = scmp.eq.s32.totalorder %s131, 0
    %s134 = sadd.s32 %s133, 1
    %s135 = scalar_select %p132, %s133, %s134
    %p138 = pneg %p132
    %p139 = scmp.eq.s32.totalorder %s13, 1
    %p140 = por %p138, %p139
    %p141 = scmp.ne.s32.totalorder %s133, %s136
    %p142 = scmp.eq.s32.totalorder %s13, 0
    %p143 = por %p141, %p142
    %p144 = scmp.ne.s32.totalorder %s133, %s136
    %p145 = scmp.eq.s32.totalorder %s18, 1
    %p146 = por %p144, %p145
    %p147 = scmp.ne.s32.totalorder %s136, %s137
    %p148 = scmp.eq.s32.totalorder %s18, 0
    %p149 = por %p147, %p148
    %p150 = scmp.ne.s32.totalorder %s136, %s137
    %p151 = scmp.eq.s32.totalorder %s19, 1
    %p152 = por %p150, %p151
    %p154 = scmp.ne.s32.totalorder %s137, %s153
    %p155 = scmp.eq.s32.totalorder %s19, 0
    %p156 = por %p154, %p155
    %s157 = ssub.s32 %s13, %s20
    %p158 = scmp.eq.s32.totalorder %s157, 0
    %s160 = sadd.s32 %s159, 1
    %s161 = scalar_select %p158, %s159, %s160
    %p164 = pneg %p158
    %p165 = scmp.eq.s32.totalorder %s13, 1
    %p166 = por %p164, %p165
    %p167 = scmp.ne.s32.totalorder %s159, %s162
    %p168 = scmp.eq.s32.totalorder %s13, 0
    %p169 = por %p167, %p168
    %p170 = scmp.ne.s32.totalorder %s159, %s162
    %p171 = scmp.eq.s32.totalorder %s18, 1
    %p172 = por %p170, %p171
    %p173 = scmp.ne.s32.totalorder %s162, %s163
    %p174 = scmp.eq.s32.totalorder %s18, 0
    %p175 = por %p173, %p174
    %p176 = scmp.ne.s32.totalorder %s162, %s163
    %p177 = scmp.eq.s32.totalorder %s19, 1
    %p178 = por %p176, %p177
    %p180 = scmp.ne.s32.totalorder %s163, %s179
    %p181 = scmp.eq.s32.totalorder %s19, 0
    %p182 = por %p180, %p181
    %p183 = scmp.le.s32.totalorder 1, %s13
    %p184 = scmp.lt.s32.totalorder %s13, 3
    %p185 = pnand %p183, %p184
    %p186 = pneg %p185
    // Predicated region
    $region9: #{grounded_audio_conv_model.5} parent=5 // pred_check
      _
    $region10: #{grounded_audio_conv_model.5} parent=5 // pred_check_branch
      %188 = sbr.rel (%p185) target = $region12
    $region11: #{grounded_audio_conv_model.5} parent=5 // pred_region
      %s189 = ssub.s32 %s13, 1
      // Predicated region
      $region13: #{grounded_audio_conv_model.5} parent=11 // pred_check
        %p190 = pneg %p60
      $region14: #{grounded_audio_conv_model.5} parent=11 // pred_check_branch
        %192 = sbr.rel (%p190) target = $region16
      $region15: #{grounded_audio_conv_model.5} parent=11 // pred_region
        _
      $region16: #{grounded_audio_conv_model.5} parent=11 // pred_fallthru
        _
      // Predicated region
      $region17: #{grounded_audio_conv_model.5} parent=11 // pred_check
        %p193 = pneg %p81
      $region18: #{grounded_audio_conv_model.5} parent=11 // pred_check_branch
        %195 = sbr.rel (%p193) target = $region20
      $region19: #{grounded_audio_conv_model.5} parent=11 // pred_region
        _
      $region20: #{grounded_audio_conv_model.5} parent=11 // pred_fallthru
        _
      // Predicated region
      $region21: #{grounded_audio_conv_model.5} parent=11 // pred_check
        %p196 = pneg %p102
      $region22: #{grounded_audio_conv_model.5} parent=11 // pred_check_branch
        %198 = sbr.rel (%p196) target = $region24
      $region23: #{grounded_audio_conv_model.5} parent=11 // pred_region
        _
      $region24: #{grounded_audio_conv_model.5} parent=11 // pred_fallthru
        _
      // Predicated region
      $region25: #{grounded_audio_conv_model.5} parent=11 // pred_check
        %p199 = pneg %p123
      $region26: #{grounded_audio_conv_model.5} parent=11 // pred_check_branch
        %201 = sbr.rel (%p199) target = $region28
      $region27: #{grounded_audio_conv_model.5} parent=11 // pred_region
        _
      $region28: #{grounded_audio_conv_model.5} parent=11 // pred_fallthru
        _
    $region12: #{grounded_audio_conv_model.5} parent=5 // pred_fallthru
      _
    %p202 = scmp.lt.s32.totalorder %s13, 2
    // Predicated region
    $region29: #{grounded_audio_conv_model.5} parent=5 // pred_check
      %p203 = pneg %p202
    $region30: #{grounded_audio_conv_model.5} parent=5 // pred_check_branch
      %205 = sbr.rel (%p203) target = $region32
    $region31: #{grounded_audio_conv_model.5} parent=5 // pred_region
      // Predicated region
      $region33: #{grounded_audio_conv_model.5} parent=31 // pred_check
        %p206 = pneg %p33
      $region34: #{grounded_audio_conv_model.5} parent=31 // pred_check_branch
        %208 = sbr.rel (%p206) target = $region36
      $region35: #{grounded_audio_conv_model.5} parent=31 // pred_region
        %p209 = scmp.lt.s32.totalorder %s13, 1
        %s210 = scalar_select %p209, %s13, 1
        %s211 = smul.addr %s210, 4
        %s212 = scalar_lea.vmem %s0, %s211
      $region36: #{grounded_audio_conv_model.5} parent=31 // pred_fallthru
        _
    $region32: #{grounded_audio_conv_model.5} parent=5 // pred_fallthru
      _
    %p213 = scmp.le.s32.totalorder 1, %s13
    %p214 = scmp.lt.s32.totalorder %s13, 3
    %p215 = pnand %p213, %p214
    %p216 = pneg %p215
    // Predicated region
    $region37: #{grounded_audio_conv_model.5} parent=5 // pred_check
      _
    $region38: #{grounded_audio_conv_model.5} parent=5 // pred_check_branch
      %218 = sbr.rel (%p215) target = $region40
    $region39: #{grounded_audio_conv_model.5} parent=5 // pred_region
      %s219 = ssub.s32 %s13, 1
      %p220 = scmp.lt.s32.totalorder %s18, 1
      %s221 = scalar_select %p220, %s18, 1
      %s222 = smul.addr %s221, 4
      %s223 = scalar_lea.vmem %s0, %s222
      %p224 = pneg %p39
      %p225 = pneg %p36
      %p226 = pneg %p60
      %p227 = pneg %p57
      %p228 = pneg %p81
      %p229 = pneg %p78
      %p230 = pneg %p102
      %p231 = pneg %p99
      %p232 = pneg %p123
      %p233 = pneg %p120
      %p234 = pneg %p149
      %p235 = pneg %p146
      %p236 = scmp.lt.s32.totalorder %s18, 1
      %s237 = scalar_select %p236, %s18, 1
      %s238 = smul.addr %s237, 4
      %s239 = scalar_lea.vmem %s5, %s238
      %p240 = pneg %p175
      %p241 = pneg %p172
      %p242 = scmp.lt.s32.totalorder %s18, 1
      %s243 = scalar_select %p242, %s18, 1
      %s244 = smul.addr %s243, 4
      %s245 = scalar_lea.vmem %s6, %s244
      %p246 = scmp.lt.s32.totalorder %s18, 1
      %s247 = scalar_select %p246, %s18, 1
      %s248 = smul.addr %s247, 4
      %s249 = scalar_lea.vmem %s0, %s248
      %p250 = scmp.lt.s32.totalorder %s18, 1
      %s251 = scalar_select %p250, %s18, 1
      %s252 = smul.addr %s251, 4
      %s253 = scalar_lea.vmem %s5, %s252
      %p254 = scmp.lt.s32.totalorder %s18, 1
      %s255 = scalar_select %p254, %s18, 1
      %s256 = smul.addr %s255, 4
      %s257 = scalar_lea.vmem %s6, %s256
      %v258 = vld [vmem:[%s249] sm:$0xf]
      %v259 = vld [vmem:[%s1] sm:$0xf]
      %vm260 = vcmask 31744
      %v262 = vsel %vm260, %v259, 0
      %vm264 = vcmask 1043456
      %v266 = vsel %vm264, %v258, 0
      %268 = vmatpush.msra.mxu0 0.0
      %269 = vmatpush.msra.mxu0 0.0
      %270 = vmatpush.msra.mxu0 0.0
      %271 = vmatpush.msra.mxu0 0.0
      %272 = vmatpush.msra.mxu0 0.0
      %273 = vmatpush.msra.mxu0 0.0
      %274 = vmatpush.msra.mxu0 0.0
      %275 = vmatpush.msra.mxu0 0.0
      %276 = vmatpush.msra.mxu0 0.0
      %277 = vmatpush.msra.mxu0 0.0
      %278 = vmatpush.msra.mxu0 0.0
      %279 = vmatpush.msra.mxu0 0.0
      %280 = vmatpush.msra.mxu0 0.0
      %281 = vmatpush.msra.mxu0 0.0
      %282 = vmatpush.msra.mxu0 0.0
      %283 = vmatpush.msra.mxu0 %v266
      %284 = vmatmul.f32.gmra.mxu0 %v262
      %v285 = vpop.f32.mrf.mxu0
      %v286 = vadd.f32 0.0, %v285
      %287 = vdwg.mxu0
      %v288 = vld [vmem:[%s2] sm:$0xf]
      %v289 = vsel %vm260, %v258, 0
      %v292 = vsel %vm264, %v288, 0
      %294 = vmatpush.msra.mxu0 0.0
      %295 = vmatpush.msra.mxu0 0.0
      %296 = vmatpush.msra.mxu0 0.0
      %297 = vmatpush.msra.mxu0 0.0
      %298 = vmatpush.msra.mxu0 0.0
      %299 = vmatpush.msra.mxu0 0.0
      %300 = vmatpush.msra.mxu0 0.0
      %301 = vmatpush.msra.mxu0 0.0
      %302 = vmatpush.msra.mxu0 0.0
      %303 = vmatpush.msra.mxu0 0.0
      %304 = vmatpush.msra.mxu0 0.0
      %305 = vmatpush.msra.mxu0 0.0
      %306 = vmatpush.msra.mxu0 0.0
      %307 = vmatpush.msra.mxu0 0.0
      %308 = vmatpush.msra.mxu0 0.0
      %309 = vmatpush.msra.mxu0 %v292
      %310 = vmatmul.f32.gmra.mxu0 %v289
      %v311 = vpop.f32.mrf.mxu0
      %v312 = vadd.f32 0.0, %v311
      %313 = vdwg.mxu0
      %v314 = vadd.f32 %v286, 1e-06
      %v315 = vrcp.pop %v314
      %v316 = vmul.f32 %v314, %v315
      %v317 = vsub.f32 1.0, %v316
      %v318 = vmul.f32 %v315, %v317
      %v319 = vadd.f32 %v315, %v318
      %vm320 = vweird.f32 %v314
      %vm321 = vweird.f32 %v315
      %vm322 = vmor %vm320, %vm321
      %v323 = vsel %vm322, %v315, %v319
      %v324 = vand.u32 2147483647, %v314
      %vm325 = vcmp.eq.f32.partialorder %v324, 8.507059e+37
      %v326 = vand.u32 %v314, 2147483648
      %v327 = vor.u32 1.1754944e-38, %v326
      %v328 = vsel %vm325, %v327, %v323
      %v329 = vmul.f32 6.2831855, %v328
      %v330 = vperm.slane %v329, 3
      %v331 = vmul.f32 %v286, %v330
      %v332 = vadd.f32 %v312, 1e-06
      %v333 = vrcp.pop %v332
      %v334 = vmul.f32 %v332, %v333
      %v335 = vsub.f32 1.0, %v334
      %v336 = vmul.f32 %v333, %v335
      %v337 = vadd.f32 %v333, %v336
      %vm338 = vweird.f32 %v332
      %vm339 = vweird.f32 %v333
      %vm340 = vmor %vm338, %vm339
      %v341 = vsel %vm340, %v333, %v337
      %v342 = vand.u32 2147483647, %v332
      %vm343 = vcmp.eq.f32.partialorder %v342, 8.507059e+37
      %v344 = vand.u32 %v332, 2147483648
      %v345 = vor.u32 1.1754944e-38, %v344
      %v346 = vsel %vm343, %v345, %v341
      %v347 = vmul.f32 6.2831855, %v346
      %349 = vset.pattern.permute.xlu0 3
      %350 = vperm.xlu0 %349, %v347
      %v351 = vpop.permute.xlu0 %350
      %v353 = vmul.f32 %v312, %v351
      %v354 = vld [vmem:[%s3] sm:$0xf]
      %v355 = vld [vmem:[%s4] sm:$0x1]
      %v357 = vperm.slane %v355, 0
      %v360 = vsel %vm260, %v331, 0
      %v363 = vsel %vm264, %v354, 0
      %365 = vmatpush.msra.mxu0 0.0
      %366 = vmatpush.msra.mxu0 0.0
      %367 = vmatpush.msra.mxu0 0.0
      %368 = vmatpush.msra.mxu0 0.0
      %369 = vmatpush.msra.mxu0 0.0
      %370 = vmatpush.msra.mxu0 0.0
      %371 = vmatpush.msra.mxu0 0.0
      %372 = vmatpush.msra.mxu0 0.0
      %373 = vmatpush.msra.mxu0 0.0
      %374 = vmatpush.msra.mxu0 0.0
      %375 = vmatpush.msra.mxu0 0.0
      %376 = vmatpush.msra.mxu0 0.0
      %377 = vmatpush.msra.mxu0 0.0
      %378 = vmatpush.msra.mxu0 0.0
      %379 = vmatpush.msra.mxu0 0.0
      %380 = vmatpush.msra.mxu0 %v363
      %381 = vmatmul.f32.gmra.mxu0 %v360
      %v382 = vpop.f32.mrf.mxu0
      %v383 = vadd.f32 %v357, %v382
      %384 = vdwg.mxu0
      %v385 = vand.u32 2147483647, %v383
      %vm386 = vcmp.le.f32.partialorder %v385, 0.7853982
      %vm387 = vcmp.lt.s32.totalorder %v383, 0
      %v388 = vand.u32 %v383, 2139095040
      %v389 = vshrl.u32 %v388, 23
      %v390 = vsub.s32 %v389, 127
      %v391 = vand.u32 2147483647, %v383
      %v392 = vand.u32 %v391, 8388607
      %v393 = vor.u32 %v392, 8388608
      %v394 = vsub.s32 0, %v393
      %v395 = vadd.s32 %v390, 1
      %vm396 = vcmp.gt.s32.totalorder %v395, 0
      %v397 = vsel %vm396, %v395, 0
      %v398 = vshrl.u32 %v397, 5
      %v399 = vand.u32 %v397, 31
      %v400 = vsub.s32 32, %v399
      %v401 = vshrl.u32 683565275, %v400
      %v402 = vshll.u32 683565275, %v399
      %v403 = vshrl.u32 2475754826, %v400
      %v404 = vor.u32 %v402, %v403
      %v405 = vshll.u32 2475754826, %v399
      %v406 = vshrl.u32 2131351028, %v400
      %v407 = vor.u32 %v405, %v406
      %v408 = vshll.u32 2131351028, %v399
      %v409 = vshrl.u32 2102212464, %v400
      %v410 = vor.u32 %v408, %v409
      %v411 = vshll.u32 2102212464, %v399
      %v412 = vshrl.u32 920167782, %v400
      %v413 = vor.u32 %v411, %v412
      %v414 = vshll.u32 920167782, %v399
      %v415 = vshrl.u32 1326507024, %v400
      %v416 = vor.u32 %v414, %v415
      %vm417 = vcmp.lt.s32.totalorder %v398, 1
      %vm418 = vcmp.lt.s32.totalorder %v398, 2
      %vm419 = vcmp.lt.s32.totalorder %v398, 3
      %vm420 = vcmp.lt.s32.totalorder %v398, 4
      %v421 = vsel %vm417, %v401, %v404
      %v422 = vsel %vm420, %v410, 2102212464
      %v423 = vsel %vm419, %v407, %v422
      %v424 = vsel %vm418, %v421, %v423
      %v425 = vsel %vm417, %v404, %v407
      %v426 = vsel %vm420, %v413, 920167782
      %v427 = vsel %vm419, %v410, %v426
      %v428 = vsel %vm418, %v425, %v427
      %v429 = vsel %vm417, %v407, %v410
      %v430 = vsel %vm420, %v416, 1326507024
      %v431 = vsel %vm419, %v413, %v430
      %v432 = vsel %vm418, %v429, %v431
      %v433 = vshll.u32 %v393, 8
      %v434 = vand.u32 %v433, 65535
      %v435 = vshrl.u32 %v433, 16
      %v436 = vand.u32 %v432, 65535
      %v437 = vshrl.u32 %v432, 16
      %v438 = vmul.u32 %v434, %v436
      %v439 = vmul.u32 %v434, %v437
      %v440 = vmul.u32 %v435, %v436
      %v441 = vmul.u32 %v435, %v437
      %v442 = vshll.u32 %v439, 16
      %v443 = vshrl.u32 %v439, 16
      %v444 = vshll.u32 %v440, 16
      %v445 = vshrl.u32 %v440, 16
      %vm446 = vc.u32 %v438, %v442
      %v447 = vsel %vm446, 1, 0
      %v448 = vadd.s32 %v438, %v442
      %v449 = vadd.s32 %v441, %v447
      %vm450 = vc.u32 %v448, %v444
      %v451 = vsel %vm450, 1, 0
      %v452 = vadd.s32 %v448, %v444
      %v453 = vadd.s32 %v449, %v451
      %v454 = vadd.s32 %v453, %v443
      %v455 = vadd.s32 %v454, %v445
      %v456 = vand.u32 %v433, 65535
      %v457 = vshrl.u32 %v433, 16
      %v458 = vand.u32 %v428, 65535
      %v459 = vshrl.u32 %v428, 16
      %v460 = vmul.u32 %v456, %v458
      %v461 = vmul.u32 %v456, %v459
      %v462 = vmul.u32 %v457, %v458
      %v463 = vmul.u32 %v457, %v459
      %v464 = vshll.u32 %v461, 16
      %v465 = vshrl.u32 %v461, 16
      %v466 = vshll.u32 %v462, 16
      %v467 = vshrl.u32 %v462, 16
      %vm468 = vc.u32 %v460, %v464
      %v469 = vsel %vm468, 1, 0
      %v470 = vadd.s32 %v460, %v464
      %v471 = vadd.s32 %v463, %v469
      %vm472 = vc.u32 %v470, %v466
      %v473 = vsel %vm472, 1, 0
      %v474 = vadd.s32 %v470, %v466
      %v475 = vadd.s32 %v471, %v473
      %v476 = vadd.s32 %v475, %v465
      %v477 = vadd.s32 %v476, %v467
      %v478 = vmul.u32 %v433, %v424
      %v479 = vadd.s32 %v455, %v474
      %vm480 = vc.u32 %v455, %v474
      %v481 = vadd.s32 %v477, 1
      %v482 = vsel %vm480, %v481, %v477
      %v483 = vadd.s32 %v478, %v482
      %v484 = vadd.s32 %v483, 536870912
      %v485 = vshrl.u32 %v484, 30
      %v486 = vshll.u32 %v485, 30
      %v487 = vsub.s32 %v483, %v486
      %vm488 = vcmp.lt.s32.totalorder %v487, 0
      %v489 = vsub.s32 0, %v487
      %v490 = vsel %vm488, %v489, %v487
      %v491 = vclz %v490
      %v492 = vsub.s32 %v491, 2
      %vm493 = vcmp.gt.s32.totalorder 0, %v492
      %v494 = vsel %vm493, 0, %v492
      %v495 = vsub.s32 32, %v494
      %v496 = vshll.u32 %v487, %v494
      %v497 = vshrl.u32 %v479, %v495
      %v498 = vor.u32 %v496, %v497
      %v499 = vsub.s32 4294967266, %v494
      %v500 = vadd.s32 %v499, 127
      %v501 = vshll.u32 %v500, 23
      %v502 = vor.u32 4788187, %v501
      %v503 = vand.u32 2147483647, %v502
      %v505 = vcvt.s32.f32 %v498
      %v506 = vmul.f32 %v505, %v503
      %v507 = vxor.u32 %v506, 2147483648
      %v508 = vsel %vm387, %v507, %v506
      %v509 = vsub.s32 4, %v485
      %v510 = vsel %vm387, %v509, %v485
      %v511 = vsel %vm386, %v383, %v508
      %v512 = vsel %vm386, 0, %v510
      %v513 = vmul.f32 %v511, %v511
      %v514 = vmul.f32 %v513, -0.001358992
      %v515 = vadd.f32 %v514, 0.041655596
      %v516 = vmul.f32 %v513, %v515
      %v517 = vadd.f32 %v516, -0.4999988
      %v518 = vmul.f32 %v513, %v517
      %v519 = vadd.f32 1.0, %v518
      %v520 = vmul.f32 %v511, %v511
      %v521 = vmul.f32 %v520, -0.00019511016
      %v522 = vadd.f32 %v521, 0.008332121
      %v523 = vmul.f32 %v520, %v522
      %v524 = vadd.f32 %v523, -0.16666654
      %v525 = vmul.f32 %v520, %v524
      %v526 = vadd.f32 %v525, 1.0
      %v527 = vmul.f32 %v526, %v511
      %vm528 = vweird.f32 %v383
      %v529 = vadd.s32 %v512, 3
      %v530 = vand.u32 %v529, 3
      %vm531 = vcmp.lt.s32.totalorder %v530, 2
      %vm532 = vcmp.eq.s32.totalorder %v530, 0
      %v533 = vxor.u32 %v527, 2147483648
      %v534 = vsel %vm532, %v519, %v533
      %vm535 = vcmp.eq.s32.totalorder %v530, 2
      %v536 = vxor.u32 %v519, 2147483648
      %v537 = vsel %vm535, %v536, %v527
      %v538 = vsel %vm531, %v534, %v537
      %v539 = vsel %vm528, nan, %v538
      %vm540 = vcmask 257024
      %541 = vst.msk [vmem:[%s253] sm:$0xf] %vm540, %v539
      %v543 = vsel %vm260, %v353, 0
      %545 = vmatpush.msra.mxu0 0.0
      %546 = vmatpush.msra.mxu0 0.0
      %547 = vmatpush.msra.mxu0 0.0
      %548 = vmatpush.msra.mxu0 0.0
      %549 = vmatpush.msra.mxu0 0.0
      %550 = vmatpush.msra.mxu0 0.0
      %551 = vmatpush.msra.mxu0 0.0
      %552 = vmatpush.msra.mxu0 0.0
      %553 = vmatpush.msra.mxu0 0.0
      %554 = vmatpush.msra.mxu0 0.0
      %555 = vmatpush.msra.mxu0 0.0
      %556 = vmatpush.msra.mxu0 0.0
      %557 = vmatpush.msra.mxu0 0.0
      %558 = vmatpush.msra.mxu0 0.0
      %559 = vmatpush.msra.mxu0 0.0
      %560 = vmatpush.msra.mxu0 %v363
      %561 = vmatmul.f32.gmra.mxu0 %v543
      %v562 = vpop.f32.mrf.mxu0
      %v563 = vadd.f32 %v357, %v562
      %564 = vdwg.mxu0
      %v565 = vand.u32 2147483647, %v563
      %vm566 = vcmp.le.f32.partialorder %v565, 0.7853982
      %vm567 = vcmp.lt.s32.totalorder %v563, 0
      %v568 = vand.u32 %v563, 2139095040
      %v569 = vshrl.u32 %v568, 23
      %v570 = vsub.s32 %v569, 127
      %v571 = vand.u32 2147483647, %v563
      %v572 = vand.u32 %v571, 8388607
      %v573 = vor.u32 %v572, 8388608
      %v574 = vsub.s32 0, %v573
      %v575 = vadd.s32 %v570, 1
      %vm576 = vcmp.gt.s32.totalorder %v575, 0
      %v577 = vsel %vm576, %v575, 0
      %v578 = vshrl.u32 %v577, 5
      %v579 = vand.u32 %v577, 31
      %v580 = vsub.s32 32, %v579
      %v581 = vshrl.u32 683565275, %v580
      %v582 = vshll.u32 683565275, %v579
      %v583 = vshrl.u32 2475754826, %v580
      %v584 = vor.u32 %v582, %v583
      %v585 = vshll.u32 2475754826, %v579
      %v586 = vshrl.u32 2131351028, %v580
      %v587 = vor.u32 %v585, %v586
      %v588 = vshll.u32 2131351028, %v579
      %v589 = vshrl.u32 2102212464, %v580
      %v590 = vor.u32 %v588, %v589
      %v591 = vshll.u32 2102212464, %v579
      %v592 = vshrl.u32 920167782, %v580
      %v593 = vor.u32 %v591, %v592
      %v594 = vshll.u32 920167782, %v579
      %v595 = vshrl.u32 1326507024, %v580
      %v596 = vor.u32 %v594, %v595
      %vm597 = vcmp.lt.s32.totalorder %v578, 1
      %vm598 = vcmp.lt.s32.totalorder %v578, 2
      %vm599 = vcmp.lt.s32.totalorder %v578, 3
      %vm600 = vcmp.lt.s32.totalorder %v578, 4
      %v601 = vsel %vm597, %v581, %v584
      %v602 = vsel %vm600, %v590, 2102212464
      %v603 = vsel %vm599, %v587, %v602
      %v604 = vsel %vm598, %v601, %v603
      %v605 = vsel %vm597, %v584, %v587
      %v606 = vsel %vm600, %v593, 920167782
      %v607 = vsel %vm599, %v590, %v606
      %v608 = vsel %vm598, %v605, %v607
      %v609 = vsel %vm597, %v587, %v590
      %v610 = vsel %vm600, %v596, 1326507024
      %v611 = vsel %vm599, %v593, %v610
      %v612 = vsel %vm598, %v609, %v611
      %v613 = vshll.u32 %v573, 8
      %v614 = vand.u32 %v613, 65535
      %v615 = vshrl.u32 %v613, 16
      %v616 = vand.u32 %v612, 65535
      %v617 = vshrl.u32 %v612, 16
      %v618 = vmul.u32 %v614, %v616
      %v619 = vmul.u32 %v614, %v617
      %v620 = vmul.u32 %v615, %v616
      %v621 = vmul.u32 %v615, %v617
      %v622 = vshll.u32 %v619, 16
      %v623 = vshrl.u32 %v619, 16
      %v624 = vshll.u32 %v620, 16
      %v625 = vshrl.u32 %v620, 16
      %vm626 = vc.u32 %v618, %v622
      %v627 = vsel %vm626, 1, 0
      %v628 = vadd.s32 %v618, %v622
      %v629 = vadd.s32 %v621, %v627
      %vm630 = vc.u32 %v628, %v624
      %v631 = vsel %vm630, 1, 0
      %v632 = vadd.s32 %v628, %v624
      %v633 = vadd.s32 %v629, %v631
      %v634 = vadd.s32 %v633, %v623
      %v635 = vadd.s32 %v634, %v625
      %v636 = vand.u32 %v613, 65535
      %v637 = vshrl.u32 %v613, 16
      %v638 = vand.u32 %v608, 65535
      %v639 = vshrl.u32 %v608, 16
      %v640 = vmul.u32 %v636, %v638
      %v641 = vmul.u32 %v636, %v639
      %v642 = vmul.u32 %v637, %v638
      %v643 = vmul.u32 %v637, %v639
      %v644 = vshll.u32 %v641, 16
      %v645 = vshrl.u32 %v641, 16
      %v646 = vshll.u32 %v642, 16
      %v647 = vshrl.u32 %v642, 16
      %vm648 = vc.u32 %v640, %v644
      %v649 = vsel %vm648, 1, 0
      %v650 = vadd.s32 %v640, %v644
      %v651 = vadd.s32 %v643, %v649
      %vm652 = vc.u32 %v650, %v646
      %v653 = vsel %vm652, 1, 0
      %v654 = vadd.s32 %v650, %v646
      %v655 = vadd.s32 %v651, %v653
      %v656 = vadd.s32 %v655, %v645
      %v657 = vadd.s32 %v656, %v647
      %v658 = vmul.u32 %v613, %v604
      %v659 = vadd.s32 %v635, %v654
      %vm660 = vc.u32 %v635, %v654
      %v661 = vadd.s32 %v657, 1
      %v662 = vsel %vm660, %v661, %v657
      %v663 = vadd.s32 %v658, %v662
      %v664 = vadd.s32 %v663, 536870912
      %v665 = vshrl.u32 %v664, 30
      %v666 = vshll.u32 %v665, 30
      %v667 = vsub.s32 %v663, %v666
      %vm668 = vcmp.lt.s32.totalorder %v667, 0
      %v669 = vsub.s32 0, %v667
      %v670 = vsel %vm668, %v669, %v667
      %v671 = vclz %v670
      %v672 = vsub.s32 %v671, 2
      %vm673 = vcmp.gt.s32.totalorder 0, %v672
      %v674 = vsel %vm673, 0, %v672
      %v675 = vsub.s32 32, %v674
      %v676 = vshll.u32 %v667, %v674
      %v677 = vshrl.u32 %v659, %v675
      %v678 = vor.u32 %v676, %v677
      %v679 = vsub.s32 4294967266, %v674
      %v680 = vadd.s32 %v679, 127
      %v681 = vshll.u32 %v680, 23
      %v682 = vor.u32 4788187, %v681
      %v683 = vand.u32 2147483647, %v682
      %v685 = vcvt.s32.f32 %v678
      %v686 = vmul.f32 %v685, %v683
      %v687 = vxor.u32 %v686, 2147483648
      %v688 = vsel %vm567, %v687, %v686
      %v689 = vsub.s32 4, %v665
      %v690 = vsel %vm567, %v689, %v665
      %v691 = vsel %vm566, %v563, %v688
      %v692 = vsel %vm566, 0, %v690
      %v693 = vmul.f32 %v691, %v691
      %v694 = vmul.f32 %v693, -0.001358992
      %v695 = vadd.f32 %v694, 0.041655596
      %v696 = vmul.f32 %v693, %v695
      %v697 = vadd.f32 %v696, -0.4999988
      %v698 = vmul.f32 %v693, %v697
      %v699 = vadd.f32 1.0, %v698
      %v700 = vmul.f32 %v691, %v691
      %v701 = vmul.f32 %v700, -0.00019511016
      %v702 = vadd.f32 %v701, 0.008332121
      %v703 = vmul.f32 %v700, %v702
      %v704 = vadd.f32 %v703, -0.16666654
      %v705 = vmul.f32 %v700, %v704
      %v706 = vadd.f32 %v705, 1.0
      %v707 = vmul.f32 %v706, %v691
      %vm708 = vweird.f32 %v563
      %v709 = vadd.s32 %v692, 3
      %v710 = vand.u32 %v709, 3
      %vm711 = vcmp.lt.s32.totalorder %v710, 2
      %vm712 = vcmp.eq.s32.totalorder %v710, 0
      %v713 = vxor.u32 %v707, 2147483648
      %v714 = vsel %vm712, %v699, %v713
      %vm715 = vcmp.eq.s32.totalorder %v710, 2
      %v716 = vxor.u32 %v699, 2147483648
      %v717 = vsel %vm715, %v716, %v707
      %v718 = vsel %vm711, %v714, %v717
      %v719 = vsel %vm708, nan, %v718
      %720 = vst.msk [vmem:[%s257] sm:$0xf] %vm540, %v719
      %p721 = scmp.lt.s32.totalorder %s18, 1
      %s722 = scalar_select %p721, %s18, 1
      %s723 = smul.addr %s722, 4
      %s724 = scalar_lea.vmem %s5, %s723
      %p725 = scmp.lt.s32.totalorder %s18, 1
      %s726 = scalar_select %p725, %s18, 1
      %s727 = smul.addr %s726, 4
      %s728 = scalar_lea.vmem %s6, %s727
      // Predicated region
      $region41: #{grounded_audio_conv_model.5} parent=39 // pred_check
        %p729 = pneg %p146
      $region42: #{grounded_audio_conv_model.5} parent=39 // pred_check_branch
        %731 = sbr.rel (%p729) target = $region44
      $region43: #{grounded_audio_conv_model.5} parent=39 // pred_region
        _
      $region44: #{grounded_audio_conv_model.5} parent=39 // pred_fallthru
        _
      // Predicated region
      $region45: #{grounded_audio_conv_model.5} parent=39 // pred_check
        %p732 = pneg %p172
      $region46: #{grounded_audio_conv_model.5} parent=39 // pred_check_branch
        %734 = sbr.rel (%p732) target = $region48
      $region47: #{grounded_audio_conv_model.5} parent=39 // pred_region
        _
      $region48: #{grounded_audio_conv_model.5} parent=39 // pred_fallthru
        _
    $region40: #{grounded_audio_conv_model.5} parent=5 // pred_fallthru
      _
    %p735 = scmp.le.s32.totalorder 2, %s13
    // Predicated region
    $region49: #{grounded_audio_conv_model.5} parent=5 // pred_check
      %p736 = pneg %p735
    $region50: #{grounded_audio_conv_model.5} parent=5 // pred_check_branch
      %738 = sbr.rel (%p736) target = $region52
    $region51: #{grounded_audio_conv_model.5} parent=5 // pred_region
      %s739 = ssub.s32 %s13, 2
      // Predicated region
      $region53: #{grounded_audio_conv_model.5} parent=51 // pred_check
        %p740 = pneg %p152
      $region54: #{grounded_audio_conv_model.5} parent=51 // pred_check_branch
        %742 = sbr.rel (%p740) target = $region56
      $region55: #{grounded_audio_conv_model.5} parent=51 // pred_region
        %p743 = scmp.lt.s32.totalorder %s19, 1
        %s744 = scalar_select %p743, %s19, 1
        %s745 = smul.addr %s744, 4
        %s746 = scalar_lea.vmem %s5, %s745
      $region56: #{grounded_audio_conv_model.5} parent=51 // pred_fallthru
        _
      // Predicated region
      $region57: #{grounded_audio_conv_model.5} parent=51 // pred_check
        %p747 = pneg %p178
      $region58: #{grounded_audio_conv_model.5} parent=51 // pred_check_branch
        %749 = sbr.rel (%p747) target = $region60
      $region59: #{grounded_audio_conv_model.5} parent=51 // pred_region
        %p750 = scmp.lt.s32.totalorder %s19, 1
        %s751 = scalar_select %p750, %s19, 1
        %s752 = smul.addr %s751, 4
        %s753 = scalar_lea.vmem %s6, %s752
      $region60: #{grounded_audio_conv_model.5} parent=51 // pred_fallthru
        _
    $region52: #{grounded_audio_conv_model.5} parent=5 // pred_fallthru
      _
  $region6: #{grounded_audio_conv_model.5} parent=0 // loop_footer
    %s17 = sadd.s32 1, %s13
  $region7: #{grounded_audio_conv_model.5} parent=0 // loop_footer_branch
    %12 = sbr.rel target = $region3
  $region8: #{grounded_audio_conv_model.5} parent=0 // loop_exit
    _

</llo_original>
